<compile_context>
chip_gen: v5e
topology: v5e:2x2
jax: 0.10.0
libtpu: 0.0.40
codegen_flags: <defaults>
</compile_context>

<pallas_src>
import jax
import jax.numpy as jnp
from jax.experimental import pallas as pl
from jax.experimental.pallas import tpu as pltpu

INPUT_DIM = 5
LATENT_DIM = 12
HIDDEN_DIM = 128
DD = INPUT_DIM * INPUT_DIM          # 25

# padded layer widths (lane multiples of 128)
P_X = 128          # padded input / deconv2 output
P_C1 = 512         # padded 16*25 = 400
P_C2 = 896         # padded 32*25 = 800
P_H = 128          # hidden
P_MS = 256         # fused mu(0:128) / logvar(128:256)
P_OUT = 512        # output slab: x_rec | mean | logvar | z


# ----------------------------------------------------------------------------
# Fused Pallas kernel: the entire VAE forward
# ----------------------------------------------------------------------------
def _vae_fused_kernel(act_ref, wk128_ref, wk512_ref, wk896_ref, bias_ref,
                      out_ref):
    def dense(h, w, bias_row, n, relu):
        y = jnp.dot(h.astype(jnp.bfloat16), w,
                    preferred_element_type=jnp.float32)
        y = y + bias_ref[bias_row:bias_row + 1, 0:n]      # [1, n] broadcasts
        return jnp.maximum(y, 0.0) if relu else y

    x = act_ref[:, 0:P_X]              # [B,128]  (real lanes 0:25, rest 0)
    eps = act_ref[:, P_X:2 * P_X]      # [B,128]  (real lanes 0:12, rest 0)

    # ---------------- encoder ----------------
    h = dense(x, wk128_ref[:, 0:512], 0, P_C1, True)        # conv1   -> [B,512]
    h = dense(h, wk512_ref[:, 0:896], 1, P_C2, True)        # conv2   -> [B,896]
    h = dense(h, wk896_ref[:, 0:128], 2, P_H, True)         # fc_enc1 -> [B,128]
    ms = dense(h, wk128_ref[:, 512:768], 3, P_MS, False)    # mu|logvar [B,256]
    mean = ms[:, 0:128]
    log_var = ms[:, 128:256]

    # reparameterization: z = mean + exp(0.5*logvar) * eps
    # (padded lanes: 0 + exp(0)*0 = 0, so z stays a clean zero-padded vreg)
    z = mean + jnp.exp(0.5 * log_var) * eps

    # ---------------- decoder ----------------
    g = dense(z, wk128_ref[:, 768:896], 4, P_H, True)       # fc_dec1 -> [B,128]
    g = dense(g, wk128_ref[:, 896:1792], 5, P_C2, True)     # fc_dec2 -> [B,896]
    g = dense(g, wk896_ref[:, 128:640], 6, P_C1, True)      # deconv1 -> [B,512]
    g = dense(g, wk512_ref[:, 896:1024], 7, P_X, False)     # deconv2 -> [B,128]

    # single lane-dense output slab (unmasked, tile-aligned stores)
    out_ref[:, 0:128] = g
    out_ref[:, 128:256] = mean
    out_ref[:, 256:384] = log_var
    out_ref[:, 384:512] = z


def vae_forward(prep, x, eps):
    """Fused VAE forward.  Returns (x_rec [B,5,5], z, mean, log_var)."""
    d = INPUT_DIM
    x2 = x.reshape(-1, DD).astype(jnp.float32)
    b = x2.shape[0]

    # one packed activation slab: x in lanes 0:25, eps in lanes 128:140
    act = jnp.concatenate(
        [x2, jnp.zeros((b, P_X - DD), jnp.float32),
         eps.astype(jnp.float32), jnp.zeros((b, P_X - LATENT_DIM), jnp.float32)],
        axis=1)

    vmem = pl.BlockSpec(memory_space=pltpu.MemorySpace.VMEM)
    out = pl.pallas_call(
        _vae_fused_kernel,
        out_shape=jax.ShapeDtypeStruct((b, P_OUT), jnp.float32),
        in_specs=[vmem] * 5,
        out_specs=vmem,
    )(act, prep["w_k128"], prep["w_k512"], prep["w_k896"], prep["bias"])

    x_rec = out[:, 0:DD].reshape(b, d, d)
    mean = out[:, 128:128 + LATENT_DIM]
    log_var = out[:, 256:256 + LATENT_DIM]
    z = out[:, 384:384 + LATENT_DIM]
    return x_rec, z, mean, log_var


# ----------------------------------------------------------------------------
# One-time parameter preparation (outside the jitted hot path)
# ----------------------------------------------------------------------------
def _conv3x3_to_dense(w_oihw, k_pad, n_pad):
    """Fold Conv2d(k=3, s=1, p=1) into a zero-padded dense matrix M so that
    out_flat = in_flat @ M with NCHW flattening.  Valid ONLY for k=3,s=1,p=1."""
    cout, cin = w_oihw.shape[0], w_oihw.shape[1]
    d = INPUT_DIM
    eye = jnp.eye(cin * d * d, dtype=jnp.float32).reshape(cin * d * d, cin, d, d)
    cols = jax.lax.conv_general_dilated(
        eye, w_oihw.astype(jnp.float32), window_strides=(1, 1), padding="SAME",
        dimension_numbers=("NCHW", "OIHW", "NCHW"))     # [Cin*d*d, Cout, d, d]
    dense = cols.reshape(cin * d * d, cout * d * d)
    out = jnp.zeros((k_pad, n_pad), jnp.float32)
    return out.at[:cin * d * d, :cout * d * d].set(dense)


def _pad2(w, k_pad, n_pad):
    k, n = w.shape
    out = jnp.zeros((k_pad, n_pad), jnp.float32)
    return out.at[:k, :n].set(w.astype(jnp.float32))


def prepare_params(params):
    """Pack all weights/biases into a few pre-padded, lane-aligned slabs.
    Called ONCE at setup; no per-forward weight reshapes remain."""
    # ConvTranspose2d(k=3, s=1, p=1) == Conv2d with flipped, transposed kernel.
    wt1_eq = jnp.flip(params["deconv1_w"], axis=(2, 3)).transpose(1, 0, 2, 3)
    wt2_eq = jnp.flip(params["deconv2_w"], axis=(2, 3)).transpose(1, 0, 2, 3)

    wc1 = _conv3x3_to_dense(params["conv1_w"], 128, 512)      # K=128
    wc2 = _conv3x3_to_dense(params["conv2_w"], 512, 896)      # K=512
    wt1 = _conv3x3_to_dense(wt1_eq, 896, 512)                 # K=896
    wt2 = _conv3x3_to_dense(wt2_eq, 512, 128)                 # K=512

    we1 = _pad2(params["fc_enc1_w"], 896, 128)                # K=896
    wms = jnp.zeros((128, 256), jnp.float32)
    wms = wms.at[:, :LATENT_DIM].set(params["fc_mu_w"].astype(jnp.float32))
    wms = wms.at[:, 128:128 + LATENT_DIM].set(params["fc_lv_w"].astype(jnp.float32))
    wd1 = _pad2(params["fc_dec1_w"], 128, 128)                # K=128 (rows 12: are 0)
    wd2 = _pad2(params["fc_dec2_w"], 128, 896)                # K=128

    # weight slabs grouped by contraction size K (bf16, zero padding waste)
    w_k128 = jnp.concatenate([wc1, wms, wd1, wd2], axis=1).astype(jnp.bfloat16)  # [128,1792]
    w_k512 = jnp.concatenate([wc2, wt2], axis=1).astype(jnp.bfloat16)            # [512,1024]
    w_k896 = jnp.concatenate([we1, wt1], axis=1).astype(jnp.bfloat16)            # [896, 640]

    # one bias slab, 8 rows x 896 lanes (exactly one (8,128)-tile set)
    bias = jnp.zeros((8, 896), jnp.float32)
    bias = bias.at[0, :16 * DD].set(jnp.repeat(params["conv1_b"], DD))
    bias = bias.at[1, :32 * DD].set(jnp.repeat(params["conv2_b"], DD))
    bias = bias.at[2, :HIDDEN_DIM].set(params["fc_enc1_b"])
    bias = bias.at[3, :LATENT_DIM].set(params["fc_mu_b"])
    bias = bias.at[3, 128:128 + LATENT_DIM].set(params["fc_lv_b"])
    bias = bias.at[4, :HIDDEN_DIM].set(params["fc_dec1_b"])
    bias = bias.at[5, :32 * DD].set(params["fc_dec2_b"])
    bias = bias.at[6, :16 * DD].set(jnp.repeat(params["deconv1_b"], DD))
    bias = bias.at[7, :DD].set(jnp.repeat(params["deconv2_b"], DD))

    return {"w_k128": w_k128, "w_k512": w_k512, "w_k896": w_k896, "bias": bias}


# ----------------------------------------------------------------------------
# Parameter init (deterministic, synthetic)
# ----------------------------------------------------------------------------
def init_params(key):
    def uni(k, shape, fan_in):
        bound = 1.0 / jnp.sqrt(fan_in)
        return jax.random.uniform(k, shape, jnp.float32, -bound, bound)

    keys = jax.random.split(key, 18)
    d = INPUT_DIM
    p = {}
    p["conv1_w"] = uni(keys[0], (16, 1, 3, 3), 1 * 9)
    p["conv1_b"] = uni(keys[1], (16,), 1 * 9)
    p["conv2_w"] = uni(keys[2], (32, 16, 3, 3), 16 * 9)
    p["conv2_b"] = uni(keys[3], (32,), 16 * 9)
    p["fc_enc1_w"] = uni(keys[4], (32 * d * d, HIDDEN_DIM), 32 * d * d)
    p["fc_enc1_b"] = uni(keys[5], (HIDDEN_DIM,), 32 * d * d)
    p["fc_mu_w"] = uni(keys[6], (HIDDEN_DIM, LATENT_DIM), HIDDEN_DIM)
    p["fc_mu_b"] = uni(keys[7], (LATENT_DIM,), HIDDEN_DIM)
    p["fc_lv_w"] = uni(keys[8], (HIDDEN_DIM, LATENT_DIM), HIDDEN_DIM)
    p["fc_lv_b"] = uni(keys[9], (LATENT_DIM,), HIDDEN_DIM)
    p["fc_dec1_w"] = uni(keys[10], (LATENT_DIM, HIDDEN_DIM), LATENT_DIM)
    p["fc_dec1_b"] = uni(keys[11], (HIDDEN_DIM,), LATENT_DIM)
    p["fc_dec2_w"] = uni(keys[12], (HIDDEN_DIM, 32 * d * d), HIDDEN_DIM)
    p["fc_dec2_b"] = uni(keys[13], (32 * d * d,), HIDDEN_DIM)
    p["deconv1_w"] = uni(keys[14], (32, 16, 3, 3), 32 * 9)   # ConvTranspose2d layout
    p["deconv1_b"] = uni(keys[15], (16,), 32 * 9)
    p["deconv2_w"] = uni(keys[16], (16, 1, 3, 3), 16 * 9)
    p["deconv2_b"] = uni(keys[17], (1,), 16 * 9)
    return p


# ----------------------------------------------------------------------------
# Independent pure-JAX reference (direct lax.conv path) for correctness check
# ----------------------------------------------------------------------------
def _ref_linear(x, w, b, relu):
    y = jnp.dot(x, w) + b
    return jnp.maximum(y, 0.0) if relu else y


def _ref_conv(x_nchw, w_oihw, b, relu):
    y = jax.lax.conv_general_dilated(
        x_nchw, w_oihw, window_strides=(1, 1), padding="SAME",
        dimension_numbers=("NCHW", "OIHW", "NCHW"))
    y = y + b[None, :, None, None]
    return jnp.maximum(y, 0.0) if relu else y


def vae_forward_ref(params, x, eps):
    d = INPUT_DIM
    x = x.reshape(-1, 1, d, d).astype(jnp.float32)
    b = x.shape[0]
    h = _ref_conv(x, params["conv1_w"], params["conv1_b"], True)
    h = _ref_conv(h, params["conv2_w"], params["conv2_b"], True)
    h = h.reshape(b, 32 * d * d)
    h = _ref_linear(h, params["fc_enc1_w"], params["fc_enc1_b"], True)
    mean = _ref_linear(h, params["fc_mu_w"], params["fc_mu_b"], False)
    log_var = _ref_linear(h, params["fc_lv_w"], params["fc_lv_b"], False)
    z = mean + jnp.exp(0.5 * log_var) * eps
    g = _ref_linear(z, params["fc_dec1_w"], params["fc_dec1_b"], True)
    g = _ref_linear(g, params["fc_dec2_w"], params["fc_dec2_b"], True)
    g = g.reshape(b, 32, d, d)
    w1 = jnp.flip(params["deconv1_w"], axis=(2, 3)).transpose(1, 0, 2, 3)
    g = _ref_conv(g, w1, params["deconv1_b"], True)
    w2 = jnp.flip(params["deconv2_w"], axis=(2, 3)).transpose(1, 0, 2, 3)
    g = _ref_conv(g, w2, params["deconv2_b"], False)
    return g.reshape(b, d, d), z, mean, log_var


if __name__ == "__main__":
    key = jax.random.PRNGKey(0)
    k_param, k_x, k_eps = jax.random.split(key, 3)

    batch = 2
    params = init_params(k_param)
    prep = prepare_params(params)            # one-time weight layout prep
    x = jax.random.normal(k_x, (batch, INPUT_DIM, INPUT_DIM), jnp.float32)
    eps = jax.random.normal(k_eps, (batch, LATENT_DIM), jnp.float32)

    fwd = jax.jit(vae_forward)
    x_rec, z, mean, log_var = fwd(prep, x, eps)
    jax.block_until_ready((x_rec, z, mean, log_var))

    # Correctness check against an independent f32 lax.conv-based reference.
    # Tolerance 1e-2 covers the bf16 weight storage + MXU default-precision
    # (bf16 pass) differences across the 9-matmul chain; layout/semantic bugs
    # would show up as O(0.1+) errors.
    r_rec, r_z, r_mean, r_lv = vae_forward_ref(params, x, eps)
    assert x_rec.shape == (batch, INPUT_DIM, INPUT_DIM)
    assert z.shape == (batch, LATENT_DIM)
    tol = dict(atol=1e-2, rtol=1e-2)
    assert jnp.allclose(mean, r_mean, **tol)
    assert jnp.allclose(log_var, r_lv, **tol)
    assert jnp.allclose(z, r_z, **tol)
    assert jnp.allclose(x_rec, r_rec, **tol)

    print("KERNEL_OK")
</pallas_src>

<mosaic_0001>
module attributes {stable_mosaic.version = 11 : i64} {
  func.func @_vae_fused_kernel(%arg0: memref<2x256xf32, #tpu.memory_space<vmem>>, %arg1: memref<128x1792xbf16, #tpu.memory_space<vmem>>, %arg2: memref<512x1024xbf16, #tpu.memory_space<vmem>>, %arg3: memref<896x640xbf16, #tpu.memory_space<vmem>>, %arg4: memref<8x896xf32, #tpu.memory_space<vmem>>, %arg5: memref<2x512xf32, #tpu.memory_space<vmem>>) attributes {dimension_semantics = [], scalar_prefetch = 0 : i64, scratch_operands = 0 : i64, tpu.core_type = #tpu.core_type<tc>} {
    %c0 = arith.constant 0 : index
    %c0_0 = arith.constant 0 : index
    %0 = vector.load %arg0[%c0, %c0_0] : memref<2x256xf32, #tpu.memory_space<vmem>>, vector<2x128xf32>
    %c0_1 = arith.constant 0 : index
    %c128 = arith.constant 128 : index
    %1 = vector.load %arg0[%c0_1, %c128] : memref<2x256xf32, #tpu.memory_space<vmem>>, vector<2x128xf32>
    %c0_2 = arith.constant 0 : index
    %c0_3 = arith.constant 0 : index
    %2 = vector.load %arg1[%c0_2, %c0_3] : memref<128x1792xbf16, #tpu.memory_space<vmem>>, vector<128x512xbf16>
    %3 = arith.truncf %0 : vector<2x128xf32> to vector<2x128xbf16>
    %cst = arith.constant dense<0.000000e+00> : vector<2x512xf32>
    %4 = tpu.matmul %3, %2, %cst {dimension_numbers = #tpu.dot_dimension_numbers<[1], [0], [0], [1], [0, 0, 1, 1], [], []>} : vector<2x128xbf16>, vector<128x512xbf16>, vector<2x512xf32> -> vector<2x512xf32>
    %c0_4 = arith.constant 0 : index
    %c0_5 = arith.constant 0 : index
    %5 = vector.load %arg4[%c0_4, %c0_5] : memref<8x896xf32, #tpu.memory_space<vmem>>, vector<1x512xf32>
    %6 = vector.broadcast %5 : vector<1x512xf32> to vector<2x512xf32>
    %7 = arith.addf %4, %6 : vector<2x512xf32>
    %cst_6 = arith.constant 0.000000e+00 : f32
    %8 = vector.broadcast %cst_6 : f32 to vector<2x512xf32>
    %9 = arith.maximumf %7, %8 : vector<2x512xf32>
    %c0_7 = arith.constant 0 : index
    %c0_8 = arith.constant 0 : index
    %10 = vector.load %arg2[%c0_7, %c0_8] : memref<512x1024xbf16, #tpu.memory_space<vmem>>, vector<512x896xbf16>
    %11 = arith.truncf %9 : vector<2x512xf32> to vector<2x512xbf16>
    %cst_9 = arith.constant dense<0.000000e+00> : vector<2x896xf32>
    %12 = tpu.matmul %11, %10, %cst_9 {dimension_numbers = #tpu.dot_dimension_numbers<[1], [0], [0], [1], [0, 0, 1, 1], [], []>} : vector<2x512xbf16>, vector<512x896xbf16>, vector<2x896xf32> -> vector<2x896xf32>
    %c1 = arith.constant 1 : index
    %c0_10 = arith.constant 0 : index
    %13 = vector.load %arg4[%c1, %c0_10] : memref<8x896xf32, #tpu.memory_space<vmem>>, vector<1x896xf32>
    %14 = vector.broadcast %13 : vector<1x896xf32> to vector<2x896xf32>
    %15 = arith.addf %12, %14 : vector<2x896xf32>
    %cst_11 = arith.constant 0.000000e+00 : f32
    %16 = vector.broadcast %cst_11 : f32 to vector<2x896xf32>
    %17 = arith.maximumf %15, %16 : vector<2x896xf32>
    %c0_12 = arith.constant 0 : index
    %c0_13 = arith.constant 0 : index
    %18 = vector.load %arg3[%c0_12, %c0_13] : memref<896x640xbf16, #tpu.memory_space<vmem>>, vector<896x128xbf16>
    %19 = arith.truncf %17 : vector<2x896xf32> to vector<2x896xbf16>
    %cst_14 = arith.constant dense<0.000000e+00> : vector<2x128xf32>
    %20 = tpu.matmul %19, %18, %cst_14 {dimension_numbers = #tpu.dot_dimension_numbers<[1], [0], [0], [1], [0, 0, 1, 1], [], []>} : vector<2x896xbf16>, vector<896x128xbf16>, vector<2x128xf32> -> vector<2x128xf32>
    %c2 = arith.constant 2 : index
    %c0_15 = arith.constant 0 : index
    %21 = vector.load %arg4[%c2, %c0_15] : memref<8x896xf32, #tpu.memory_space<vmem>>, vector<1x128xf32>
    %22 = vector.broadcast %21 : vector<1x128xf32> to vector<2x128xf32>
    %23 = arith.addf %20, %22 : vector<2x128xf32>
    %cst_16 = arith.constant 0.000000e+00 : f32
    %24 = vector.broadcast %cst_16 : f32 to vector<2x128xf32>
    %25 = arith.maximumf %23, %24 : vector<2x128xf32>
    %c0_17 = arith.constant 0 : index
    %c512 = arith.constant 512 : index
    %26 = vector.load %arg1[%c0_17, %c512] : memref<128x1792xbf16, #tpu.memory_space<vmem>>, vector<128x256xbf16>
    %27 = arith.truncf %25 : vector<2x128xf32> to vector<2x128xbf16>
    %cst_18 = arith.constant dense<0.000000e+00> : vector<2x256xf32>
    %28 = tpu.matmul %27, %26, %cst_18 {dimension_numbers = #tpu.dot_dimension_numbers<[1], [0], [0], [1], [0, 0, 1, 1], [], []>} : vector<2x128xbf16>, vector<128x256xbf16>, vector<2x256xf32> -> vector<2x256xf32>
    %c3 = arith.constant 3 : index
    %c0_19 = arith.constant 0 : index
    %29 = vector.load %arg4[%c3, %c0_19] : memref<8x896xf32, #tpu.memory_space<vmem>>, vector<1x256xf32>
    %30 = vector.broadcast %29 : vector<1x256xf32> to vector<2x256xf32>
    %31 = arith.addf %28, %30 : vector<2x256xf32>
    %32 = vector.extract_strided_slice %31 {offsets = [0, 0], sizes = [2, 128], strides = [1, 1]} : vector<2x256xf32> to vector<2x128xf32>
    %33 = vector.extract_strided_slice %31 {offsets = [0, 128], sizes = [2, 128], strides = [1, 1]} : vector<2x256xf32> to vector<2x128xf32>
    %cst_20 = arith.constant 5.000000e-01 : f32
    %34 = vector.broadcast %cst_20 : f32 to vector<2x128xf32>
    %35 = arith.mulf %34, %33 : vector<2x128xf32>
    %36 = math.exp %35 : vector<2x128xf32>
    %37 = arith.mulf %36, %1 : vector<2x128xf32>
    %38 = arith.addf %32, %37 : vector<2x128xf32>
    %c0_21 = arith.constant 0 : index
    %c768 = arith.constant 768 : index
    %39 = vector.load %arg1[%c0_21, %c768] : memref<128x1792xbf16, #tpu.memory_space<vmem>>, vector<128x128xbf16>
    %40 = arith.truncf %38 : vector<2x128xf32> to vector<2x128xbf16>
    %cst_22 = arith.constant dense<0.000000e+00> : vector<2x128xf32>
    %41 = tpu.matmul %40, %39, %cst_22 {dimension_numbers = #tpu.dot_dimension_numbers<[1], [0], [0], [1], [0, 0, 1, 1], [], []>} : vector<2x128xbf16>, vector<128x128xbf16>, vector<2x128xf32> -> vector<2x128xf32>
    %c4 = arith.constant 4 : index
    %c0_23 = arith.constant 0 : index
    %42 = vector.load %arg4[%c4, %c0_23] : memref<8x896xf32, #tpu.memory_space<vmem>>, vector<1x128xf32>
    %43 = vector.broadcast %42 : vector<1x128xf32> to vector<2x128xf32>
    %44 = arith.addf %41, %43 : vector<2x128xf32>
    %cst_24 = arith.constant 0.000000e+00 : f32
    %45 = vector.broadcast %cst_24 : f32 to vector<2x128xf32>
    %46 = arith.maximumf %44, %45 : vector<2x128xf32>
    %c0_25 = arith.constant 0 : index
    %c896 = arith.constant 896 : index
    %47 = vector.load %arg1[%c0_25, %c896] : memref<128x1792xbf16, #tpu.memory_space<vmem>>, vector<128x896xbf16>
    %48 = arith.truncf %46 : vector<2x128xf32> to vector<2x128xbf16>
    %cst_26 = arith.constant dense<0.000000e+00> : vector<2x896xf32>
    %49 = tpu.matmul %48, %47, %cst_26 {dimension_numbers = #tpu.dot_dimension_numbers<[1], [0], [0], [1], [0, 0, 1, 1], [], []>} : vector<2x128xbf16>, vector<128x896xbf16>, vector<2x896xf32> -> vector<2x896xf32>
    %c5 = arith.constant 5 : index
    %c0_27 = arith.constant 0 : index
    %50 = vector.load %arg4[%c5, %c0_27] : memref<8x896xf32, #tpu.memory_space<vmem>>, vector<1x896xf32>
    %51 = vector.broadcast %50 : vector<1x896xf32> to vector<2x896xf32>
    %52 = arith.addf %49, %51 : vector<2x896xf32>
    %cst_28 = arith.constant 0.000000e+00 : f32
    %53 = vector.broadcast %cst_28 : f32 to vector<2x896xf32>
    %54 = arith.maximumf %52, %53 : vector<2x896xf32>
    %c0_29 = arith.constant 0 : index
    %c128_30 = arith.constant 128 : index
    %55 = vector.load %arg3[%c0_29, %c128_30] : memref<896x640xbf16, #tpu.memory_space<vmem>>, vector<896x512xbf16>
    %56 = arith.truncf %54 : vector<2x896xf32> to vector<2x896xbf16>
    %cst_31 = arith.constant dense<0.000000e+00> : vector<2x512xf32>
    %57 = tpu.matmul %56, %55, %cst_31 {dimension_numbers = #tpu.dot_dimension_numbers<[1], [0], [0], [1], [0, 0, 1, 1], [], []>} : vector<2x896xbf16>, vector<896x512xbf16>, vector<2x512xf32> -> vector<2x512xf32>
    %c6 = arith.constant 6 : index
    %c0_32 = arith.constant 0 : index
    %58 = vector.load %arg4[%c6, %c0_32] : memref<8x896xf32, #tpu.memory_space<vmem>>, vector<1x512xf32>
    %59 = vector.broadcast %58 : vector<1x512xf32> to vector<2x512xf32>
    %60 = arith.addf %57, %59 : vector<2x512xf32>
    %cst_33 = arith.constant 0.000000e+00 : f32
    %61 = vector.broadcast %cst_33 : f32 to vector<2x512xf32>
    %62 = arith.maximumf %60, %61 : vector<2x512xf32>
    %c0_34 = arith.constant 0 : index
    %c896_35 = arith.constant 896 : index
    %63 = vector.load %arg2[%c0_34, %c896_35] : memref<512x1024xbf16, #tpu.memory_space<vmem>>, vector<512x128xbf16>
    %64 = arith.truncf %62 : vector<2x512xf32> to vector<2x512xbf16>
    %cst_36 = arith.constant dense<0.000000e+00> : vector<2x128xf32>
    %65 = tpu.matmul %64, %63, %cst_36 {dimension_numbers = #tpu.dot_dimension_numbers<[1], [0], [0], [1], [0, 0, 1, 1], [], []>} : vector<2x512xbf16>, vector<512x128xbf16>, vector<2x128xf32> -> vector<2x128xf32>
    %c7 = arith.constant 7 : index
    %c0_37 = arith.constant 0 : index
    %66 = vector.load %arg4[%c7, %c0_37] : memref<8x896xf32, #tpu.memory_space<vmem>>, vector<1x128xf32>
    %67 = vector.broadcast %66 : vector<1x128xf32> to vector<2x128xf32>
    %68 = arith.addf %65, %67 : vector<2x128xf32>
    %c0_38 = arith.constant 0 : index
    %c0_39 = arith.constant 0 : index
    %69 = vector.load %arg5[%c0_38, %c0_39] : memref<2x512xf32, #tpu.memory_space<vmem>>, vector<2x128xf32>
    tpu.vector_store %arg5[%c0_38, %c0_39], %68 {strides = array<i32>} : memref<2x512xf32, #tpu.memory_space<vmem>>, vector<2x128xf32>,
    %c0_40 = arith.constant 0 : index
    %c128_41 = arith.constant 128 : index
    %70 = vector.load %arg5[%c0_40, %c128_41] : memref<2x512xf32, #tpu.memory_space<vmem>>, vector<2x128xf32>
    tpu.vector_store %arg5[%c0_40, %c128_41], %32 {strides = array<i32>} : memref<2x512xf32, #tpu.memory_space<vmem>>, vector<2x128xf32>,
    %c0_42 = arith.constant 0 : index
    %c256 = arith.constant 256 : index
    %71 = vector.load %arg5[%c0_42, %c256] : memref<2x512xf32, #tpu.memory_space<vmem>>, vector<2x128xf32>
    tpu.vector_store %arg5[%c0_42, %c256], %33 {strides = array<i32>} : memref<2x512xf32, #tpu.memory_space<vmem>>, vector<2x128xf32>,
    %c0_43 = arith.constant 0 : index
    %c384 = arith.constant 384 : index
    %72 = vector.load %arg5[%c0_43, %c384] : memref<2x512xf32, #tpu.memory_space<vmem>>, vector<2x128xf32>
    tpu.vector_store %arg5[%c0_43, %c384], %38 {strides = array<i32>} : memref<2x512xf32, #tpu.memory_space<vmem>>, vector<2x128xf32>,
    return
  }
}

</mosaic_0001>

<llo_original>
// kernel: vae_forward.1
$region0: #{vae_forward.1}
  #allocation0 [shape = 'u32[]', space=smem, size = 0x4, offset = 0x4, fixed_abs, tag = 'smem constant byte address 0x4 - core index']
  #allocation1 [shape = 'u32[72,128]{1,0:T(1,128)}', space=vmem, size = 0x9000, scoped, tag = 'internal scratch']
  %s0 = inlined_call_operand.vmem [shape: f32[2,256], index: 0, kind: input, shape index: {}]
  %s1 = inlined_call_operand.hbm [shape: bf16[128,1792], index: 1, kind: input, shape index: {}]
  %s2 = inlined_call_operand.hbm [shape: bf16[512,1024], index: 2, kind: input, shape index: {}]
  %s3 = inlined_call_operand.hbm [shape: bf16[896,640], index: 3, kind: input, shape index: {}]
  %s4 = inlined_call_operand.hbm [shape: f32[8,896], index: 4, kind: input, shape index: {}]
  %s5 = inlined_call_operand.vmem [shape: f32[2,512], index: 5, kind: output, shape index: {}]
  %s6 = sld [smem:[#allocation0]]
  $region46: #{vae_forward.1} parent=0
    _
  %s8 = ssub.s32 1, %s6
  %s9 = scalar_select 0, %s8, %s6
  $region1: #{vae_forward.1} parent=0
    #allocation2 [shape = 'u8[458752]{0}', space=vmem, size = 0x70000, scoped, tag = 'input window, operand 1, single buffered']
    #allocation3 [shape = 's32[1]{0}', space=sflag, size = 0x4, scoped, tag = 'scoped memory for vae_forward.1']
    #allocation4 [shape = 'u8[1048576]{0}', space=vmem, size = 0x100000, scoped, tag = 'input window, operand 2, single buffered']
    #allocation5 [shape = 's32[1]{0}', space=sflag, size = 0x4, scoped, tag = 'scoped memory for vae_forward.1']
    #allocation6 [shape = 'u8[1146880]{0}', space=vmem, size = 0x118000, scoped, tag = 'input window, operand 3, single buffered']
    #allocation7 [shape = 'u8[28672]{0}', space=vmem, size = 0x7000, scoped, tag = 'input window, operand 4, single buffered']
    #allocation8 [shape = 's32[1]{0}', space=sflag, size = 0x4, scoped, tag = 'scoped memory for vae_forward.1']
    %10 = vsyncpa [#allocation3], 0
    %11 = vsyncpa [#allocation5], 0
    %12 = vsyncpa [#allocation8], 0
    // Predicated region
    $region2: #{vae_forward.1} parent=1 // pred_check
      _
    $region3: #{vae_forward.1} parent=1 // pred_check_branch
      %14 = sbr.rel (0) target = $region5
    $region4: #{vae_forward.1} parent=1 // pred_region
      _
    $region5: #{vae_forward.1} parent=1 // pred_fallthru
      _
    // Predicated region
    $region6: #{vae_forward.1} parent=1 // pred_check
      _
    $region7: #{vae_forward.1} parent=1 // pred_check_branch
      %16 = sbr.rel (0) target = $region9
    $region8: #{vae_forward.1} parent=1 // pred_region
      %18 = vsyncadd [#allocation3], 0
      %s19 = sshll.u32 %s1, 4
      %s20 = int_to_ptr.hbm [resolvable:$true] %s19
      %s21 = sshll.u32 [#allocation2], 4
      %s22 = int_to_ptr.vmem [resolvable:$true] %s21
      %27 = dma.hbm_to_vmem [thread:$0]  %s20, 14336, %s22, [#allocation3], 896, 896, 56
    $region9: #{vae_forward.1} parent=1 // pred_fallthru
      _
    // Predicated region
    $region10: #{vae_forward.1} parent=1 // pred_check
      _
    $region11: #{vae_forward.1} parent=1 // pred_check_branch
      %29 = sbr.rel (0) target = $region13
    $region12: #{vae_forward.1} parent=1 // pred_region
      %31 = vsyncadd [#allocation5], 0
      %s32 = sshll.u32 %s2, 4
      %s33 = int_to_ptr.hbm [resolvable:$true] %s32
      %s34 = sshll.u32 [#allocation4], 4
      %s35 = int_to_ptr.vmem [resolvable:$true] %s34
      %40 = dma.hbm_to_vmem [thread:$0]  %s33, 32768, %s35, [#allocation5], 512, 512, 32
    $region13: #{vae_forward.1} parent=1 // pred_fallthru
      _
    // Predicated region
    $region14: #{vae_forward.1} parent=1 // pred_check
      _
    $region15: #{vae_forward.1} parent=1 // pred_check_branch
      %42 = sbr.rel (0) target = $region17
    $region16: #{vae_forward.1} parent=1 // pred_region
      %44 = vsyncadd [#allocation5], 0
      %s45 = sshll.u32 %s3, 4
      %s46 = int_to_ptr.hbm [resolvable:$true] %s45
      %s47 = sshll.u32 [#allocation6], 4
      %s48 = int_to_ptr.vmem [resolvable:$true] %s47
      %53 = dma.hbm_to_vmem [thread:$0]  %s46, 35840, %s48, [#allocation5], 320, 320, 20
    $region17: #{vae_forward.1} parent=1 // pred_fallthru
      _
    // Predicated region
    $region18: #{vae_forward.1} parent=1 // pred_check
      _
    $region19: #{vae_forward.1} parent=1 // pred_check_branch
      %55 = sbr.rel (0) target = $region21
    $region20: #{vae_forward.1} parent=1 // pred_region
      %57 = vsyncadd [#allocation8], 0
      %s59 = sshll.u32 %s4, 4
      %s60 = int_to_ptr.hbm [resolvable:$true] %s59
      %s61 = sshll.u32 [#allocation7], 4
      %s62 = int_to_ptr.vmem [resolvable:$true] %s61
      %64 = dma.hbm_to_vmem [thread:$0]  %s60, 896, %s62, [#allocation8]
    $region21: #{vae_forward.1} parent=1 // pred_fallthru
      _
    // Predicated region
    $region22: #{vae_forward.1} parent=1 // pred_check
      _
    $region23: #{vae_forward.1} parent=1 // pred_check_branch
      %66 = sbr.rel (0) target = $region25
    $region24: #{vae_forward.1} parent=1 // pred_region
      %68 = dma.done [#allocation3], 14336
    $region25: #{vae_forward.1} parent=1 // pred_fallthru
      _
    // Predicated region
    $region26: #{vae_forward.1} parent=1 // pred_check
      _
    $region27: #{vae_forward.1} parent=1 // pred_check_branch
      %70 = sbr.rel (0) target = $region29
    $region28: #{vae_forward.1} parent=1 // pred_region
      %72 = dma.done [#allocation5], 32768
    $region29: #{vae_forward.1} parent=1 // pred_fallthru
      _
    // Predicated region
    $region30: #{vae_forward.1} parent=1 // pred_check
      _
    $region31: #{vae_forward.1} parent=1 // pred_check_branch
      %74 = sbr.rel (0) target = $region33
    $region32: #{vae_forward.1} parent=1 // pred_region
      %76 = dma.done [#allocation5], 35840
    $region33: #{vae_forward.1} parent=1 // pred_fallthru
      _
    // Predicated region
    $region34: #{vae_forward.1} parent=1 // pred_check
      _
    $region35: #{vae_forward.1} parent=1 // pred_check_branch
      %78 = sbr.rel (0) target = $region37
    $region36: #{vae_forward.1} parent=1 // pred_region
      %80 = dma.done [#allocation8], 896
    $region37: #{vae_forward.1} parent=1 // pred_fallthru
      _
    %v81 = vld [vmem:[%s0] sm:$0x3]
    %v82 = vld [vmem:[%s0 + $0x2] sm:$0x3]
    %v83 = vld [vmem:[#allocation2] sm:$0xff]
    %v84 = vld [vmem:[#allocation2 + $0x8] sm:$0xff]
    %v85 = vld [vmem:[#allocation2 + $0x38] sm:$0xff]
    %v86 = vld [vmem:[#allocation2 + $0x40] sm:$0xff]
    %v87 = vld [vmem:[#allocation2 + $0x70] sm:$0xff]
    %v88 = vld [vmem:[#allocation2 + $0x78] sm:$0xff]
    %v89 = vld [vmem:[#allocation2 + $0xa8] sm:$0xff]
    %v90 = vld [vmem:[#allocation2 + $0xb0] sm:$0xff]
    %v91 = vld [vmem:[#allocation2 + $0xe0] sm:$0xff]
    %v92 = vld [vmem:[#allocation2 + $0xe8] sm:$0xff]
    %v93 = vld [vmem:[#allocation2 + $0x118] sm:$0xff]
    %v94 = vld [vmem:[#allocation2 + $0x120] sm:$0xff]
    %v95 = vld [vmem:[#allocation2 + $0x150] sm:$0xff]
    %v96 = vld [vmem:[#allocation2 + $0x158] sm:$0xff]
    %v97 = vld [vmem:[#allocation2 + $0x188] sm:$0xff]
    %v98 = vld [vmem:[#allocation2 + $0x190] sm:$0xff]
    %v99 = vld [vmem:[#allocation2 + $0x1c0] sm:$0xff]
    %v100 = vld [vmem:[#allocation2 + $0x1c8] sm:$0xff]
    %v101 = vld [vmem:[#allocation2 + $0x1f8] sm:$0xff]
    %v102 = vld [vmem:[#allocation2 + $0x200] sm:$0xff]
    %v103 = vld [vmem:[#allocation2 + $0x230] sm:$0xff]
    %v104 = vld [vmem:[#allocation2 + $0x238] sm:$0xff]
    %v105 = vld [vmem:[#allocation2 + $0x268] sm:$0xff]
    %v106 = vld [vmem:[#allocation2 + $0x270] sm:$0xff]
    %v107 = vld [vmem:[#allocation2 + $0x2a0] sm:$0xff]
    %v108 = vld [vmem:[#allocation2 + $0x2a8] sm:$0xff]
    %v109 = vld [vmem:[#allocation2 + $0x2d8] sm:$0xff]
    %v110 = vld [vmem:[#allocation2 + $0x2e0] sm:$0xff]
    %v111 = vld [vmem:[#allocation2 + $0x310] sm:$0xff]
    %v112 = vld [vmem:[#allocation2 + $0x318] sm:$0xff]
    %v113 = vld [vmem:[#allocation2 + $0x348] sm:$0xff]
    %v114 = vld [vmem:[#allocation2 + $0x350] sm:$0xff]
    %v115 = vpack.c.bf16 %v81, %v81
    %v116 = vld [vmem:[#allocation7] ss:$8 sm:$0xf]
    %v118 = vperm.slane %v116, 0
    %v119 = vperm.slane %v116, 1
    %v120 = vperm.slane %v116, 2
    %v121 = vperm.slane %v116, 3
    %v158 = vunpack.c.l.b16 %v83
    %v159 = vunpack.c.h.b16 %v83
    %v160 = vunpack.c.l.b16 %v84
    %v161 = vunpack.c.h.b16 %v84
    %v162 = vunpack.c.l.b16 %v85
    %v163 = vunpack.c.h.b16 %v85
    %v164 = vunpack.c.l.b16 %v86
    %v165 = vunpack.c.h.b16 %v86
    %v166 = vunpack.c.l.b16 %v87
    %v167 = vunpack.c.h.b16 %v87
    %v168 = vunpack.c.l.b16 %v88
    %v169 = vunpack.c.h.b16 %v88
    %v170 = vunpack.c.l.b16 %v89
    %v171 = vunpack.c.h.b16 %v89
    %v172 = vunpack.c.l.b16 %v90
    %v173 = vunpack.c.h.b16 %v90
    %v174 = vunpack.c.l.b16 %v91
    %v175 = vunpack.c.h.b16 %v91
    %v176 = vunpack.c.l.b16 %v92
    %v177 = vunpack.c.h.b16 %v92
    %v178 = vunpack.c.l.b16 %v93
    %v179 = vunpack.c.h.b16 %v93
    %v180 = vunpack.c.l.b16 %v94
    %v181 = vunpack.c.h.b16 %v94
    %v182 = vunpack.c.l.b16 %v95
    %v183 = vunpack.c.h.b16 %v95
    %v184 = vunpack.c.l.b16 %v96
    %v185 = vunpack.c.h.b16 %v96
    %v186 = vunpack.c.l.b16 %v97
    %v187 = vunpack.c.h.b16 %v97
    %v188 = vunpack.c.l.b16 %v98
    %v189 = vunpack.c.h.b16 %v98
    %v190 = vunpack.c.l.b16 %v99
    %v191 = vunpack.c.h.b16 %v99
    %v192 = vunpack.c.l.b16 %v100
    %v193 = vunpack.c.h.b16 %v100
    %v194 = vunpack.c.l.b16 %v101
    %v195 = vunpack.c.h.b16 %v101
    %v196 = vunpack.c.l.b16 %v102
    %v197 = vunpack.c.h.b16 %v102
    %v198 = vunpack.c.l.b16 %v103
    %v199 = vunpack.c.h.b16 %v103
    %v200 = vunpack.c.l.b16 %v104
    %v201 = vunpack.c.h.b16 %v104
    %v202 = vunpack.c.l.b16 %v105
    %v203 = vunpack.c.h.b16 %v105
    %v204 = vunpack.c.l.b16 %v106
    %v205 = vunpack.c.h.b16 %v106
    %v206 = vunpack.c.l.b16 %v107
    %v207 = vunpack.c.h.b16 %v107
    %v208 = vunpack.c.l.b16 %v108
    %v209 = vunpack.c.h.b16 %v108
    %v210 = vunpack.c.l.b16 %v109
    %v211 = vunpack.c.h.b16 %v109
    %v212 = vunpack.c.l.b16 %v110
    %v213 = vunpack.c.h.b16 %v110
    %v214 = vunpack.c.l.b16 %v111
    %v215 = vunpack.c.h.b16 %v111
    %v216 = vunpack.c.l.b16 %v112
    %v217 = vunpack.c.h.b16 %v112
    %v218 = vunpack.c.l.b16 %v113
    %v219 = vunpack.c.h.b16 %v113
    %v220 = vunpack.c.l.b16 %v114
    %v221 = vunpack.c.h.b16 %v114
    %v222 = vpack.c.b16 %v162, %v158
    %v223 = vpack.c.b16 %v163, %v159
    %v224 = vpack.c.b16 %v164, %v160
    %v225 = vpack.c.b16 %v165, %v161
    %v226 = vpack.c.b16 %v170, %v166
    %v227 = vpack.c.b16 %v171, %v167
    %v228 = vpack.c.b16 %v172, %v168
    %v229 = vpack.c.b16 %v173, %v169
    %v230 = vpack.c.b16 %v178, %v174
    %v231 = vpack.c.b16 %v179, %v175
    %v232 = vpack.c.b16 %v180, %v176
    %v233 = vpack.c.b16 %v181, %v177
    %v234 = vpack.c.b16 %v186, %v182
    %v235 = vpack.c.b16 %v187, %v183
    %v236 = vpack.c.b16 %v188, %v184
    %v237 = vpack.c.b16 %v189, %v185
    %v238 = vpack.c.b16 %v194, %v190
    %v239 = vpack.c.b16 %v195, %v191
    %v240 = vpack.c.b16 %v196, %v192
    %v241 = vpack.c.b16 %v197, %v193
    %v242 = vpack.c.b16 %v202, %v198
    %v243 = vpack.c.b16 %v203, %v199
    %v244 = vpack.c.b16 %v204, %v200
    %v245 = vpack.c.b16 %v205, %v201
    %v246 = vpack.c.b16 %v210, %v206
    %v247 = vpack.c.b16 %v211, %v207
    %v248 = vpack.c.b16 %v212, %v208
    %v249 = vpack.c.b16 %v213, %v209
    %v250 = vpack.c.b16 %v218, %v214
    %v251 = vpack.c.b16 %v219, %v215
    %v252 = vpack.c.b16 %v220, %v216
    %v253 = vpack.c.b16 %v221, %v217
    %286 = vmatpush.bf16.msra.mxu0 %v250
    %287 = vmatpush.bf16.msra.mxu0 %v246
    %288 = vmatpush.bf16.msra.mxu0 %v242
    %289 = vmatpush.bf16.msra.mxu0 %v238
    %290 = vmatpush.bf16.msra.mxu0 %v234
    %291 = vmatpush.bf16.msra.mxu0 %v230
    %292 = vmatpush.bf16.msra.mxu0 %v226
    %293 = vmatpush.bf16.msra.mxu0 %v222
    %294 = vmatmul.bf16.gmra.mxu0 %v115
    %v295 = vpop.f32.mrf.mxu0
    %v296 = vadd.f32 %v118, %v295
    %v297 = vpop.f32.mrf.mxu0
    %298 = vdwg.mxu0
    %299 = vmatpush.bf16.msra.mxu0 %v251
    %300 = vmatpush.bf16.msra.mxu0 %v247
    %301 = vmatpush.bf16.msra.mxu0 %v243
    %302 = vmatpush.bf16.msra.mxu0 %v239
    %303 = vmatpush.bf16.msra.mxu0 %v235
    %304 = vmatpush.bf16.msra.mxu0 %v231
    %305 = vmatpush.bf16.msra.mxu0 %v227
    %306 = vmatpush.bf16.msra.mxu0 %v223
    %307 = vmatmul.bf16.gmra.mxu0 %v115
    %v308 = vpop.f32.mrf.mxu0
    %v309 = vadd.f32 %v119, %v308
    %v310 = vpop.f32.mrf.mxu0
    %311 = vdwg.mxu0
    %312 = vmatpush.bf16.msra.mxu0 %v252
    %313 = vmatpush.bf16.msra.mxu0 %v248
    %314 = vmatpush.bf16.msra.mxu0 %v244
    %315 = vmatpush.bf16.msra.mxu0 %v240
    %316 = vmatpush.bf16.msra.mxu0 %v236
    %317 = vmatpush.bf16.msra.mxu0 %v232
    %318 = vmatpush.bf16.msra.mxu0 %v228
    %319 = vmatpush.bf16.msra.mxu0 %v224
    %320 = vmatmul.bf16.gmra.mxu0 %v115
    %v321 = vpop.f32.mrf.mxu0
    %v322 = vadd.f32 %v120, %v321
    %v323 = vpop.f32.mrf.mxu0
    %324 = vdwg.mxu0
    %325 = vmatpush.bf16.msra.mxu0 %v253
    %326 = vmatpush.bf16.msra.mxu0 %v249
    %327 = vmatpush.bf16.msra.mxu0 %v245
    %328 = vmatpush.bf16.msra.mxu0 %v241
    %329 = vmatpush.bf16.msra.mxu0 %v237
    %330 = vmatpush.bf16.msra.mxu0 %v233
    %331 = vmatpush.bf16.msra.mxu0 %v229
    %332 = vmatpush.bf16.msra.mxu0 %v225
    %333 = vmatmul.bf16.gmra.mxu0 %v115
    %v334 = vpop.f32.mrf.mxu0
    %v335 = vadd.f32 %v121, %v334
    %v336 = vpop.f32.mrf.mxu0
    %337 = vdwg.mxu0
    %v338 = vmax.f32 %v296, 0.0
    %v339 = vmax.f32 %v309, 0.0
    %v340 = vmax.f32 %v322, 0.0
    %v341 = vmax.f32 %v335, 0.0
    %v342 = vld [vmem:[#allocation4] sm:$0xff]
    %v343 = vld [vmem:[#allocation4 + $0x8] sm:$0xff]
    %v344 = vld [vmem:[#allocation4 + $0x10] sm:$0xff]
    %v345 = vld [vmem:[#allocation4 + $0x18] sm:$0xf]
    %v346 = vld [vmem:[#allocation4 + $0x20] sm:$0xff]
    %v347 = vld [vmem:[#allocation4 + $0x28] sm:$0xff]
    %v348 = vld [vmem:[#allocation4 + $0x30] sm:$0xff]
    %v349 = vld [vmem:[#allocation4 + $0x38] sm:$0xf]
    %v350 = vld [vmem:[#allocation4 + $0x40] sm:$0xff]
    %v351 = vld [vmem:[#allocation4 + $0x48] sm:$0xff]
    %v352 = vld [vmem:[#allocation4 + $0x50] sm:$0xff]
    %v353 = vld [vmem:[#allocation4 + $0x58] sm:$0xf]
    %v354 = vld [vmem:[#allocation4 + $0x60] sm:$0xff]
    %v355 = vld [vmem:[#allocation4 + $0x68] sm:$0xff]
    %v356 = vld [vmem:[#allocation4 + $0x70] sm:$0xff]
    %v357 = vld [vmem:[#allocation4 + $0x78] sm:$0xf]
    %v358 = vld [vmem:[#allocation4 + $0x80] sm:$0xff]
    %v359 = vld [vmem:[#allocation4 + $0x88] sm:$0xff]
    %v360 = vld [vmem:[#allocation4 + $0x90] sm:$0xff]
    %v361 = vld [vmem:[#allocation4 + $0x98] sm:$0xf]
    %v362 = vld [vmem:[#allocation4 + $0xa0] sm:$0xff]
    %v363 = vld [vmem:[#allocation4 + $0xa8] sm:$0xff]
    %v364 = vld [vmem:[#allocation4 + $0xb0] sm:$0xff]
    %v365 = vld [vmem:[#allocation4 + $0xb8] sm:$0xf]
    %v366 = vld [vmem:[#allocation4 + $0xc0] sm:$0xff]
    %v367 = vld [vmem:[#allocation4 + $0xc8] sm:$0xff]
    %v368 = vld [vmem:[#allocation4 + $0xd0] sm:$0xff]
    %v369 = vld [vmem:[#allocation4 + $0xd8] sm:$0xf]
    %v370 = vld [vmem:[#allocation4 + $0xe0] sm:$0xff]
    %v371 = vld [vmem:[#allocation4 + $0xe8] sm:$0xff]
    %v372 = vld [vmem:[#allocation4 + $0xf0] sm:$0xff]
    %v373 = vld [vmem:[#allocation4 + $0xf8] sm:$0xf]
    %v374 = vld [vmem:[#allocation4 + $0x100] sm:$0xff]
    %v375 = vld [vmem:[#allocation4 + $0x108] sm:$0xff]
    %v376 = vld [vmem:[#allocation4 + $0x110] sm:$0xff]
    %v377 = vld [vmem:[#allocation4 + $0x118] sm:$0xf]
    %v378 = vld [vmem:[#allocation4 + $0x120] sm:$0xff]
    %v379 = vld [vmem:[#allocation4 + $0x128] sm:$0xff]
    %v380 = vld [vmem:[#allocation4 + $0x130] sm:$0xff]
    %v381 = vld [vmem:[#allocation4 + $0x138] sm:$0xf]
    %v382 = vld [vmem:[#allocation4 + $0x140] sm:$0xff]
    %v383 = vld [vmem:[#allocation4 + $0x148] sm:$0xff]
    %v384 = vld [vmem:[#allocation4 + $0x150] sm:$0xff]
    %v385 = vld [vmem:[#allocation4 + $0x158] sm:$0xf]
    %v386 = vld [vmem:[#allocation4 + $0x160] sm:$0xff]
    %v387 = vld [vmem:[#allocation4 + $0x168] sm:$0xff]
    %v388 = vld [vmem:[#allocation4 + $0x170] sm:$0xff]
    %v389 = vld [vmem:[#allocation4 + $0x178] sm:$0xf]
    %v390 = vld [vmem:[#allocation4 + $0x180] sm:$0xff]
    %v391 = vld [vmem:[#allocation4 + $0x188] sm:$0xff]
    %v392 = vld [vmem:[#allocation4 + $0x190] sm:$0xff]
    %v393 = vld [vmem:[#allocation4 + $0x198] sm:$0xf]
    %v394 = vld [vmem:[#allocation4 + $0x1a0] sm:$0xff]
    %v395 = vld [vmem:[#allocation4 + $0x1a8] sm:$0xff]
    %v396 = vld [vmem:[#allocation4 + $0x1b0] sm:$0xff]
    %v397 = vld [vmem:[#allocation4 + $0x1b8] sm:$0xf]
    %v398 = vld [vmem:[#allocation4 + $0x1c0] sm:$0xff]
    %v399 = vld [vmem:[#allocation4 + $0x1c8] sm:$0xff]
    %v400 = vld [vmem:[#allocation4 + $0x1d0] sm:$0xff]
    %v401 = vld [vmem:[#allocation4 + $0x1d8] sm:$0xf]
    %v402 = vld [vmem:[#allocation4 + $0x1e0] sm:$0xff]
    %v403 = vld [vmem:[#allocation4 + $0x1e8] sm:$0xff]
    %v404 = vld [vmem:[#allocation4 + $0x1f0] sm:$0xff]
    %v405 = vld [vmem:[#allocation4 + $0x1f8] sm:$0xf]
    %v406 = vld [vmem:[#allocation4 + $0x200] sm:$0xff]
    %v407 = vld [vmem:[#allocation4 + $0x208] sm:$0xff]
    %v408 = vld [vmem:[#allocation4 + $0x210] sm:$0xff]
    %v409 = vld [vmem:[#allocation4 + $0x218] sm:$0xf]
    %v410 = vld [vmem:[#allocation4 + $0x220] sm:$0xff]
    %v411 = vld [vmem:[#allocation4 + $0x228] sm:$0xff]
    %v412 = vld [vmem:[#allocation4 + $0x230] sm:$0xff]
    %v413 = vld [vmem:[#allocation4 + $0x238] sm:$0xf]
    %v414 = vld [vmem:[#allocation4 + $0x240] sm:$0xff]
    %v415 = vld [vmem:[#allocation4 + $0x248] sm:$0xff]
    %v416 = vld [vmem:[#allocation4 + $0x250] sm:$0xff]
    %v417 = vld [vmem:[#allocation4 + $0x258] sm:$0xf]
    %v418 = vld [vmem:[#allocation4 + $0x260] sm:$0xff]
    %v419 = vld [vmem:[#allocation4 + $0x268] sm:$0xff]
    %v420 = vld [vmem:[#allocation4 + $0x270] sm:$0xff]
    %v421 = vld [vmem:[#allocation4 + $0x278] sm:$0xf]
    %v422 = vld [vmem:[#allocation4 + $0x280] sm:$0xff]
    %v423 = vld [vmem:[#allocation4 + $0x288] sm:$0xff]
    %v424 = vld [vmem:[#allocation4 + $0x290] sm:$0xff]
    %v425 = vld [vmem:[#allocation4 + $0x298] sm:$0xf]
    %v426 = vld [vmem:[#allocation4 + $0x2a0] sm:$0xff]
    %v427 = vld [vmem:[#allocation4 + $0x2a8] sm:$0xff]
    %v428 = vld [vmem:[#allocation4 + $0x2b0] sm:$0xff]
    %v429 = vld [vmem:[#allocation4 + $0x2b8] sm:$0xf]
    %v430 = vld [vmem:[#allocation4 + $0x2c0] sm:$0xff]
    %v431 = vld [vmem:[#allocation4 + $0x2c8] sm:$0xff]
    %v432 = vld [vmem:[#allocation4 + $0x2d0] sm:$0xff]
    %v433 = vld [vmem:[#allocation4 + $0x2d8] sm:$0xf]
    %v434 = vld [vmem:[#allocation4 + $0x2e0] sm:$0xff]
    %v435 = vld [vmem:[#allocation4 + $0x2e8] sm:$0xff]
    %v436 = vld [vmem:[#allocation4 + $0x2f0] sm:$0xff]
    %v437 = vld [vmem:[#allocation4 + $0x2f8] sm:$0xf]
    %v438 = vld [vmem:[#allocation4 + $0x300] sm:$0xff]
    %v439 = vld [vmem:[#allocation4 + $0x308] sm:$0xff]
    %v440 = vld [vmem:[#allocation4 + $0x310] sm:$0xff]
    %v441 = vld [vmem:[#allocation4 + $0x318] sm:$0xf]
    %v442 = vld [vmem:[#allocation4 + $0x320] sm:$0xff]
    %v443 = vld [vmem:[#allocation4 + $0x328] sm:$0xff]
    %v444 = vld [vmem:[#allocation4 + $0x330] sm:$0xff]
    %v445 = vld [vmem:[#allocation4 + $0x338] sm:$0xf]
    %v446 = vld [vmem:[#allocation4 + $0x340] sm:$0xff]
    %v447 = vld [vmem:[#allocation4 + $0x348] sm:$0xff]
    %v448 = vld [vmem:[#allocation4 + $0x350] sm:$0xff]
    %v449 = vld [vmem:[#allocation4 + $0x358] sm:$0xf]
    %v450 = vld [vmem:[#allocation4 + $0x360] sm:$0xff]
    %v451 = vld [vmem:[#allocation4 + $0x368] sm:$0xff]
    %v452 = vld [vmem:[#allocation4 + $0x370] sm:$0xff]
    %v453 = vld [vmem:[#allocation4 + $0x378] sm:$0xf]
    %v454 = vld [vmem:[#allocation4 + $0x380] sm:$0xff]
    %v455 = vld [vmem:[#allocation4 + $0x388] sm:$0xff]
    %v456 = vld [vmem:[#allocation4 + $0x390] sm:$0xff]
    %v457 = vld [vmem:[#allocation4 + $0x398] sm:$0xf]
    %v458 = vld [vmem:[#allocation4 + $0x3a0] sm:$0xff]
    %v459 = vld [vmem:[#allocation4 + $0x3a8] sm:$0xff]
    %v460 = vld [vmem:[#allocation4 + $0x3b0] sm:$0xff]
    %v461 = vld [vmem:[#allocation4 + $0x3b8] sm:$0xf]
    %v462 = vld [vmem:[#allocation4 + $0x3c0] sm:$0xff]
    %v463 = vld [vmem:[#allocation4 + $0x3c8] sm:$0xff]
    %v464 = vld [vmem:[#allocation4 + $0x3d0] sm:$0xff]
    %v465 = vld [vmem:[#allocation4 + $0x3d8] sm:$0xf]
    %v466 = vld [vmem:[#allocation4 + $0x3e0] sm:$0xff]
    %v467 = vld [vmem:[#allocation4 + $0x3e8] sm:$0xff]
    %v468 = vld [vmem:[#allocation4 + $0x3f0] sm:$0xff]
    %v469 = vld [vmem:[#allocation4 + $0x3f8] sm:$0xf]
    %v470 = vld [vmem:[#allocation4 + $0x400] sm:$0xff]
    %v471 = vld [vmem:[#allocation4 + $0x408] sm:$0xff]
    %v472 = vld [vmem:[#allocation4 + $0x410] sm:$0xff]
    %v473 = vld [vmem:[#allocation4 + $0x418] sm:$0xf]
    %v474 = vld [vmem:[#allocation4 + $0x420] sm:$0xff]
    %v475 = vld [vmem:[#allocation4 + $0x428] sm:$0xff]
    %v476 = vld [vmem:[#allocation4 + $0x430] sm:$0xff]
    %v477 = vld [vmem:[#allocation4 + $0x438] sm:$0xf]
    %v478 = vld [vmem:[#allocation4 + $0x440] sm:$0xff]
    %v479 = vld [vmem:[#allocation4 + $0x448] sm:$0xff]
    %v480 = vld [vmem:[#allocation4 + $0x450] sm:$0xff]
    %v481 = vld [vmem:[#allocation4 + $0x458] sm:$0xf]
    %v482 = vld [vmem:[#allocation4 + $0x460] sm:$0xff]
    %v483 = vld [vmem:[#allocation4 + $0x468] sm:$0xff]
    %v484 = vld [vmem:[#allocation4 + $0x470] sm:$0xff]
    %v485 = vld [vmem:[#allocation4 + $0x478] sm:$0xf]
    %v486 = vld [vmem:[#allocation4 + $0x480] sm:$0xff]
    %v487 = vld [vmem:[#allocation4 + $0x488] sm:$0xff]
    %v488 = vld [vmem:[#allocation4 + $0x490] sm:$0xff]
    %v489 = vld [vmem:[#allocation4 + $0x498] sm:$0xf]
    %v490 = vld [vmem:[#allocation4 + $0x4a0] sm:$0xff]
    %v491 = vld [vmem:[#allocation4 + $0x4a8] sm:$0xff]
    %v492 = vld [vmem:[#allocation4 + $0x4b0] sm:$0xff]
    %v493 = vld [vmem:[#allocation4 + $0x4b8] sm:$0xf]
    %v494 = vld [vmem:[#allocation4 + $0x4c0] sm:$0xff]
    %v495 = vld [vmem:[#allocation4 + $0x4c8] sm:$0xff]
    %v496 = vld [vmem:[#allocation4 + $0x4d0] sm:$0xff]
    %v497 = vld [vmem:[#allocation4 + $0x4d8] sm:$0xf]
    %v498 = vld [vmem:[#allocation4 + $0x4e0] sm:$0xff]
    %v499 = vld [vmem:[#allocation4 + $0x4e8] sm:$0xff]
    %v500 = vld [vmem:[#allocation4 + $0x4f0] sm:$0xff]
    %v501 = vld [vmem:[#allocation4 + $0x4f8] sm:$0xf]
    %v502 = vld [vmem:[#allocation4 + $0x500] sm:$0xff]
    %v503 = vld [vmem:[#allocation4 + $0x508] sm:$0xff]
    %v504 = vld [vmem:[#allocation4 + $0x510] sm:$0xff]
    %v505 = vld [vmem:[#allocation4 + $0x518] sm:$0xf]
    %v506 = vld [vmem:[#allocation4 + $0x520] sm:$0xff]
    %v507 = vld [vmem:[#allocation4 + $0x528] sm:$0xff]
    %v508 = vld [vmem:[#allocation4 + $0x530] sm:$0xff]
    %v509 = vld [vmem:[#allocation4 + $0x538] sm:$0xf]
    %v510 = vld [vmem:[#allocation4 + $0x540] sm:$0xff]
    %v511 = vld [vmem:[#allocation4 + $0x548] sm:$0xff]
    %v512 = vld [vmem:[#allocation4 + $0x550] sm:$0xff]
    %v513 = vld [vmem:[#allocation4 + $0x558] sm:$0xf]
    %v514 = vld [vmem:[#allocation4 + $0x560] sm:$0xff]
    %v515 = vld [vmem:[#allocation4 + $0x568] sm:$0xff]
    %v516 = vld [vmem:[#allocation4 + $0x570] sm:$0xff]
    %v517 = vld [vmem:[#allocation4 + $0x578] sm:$0xf]
    %v518 = vld [vmem:[#allocation4 + $0x580] sm:$0xff]
    %v519 = vld [vmem:[#allocation4 + $0x588] sm:$0xff]
    %v520 = vld [vmem:[#allocation4 + $0x590] sm:$0xff]
    %v521 = vld [vmem:[#allocation4 + $0x598] sm:$0xf]
    %v522 = vld [vmem:[#allocation4 + $0x5a0] sm:$0xff]
    %v523 = vld [vmem:[#allocation4 + $0x5a8] sm:$0xff]
    %v524 = vld [vmem:[#allocation4 + $0x5b0] sm:$0xff]
    %v525 = vld [vmem:[#allocation4 + $0x5b8] sm:$0xf]
    %v526 = vld [vmem:[#allocation4 + $0x5c0] sm:$0xff]
    %v527 = vld [vmem:[#allocation4 + $0x5c8] sm:$0xff]
    %v528 = vld [vmem:[#allocation4 + $0x5d0] sm:$0xff]
    %v529 = vld [vmem:[#allocation4 + $0x5d8] sm:$0xf]
    %v530 = vld [vmem:[#allocation4 + $0x5e0] sm:$0xff]
    %v531 = vld [vmem:[#allocation4 + $0x5e8] sm:$0xff]
    %v532 = vld [vmem:[#allocation4 + $0x5f0] sm:$0xff]
    %v533 = vld [vmem:[#allocation4 + $0x5f8] sm:$0xf]
    %v534 = vld [vmem:[#allocation4 + $0x600] sm:$0xff]
    %v535 = vld [vmem:[#allocation4 + $0x608] sm:$0xff]
    %v536 = vld [vmem:[#allocation4 + $0x610] sm:$0xff]
    %v537 = vld [vmem:[#allocation4 + $0x618] sm:$0xf]
    %v538 = vld [vmem:[#allocation4 + $0x620] sm:$0xff]
    %v539 = vld [vmem:[#allocation4 + $0x628] sm:$0xff]
    %v540 = vld [vmem:[#allocation4 + $0x630] sm:$0xff]
    %v541 = vld [vmem:[#allocation4 + $0x638] sm:$0xf]
    %v542 = vld [vmem:[#allocation4 + $0x640] sm:$0xff]
    %v543 = vld [vmem:[#allocation4 + $0x648] sm:$0xff]
    %v544 = vld [vmem:[#allocation4 + $0x650] sm:$0xff]
    %v545 = vld [vmem:[#allocation4 + $0x658] sm:$0xf]
    %v546 = vld [vmem:[#allocation4 + $0x660] sm:$0xff]
    %v547 = vld [vmem:[#allocation4 + $0x668] sm:$0xff]
    %v548 = vld [vmem:[#allocation4 + $0x670] sm:$0xff]
    %v549 = vld [vmem:[#allocation4 + $0x678] sm:$0xf]
    %v550 = vld [vmem:[#allocation4 + $0x680] sm:$0xff]
    %v551 = vld [vmem:[#allocation4 + $0x688] sm:$0xff]
    %v552 = vld [vmem:[#allocation4 + $0x690] sm:$0xff]
    %v553 = vld [vmem:[#allocation4 + $0x698] sm:$0xf]
    %v554 = vld [vmem:[#allocation4 + $0x6a0] sm:$0xff]
    %v555 = vld [vmem:[#allocation4 + $0x6a8] sm:$0xff]
    %v556 = vld [vmem:[#allocation4 + $0x6b0] sm:$0xff]
    %v557 = vld [vmem:[#allocation4 + $0x6b8] sm:$0xf]
    %v558 = vld [vmem:[#allocation4 + $0x6c0] sm:$0xff]
    %v559 = vld [vmem:[#allocation4 + $0x6c8] sm:$0xff]
    %v560 = vld [vmem:[#allocation4 + $0x6d0] sm:$0xff]
    %v561 = vld [vmem:[#allocation4 + $0x6d8] sm:$0xf]
    %v562 = vld [vmem:[#allocation4 + $0x6e0] sm:$0xff]
    %v563 = vld [vmem:[#allocation4 + $0x6e8] sm:$0xff]
    %v564 = vld [vmem:[#allocation4 + $0x6f0] sm:$0xff]
    %v565 = vld [vmem:[#allocation4 + $0x6f8] sm:$0xf]
    %v566 = vld [vmem:[#allocation4 + $0x700] sm:$0xff]
    %v567 = vld [vmem:[#allocation4 + $0x708] sm:$0xff]
    %v568 = vld [vmem:[#allocation4 + $0x710] sm:$0xff]
    %v569 = vld [vmem:[#allocation4 + $0x718] sm:$0xf]
    %v570 = vld [vmem:[#allocation4 + $0x720] sm:$0xff]
    %v571 = vld [vmem:[#allocation4 + $0x728] sm:$0xff]
    %v572 = vld [vmem:[#allocation4 + $0x730] sm:$0xff]
    %v573 = vld [vmem:[#allocation4 + $0x738] sm:$0xf]
    %v574 = vld [vmem:[#allocation4 + $0x740] sm:$0xff]
    %v575 = vld [vmem:[#allocation4 + $0x748] sm:$0xff]
    %v576 = vld [vmem:[#allocation4 + $0x750] sm:$0xff]
    %v577 = vld [vmem:[#allocation4 + $0x758] sm:$0xf]
    %v578 = vld [vmem:[#allocation4 + $0x760] sm:$0xff]
    %v579 = vld [vmem:[#allocation4 + $0x768] sm:$0xff]
    %v580 = vld [vmem:[#allocation4 + $0x770] sm:$0xff]
    %v581 = vld [vmem:[#allocation4 + $0x778] sm:$0xf]
    %v582 = vld [vmem:[#allocation4 + $0x780] sm:$0xff]
    %v583 = vld [vmem:[#allocation4 + $0x788] sm:$0xff]
    %v584 = vld [vmem:[#allocation4 + $0x790] sm:$0xff]
    %v585 = vld [vmem:[#allocation4 + $0x798] sm:$0xf]
    %v586 = vld [vmem:[#allocation4 + $0x7a0] sm:$0xff]
    %v587 = vld [vmem:[#allocation4 + $0x7a8] sm:$0xff]
    %v588 = vld [vmem:[#allocation4 + $0x7b0] sm:$0xff]
    %v589 = vld [vmem:[#allocation4 + $0x7b8] sm:$0xf]
    %v590 = vld [vmem:[#allocation4 + $0x7c0] sm:$0xff]
    %v591 = vld [vmem:[#allocation4 + $0x7c8] sm:$0xff]
    %v592 = vld [vmem:[#allocation4 + $0x7d0] sm:$0xff]
    %v593 = vld [vmem:[#allocation4 + $0x7d8] sm:$0xf]
    %v594 = vld [vmem:[#allocation4 + $0x7e0] sm:$0xff]
    %v595 = vld [vmem:[#allocation4 + $0x7e8] sm:$0xff]
    %v596 = vld [vmem:[#allocation4 + $0x7f0] sm:$0xff]
    %v597 = vld [vmem:[#allocation4 + $0x7f8] sm:$0xf]
    %v598 = vpack.c.bf16 %v338, %v338
    %v599 = vpack.c.bf16 %v339, %v339
    %v600 = vpack.c.bf16 %v340, %v340
    %v601 = vpack.c.bf16 %v341, %v341
    %s602 = scalar_lea.vmem [#allocation7], 1
    %v603 = vld [vmem:[%s602] ss:$8 sm:$0xf]
    %v604 = vld [vmem:[%s602] ss:$8 sm:$0xf0]
    %v605 = vor.u32 %v603, %v604
    %v607 = vperm.slane %v605, 0
    %v608 = vperm.slane %v605, 1
    %v609 = vperm.slane %v605, 2
    %v610 = vperm.slane %v605, 3
    %v611 = vperm.slane %v605, 4
    %v612 = vperm.slane %v605, 5
    %v613 = vperm.slane %v605, 6
    %v877 = vunpack.c.l.b16 %v342
    %v878 = vunpack.c.h.b16 %v342
    %v879 = vunpack.c.l.b16 %v343
    %v880 = vunpack.c.h.b16 %v343
    %v881 = vunpack.c.l.b16 %v344
    %v882 = vunpack.c.h.b16 %v344
    %v883 = vunpack.c.l.b16 %v345
    %v884 = vunpack.c.l.b16 %v346
    %v885 = vunpack.c.h.b16 %v346
    %v886 = vunpack.c.l.b16 %v347
    %v887 = vunpack.c.h.b16 %v347
    %v888 = vunpack.c.l.b16 %v348
    %v889 = vunpack.c.h.b16 %v348
    %v890 = vunpack.c.l.b16 %v349
    %v891 = vunpack.c.l.b16 %v350
    %v892 = vunpack.c.h.b16 %v350
    %v893 = vunpack.c.l.b16 %v351
    %v894 = vunpack.c.h.b16 %v351
    %v895 = vunpack.c.l.b16 %v352
    %v896 = vunpack.c.h.b16 %v352
    %v897 = vunpack.c.l.b16 %v353
    %v898 = vunpack.c.l.b16 %v354
    %v899 = vunpack.c.h.b16 %v354
    %v900 = vunpack.c.l.b16 %v355
    %v901 = vunpack.c.h.b16 %v355
    %v902 = vunpack.c.l.b16 %v356
    %v903 = vunpack.c.h.b16 %v356
    %v904 = vunpack.c.l.b16 %v357
    %v905 = vunpack.c.l.b16 %v358
    %v906 = vunpack.c.h.b16 %v358
    %v907 = vunpack.c.l.b16 %v359
    %v908 = vunpack.c.h.b16 %v359
    %v909 = vunpack.c.l.b16 %v360
    %v910 = vunpack.c.h.b16 %v360
    %v911 = vunpack.c.l.b16 %v361
    %v912 = vunpack.c.l.b16 %v362
    %v913 = vunpack.c.h.b16 %v362
    %v914 = vunpack.c.l.b16 %v363
    %v915 = vunpack.c.h.b16 %v363
    %v916 = vunpack.c.l.b16 %v364
    %v917 = vunpack.c.h.b16 %v364
    %v918 = vunpack.c.l.b16 %v365
    %v919 = vunpack.c.l.b16 %v366
    %v920 = vunpack.c.h.b16 %v366
    %v921 = vunpack.c.l.b16 %v367
    %v922 = vunpack.c.h.b16 %v367
    %v923 = vunpack.c.l.b16 %v368
    %v924 = vunpack.c.h.b16 %v368
    %v925 = vunpack.c.l.b16 %v369
    %v926 = vunpack.c.l.b16 %v370
    %v927 = vunpack.c.h.b16 %v370
    %v928 = vunpack.c.l.b16 %v371
    %v929 = vunpack.c.h.b16 %v371
    %v930 = vunpack.c.l.b16 %v372
    %v931 = vunpack.c.h.b16 %v372
    %v932 = vunpack.c.l.b16 %v373
    %v933 = vunpack.c.l.b16 %v374
    %v934 = vunpack.c.h.b16 %v374
    %v935 = vunpack.c.l.b16 %v375
    %v936 = vunpack.c.h.b16 %v375
    %v937 = vunpack.c.l.b16 %v376
    %v938 = vunpack.c.h.b16 %v376
    %v939 = vunpack.c.l.b16 %v377
    %v940 = vunpack.c.l.b16 %v378
    %v941 = vunpack.c.h.b16 %v378
    %v942 = vunpack.c.l.b16 %v379
    %v943 = vunpack.c.h.b16 %v379
    %v944 = vunpack.c.l.b16 %v380
    %v945 = vunpack.c.h.b16 %v380
    %v946 = vunpack.c.l.b16 %v381
    %v947 = vunpack.c.l.b16 %v382
    %v948 = vunpack.c.h.b16 %v382
    %v949 = vunpack.c.l.b16 %v383
    %v950 = vunpack.c.h.b16 %v383
    %v951 = vunpack.c.l.b16 %v384
    %v952 = vunpack.c.h.b16 %v384
    %v953 = vunpack.c.l.b16 %v385
    %v954 = vunpack.c.l.b16 %v386
    %v955 = vunpack.c.h.b16 %v386
    %v956 = vunpack.c.l.b16 %v387
    %v957 = vunpack.c.h.b16 %v387
    %v958 = vunpack.c.l.b16 %v388
    %v959 = vunpack.c.h.b16 %v388
    %v960 = vunpack.c.l.b16 %v389
    %v961 = vunpack.c.l.b16 %v390
    %v962 = vunpack.c.h.b16 %v390
    %v963 = vunpack.c.l.b16 %v391
    %v964 = vunpack.c.h.b16 %v391
    %v965 = vunpack.c.l.b16 %v392
    %v966 = vunpack.c.h.b16 %v392
    %v967 = vunpack.c.l.b16 %v393
    %v968 = vunpack.c.l.b16 %v394
    %v969 = vunpack.c.h.b16 %v394
    %v970 = vunpack.c.l.b16 %v395
    %v971 = vunpack.c.h.b16 %v395
    %v972 = vunpack.c.l.b16 %v396
    %v973 = vunpack.c.h.b16 %v396
    %v974 = vunpack.c.l.b16 %v397
    %v975 = vunpack.c.l.b16 %v398
    %v976 = vunpack.c.h.b16 %v398
    %v977 = vunpack.c.l.b16 %v399
    %v978 = vunpack.c.h.b16 %v399
    %v979 = vunpack.c.l.b16 %v400
    %v980 = vunpack.c.h.b16 %v400
    %v981 = vunpack.c.l.b16 %v401
    %v982 = vunpack.c.l.b16 %v402
    %v983 = vunpack.c.h.b16 %v402
    %v984 = vunpack.c.l.b16 %v403
    %v985 = vunpack.c.h.b16 %v403
    %v986 = vunpack.c.l.b16 %v404
    %v987 = vunpack.c.h.b16 %v404
    %v988 = vunpack.c.l.b16 %v405
    %v989 = vunpack.c.l.b16 %v406
    %v990 = vunpack.c.h.b16 %v406
    %v991 = vunpack.c.l.b16 %v407
    %v992 = vunpack.c.h.b16 %v407
    %v993 = vunpack.c.l.b16 %v408
    %v994 = vunpack.c.h.b16 %v408
    %v995 = vunpack.c.l.b16 %v409
    %v996 = vunpack.c.l.b16 %v410
    %v997 = vunpack.c.h.b16 %v410
    %v998 = vunpack.c.l.b16 %v411
    %v999 = vunpack.c.h.b16 %v411
    %v1000 = vunpack.c.l.b16 %v412
    %v1001 = vunpack.c.h.b16 %v412
    %v1002 = vunpack.c.l.b16 %v413
    %v1003 = vunpack.c.l.b16 %v414
    %v1004 = vunpack.c.h.b16 %v414
    %v1005 = vunpack.c.l.b16 %v415
    %v1006 = vunpack.c.h.b16 %v415
    %v1007 = vunpack.c.l.b16 %v416
    %v1008 = vunpack.c.h.b16 %v416
    %v1009 = vunpack.c.l.b16 %v417
    %v1010 = vunpack.c.l.b16 %v418
    %v1011 = vunpack.c.h.b16 %v418
    %v1012 = vunpack.c.l.b16 %v419
    %v1013 = vunpack.c.h.b16 %v419
    %v1014 = vunpack.c.l.b16 %v420
    %v1015 = vunpack.c.h.b16 %v420
    %v1016 = vunpack.c.l.b16 %v421
    %v1017 = vunpack.c.l.b16 %v422
    %v1018 = vunpack.c.h.b16 %v422
    %v1019 = vunpack.c.l.b16 %v423
    %v1020 = vunpack.c.h.b16 %v423
    %v1021 = vunpack.c.l.b16 %v424
    %v1022 = vunpack.c.h.b16 %v424
    %v1023 = vunpack.c.l.b16 %v425
    %v1024 = vunpack.c.l.b16 %v426
    %v1025 = vunpack.c.h.b16 %v426
    %v1026 = vunpack.c.l.b16 %v427
    %v1027 = vunpack.c.h.b16 %v427
    %v1028 = vunpack.c.l.b16 %v428
    %v1029 = vunpack.c.h.b16 %v428
    %v1030 = vunpack.c.l.b16 %v429
    %v1031 = vunpack.c.l.b16 %v430
    %v1032 = vunpack.c.h.b16 %v430
    %v1033 = vunpack.c.l.b16 %v431
    %v1034 = vunpack.c.h.b16 %v431
    %v1035 = vunpack.c.l.b16 %v432
    %v1036 = vunpack.c.h.b16 %v432
    %v1037 = vunpack.c.l.b16 %v433
    %v1038 = vunpack.c.l.b16 %v434
    %v1039 = vunpack.c.h.b16 %v434
    %v1040 = vunpack.c.l.b16 %v435
    %v1041 = vunpack.c.h.b16 %v435
    %v1042 = vunpack.c.l.b16 %v436
    %v1043 = vunpack.c.h.b16 %v436
    %v1044 = vunpack.c.l.b16 %v437
    %v1045 = vunpack.c.l.b16 %v438
    %v1046 = vunpack.c.h.b16 %v438
    %v1047 = vunpack.c.l.b16 %v439
    %v1048 = vunpack.c.h.b16 %v439
    %v1049 = vunpack.c.l.b16 %v440
    %v1050 = vunpack.c.h.b16 %v440
    %v1051 = vunpack.c.l.b16 %v441
    %v1052 = vunpack.c.l.b16 %v442
    %v1053 = vunpack.c.h.b16 %v442
    %v1054 = vunpack.c.l.b16 %v443
    %v1055 = vunpack.c.h.b16 %v443
    %v1056 = vunpack.c.l.b16 %v444
    %v1057 = vunpack.c.h.b16 %v444
    %v1058 = vunpack.c.l.b16 %v445
    %v1059 = vunpack.c.l.b16 %v446
    %v1060 = vunpack.c.h.b16 %v446
    %v1061 = vunpack.c.l.b16 %v447
    %v1062 = vunpack.c.h.b16 %v447
    %v1063 = vunpack.c.l.b16 %v448
    %v1064 = vunpack.c.h.b16 %v448
    %v1065 = vunpack.c.l.b16 %v449
    %v1066 = vunpack.c.l.b16 %v450
    %v1067 = vunpack.c.h.b16 %v450
    %v1068 = vunpack.c.l.b16 %v451
    %v1069 = vunpack.c.h.b16 %v451
    %v1070 = vunpack.c.l.b16 %v452
    %v1071 = vunpack.c.h.b16 %v452
    %v1072 = vunpack.c.l.b16 %v453
    %v1073 = vunpack.c.l.b16 %v454
    %v1074 = vunpack.c.h.b16 %v454
    %v1075 = vunpack.c.l.b16 %v455
    %v1076 = vunpack.c.h.b16 %v455
    %v1077 = vunpack.c.l.b16 %v456
    %v1078 = vunpack.c.h.b16 %v456
    %v1079 = vunpack.c.l.b16 %v457
    %v1080 = vunpack.c.l.b16 %v458
    %v1081 = vunpack.c.h.b16 %v458
    %v1082 = vunpack.c.l.b16 %v459
    %v1083 = vunpack.c.h.b16 %v459
    %v1084 = vunpack.c.l.b16 %v460
    %v1085 = vunpack.c.h.b16 %v460
    %v1086 = vunpack.c.l.b16 %v461
    %v1087 = vunpack.c.l.b16 %v462
    %v1088 = vunpack.c.h.b16 %v462
    %v1089 = vunpack.c.l.b16 %v463
    %v1090 = vunpack.c.h.b16 %v463
    %v1091 = vunpack.c.l.b16 %v464
    %v1092 = vunpack.c.h.b16 %v464
    %v1093 = vunpack.c.l.b16 %v465
    %v1094 = vunpack.c.l.b16 %v466
    %v1095 = vunpack.c.h.b16 %v466
    %v1096 = vunpack.c.l.b16 %v467
    %v1097 = vunpack.c.h.b16 %v467
    %v1098 = vunpack.c.l.b16 %v468
    %v1099 = vunpack.c.h.b16 %v468
    %v1100 = vunpack.c.l.b16 %v469
    %v1101 = vunpack.c.l.b16 %v470
    %v1102 = vunpack.c.h.b16 %v470
    %v1103 = vunpack.c.l.b16 %v471
    %v1104 = vunpack.c.h.b16 %v471
    %v1105 = vunpack.c.l.b16 %v472
    %v1106 = vunpack.c.h.b16 %v472
    %v1107 = vunpack.c.l.b16 %v473
    %v1108 = vunpack.c.l.b16 %v474
    %v1109 = vunpack.c.h.b16 %v474
    %v1110 = vunpack.c.l.b16 %v475
    %v1111 = vunpack.c.h.b16 %v475
    %v1112 = vunpack.c.l.b16 %v476
    %v1113 = vunpack.c.h.b16 %v476
    %v1114 = vunpack.c.l.b16 %v477
    %v1115 = vunpack.c.l.b16 %v478
    %v1116 = vunpack.c.h.b16 %v478
    %v1117 = vunpack.c.l.b16 %v479
    %v1118 = vunpack.c.h.b16 %v479
    %v1119 = vunpack.c.l.b16 %v480
    %v1120 = vunpack.c.h.b16 %v480
    %v1121 = vunpack.c.l.b16 %v481
    %v1122 = vunpack.c.l.b16 %v482
    %v1123 = vunpack.c.h.b16 %v482
    %v1124 = vunpack.c.l.b16 %v483
    %v1125 = vunpack.c.h.b16 %v483
    %v1126 = vunpack.c.l.b16 %v484
    %v1127 = vunpack.c.h.b16 %v484
    %v1128 = vunpack.c.l.b16 %v485
    %v1129 = vunpack.c.l.b16 %v486
    %v1130 = vunpack.c.h.b16 %v486
    %v1131 = vunpack.c.l.b16 %v487
    %v1132 = vunpack.c.h.b16 %v487
    %v1133 = vunpack.c.l.b16 %v488
    %v1134 = vunpack.c.h.b16 %v488
    %v1135 = vunpack.c.l.b16 %v489
    %v1136 = vunpack.c.l.b16 %v490
    %v1137 = vunpack.c.h.b16 %v490
    %v1138 = vunpack.c.l.b16 %v491
    %v1139 = vunpack.c.h.b16 %v491
    %v1140 = vunpack.c.l.b16 %v492
    %v1141 = vunpack.c.h.b16 %v492
    %v1142 = vunpack.c.l.b16 %v493
    %v1143 = vunpack.c.l.b16 %v494
    %v1144 = vunpack.c.h.b16 %v494
    %v1145 = vunpack.c.l.b16 %v495
    %v1146 = vunpack.c.h.b16 %v495
    %v1147 = vunpack.c.l.b16 %v496
    %v1148 = vunpack.c.h.b16 %v496
    %v1149 = vunpack.c.l.b16 %v497
    %v1150 = vunpack.c.l.b16 %v498
    %v1151 = vunpack.c.h.b16 %v498
    %v1152 = vunpack.c.l.b16 %v499
    %v1153 = vunpack.c.h.b16 %v499
    %v1154 = vunpack.c.l.b16 %v500
    %v1155 = vunpack.c.h.b16 %v500
    %v1156 = vunpack.c.l.b16 %v501
    %v1157 = vunpack.c.l.b16 %v502
    %v1158 = vunpack.c.h.b16 %v502
    %v1159 = vunpack.c.l.b16 %v503
    %v1160 = vunpack.c.h.b16 %v503
    %v1161 = vunpack.c.l.b16 %v504
    %v1162 = vunpack.c.h.b16 %v504
    %v1163 = vunpack.c.l.b16 %v505
    %v1164 = vunpack.c.l.b16 %v506
    %v1165 = vunpack.c.h.b16 %v506
    %v1166 = vunpack.c.l.b16 %v507
    %v1167 = vunpack.c.h.b16 %v507
    %v1168 = vunpack.c.l.b16 %v508
    %v1169 = vunpack.c.h.b16 %v508
    %v1170 = vunpack.c.l.b16 %v509
    %v1171 = vunpack.c.l.b16 %v510
    %v1172 = vunpack.c.h.b16 %v510
    %v1173 = vunpack.c.l.b16 %v511
    %v1174 = vunpack.c.h.b16 %v511
    %v1175 = vunpack.c.l.b16 %v512
    %v1176 = vunpack.c.h.b16 %v512
    %v1177 = vunpack.c.l.b16 %v513
    %v1178 = vunpack.c.l.b16 %v514
    %v1179 = vunpack.c.h.b16 %v514
    %v1180 = vunpack.c.l.b16 %v515
    %v1181 = vunpack.c.h.b16 %v515
    %v1182 = vunpack.c.l.b16 %v516
    %v1183 = vunpack.c.h.b16 %v516
    %v1184 = vunpack.c.l.b16 %v517
    %v1185 = vunpack.c.l.b16 %v518
    %v1186 = vunpack.c.h.b16 %v518
    %v1187 = vunpack.c.l.b16 %v519
    %v1188 = vunpack.c.h.b16 %v519
    %v1189 = vunpack.c.l.b16 %v520
    %v1190 = vunpack.c.h.b16 %v520
    %v1191 = vunpack.c.l.b16 %v521
    %v1192 = vunpack.c.l.b16 %v522
    %v1193 = vunpack.c.h.b16 %v522
    %v1194 = vunpack.c.l.b16 %v523
    %v1195 = vunpack.c.h.b16 %v523
    %v1196 = vunpack.c.l.b16 %v524
    %v1197 = vunpack.c.h.b16 %v524
    %v1198 = vunpack.c.l.b16 %v525
    %v1199 = vunpack.c.l.b16 %v526
    %v1200 = vunpack.c.h.b16 %v526
    %v1201 = vunpack.c.l.b16 %v527
    %v1202 = vunpack.c.h.b16 %v527
    %v1203 = vunpack.c.l.b16 %v528
    %v1204 = vunpack.c.h.b16 %v528
    %v1205 = vunpack.c.l.b16 %v529
    %v1206 = vunpack.c.l.b16 %v530
    %v1207 = vunpack.c.h.b16 %v530
    %v1208 = vunpack.c.l.b16 %v531
    %v1209 = vunpack.c.h.b16 %v531
    %v1210 = vunpack.c.l.b16 %v532
    %v1211 = vunpack.c.h.b16 %v532
    %v1212 = vunpack.c.l.b16 %v533
    %v1213 = vunpack.c.l.b16 %v534
    %v1214 = vunpack.c.h.b16 %v534
    %v1215 = vunpack.c.l.b16 %v535
    %v1216 = vunpack.c.h.b16 %v535
    %v1217 = vunpack.c.l.b16 %v536
    %v1218 = vunpack.c.h.b16 %v536
    %v1219 = vunpack.c.l.b16 %v537
    %v1220 = vunpack.c.l.b16 %v538
    %v1221 = vunpack.c.h.b16 %v538
    %v1222 = vunpack.c.l.b16 %v539
    %v1223 = vunpack.c.h.b16 %v539
    %v1224 = vunpack.c.l.b16 %v540
    %v1225 = vunpack.c.h.b16 %v540
    %v1226 = vunpack.c.l.b16 %v541
    %v1227 = vunpack.c.l.b16 %v542
    %v1228 = vunpack.c.h.b16 %v542
    %v1229 = vunpack.c.l.b16 %v543
    %v1230 = vunpack.c.h.b16 %v543
    %v1231 = vunpack.c.l.b16 %v544
    %v1232 = vunpack.c.h.b16 %v544
    %v1233 = vunpack.c.l.b16 %v545
    %v1234 = vunpack.c.l.b16 %v546
    %v1235 = vunpack.c.h.b16 %v546
    %v1236 = vunpack.c.l.b16 %v547
    %v1237 = vunpack.c.h.b16 %v547
    %v1238 = vunpack.c.l.b16 %v548
    %v1239 = vunpack.c.h.b16 %v548
    %v1240 = vunpack.c.l.b16 %v549
    %v1241 = vunpack.c.l.b16 %v550
    %v1242 = vunpack.c.h.b16 %v550
    %v1243 = vunpack.c.l.b16 %v551
    %v1244 = vunpack.c.h.b16 %v551
    %v1245 = vunpack.c.l.b16 %v552
    %v1246 = vunpack.c.h.b16 %v552
    %v1247 = vunpack.c.l.b16 %v553
    %v1248 = vunpack.c.l.b16 %v554
    %v1249 = vunpack.c.h.b16 %v554
    %v1250 = vunpack.c.l.b16 %v555
    %v1251 = vunpack.c.h.b16 %v555
    %v1252 = vunpack.c.l.b16 %v556
    %v1253 = vunpack.c.h.b16 %v556
    %v1254 = vunpack.c.l.b16 %v557
    %v1255 = vunpack.c.l.b16 %v558
    %v1256 = vunpack.c.h.b16 %v558
    %v1257 = vunpack.c.l.b16 %v559
    %v1258 = vunpack.c.h.b16 %v559
    %v1259 = vunpack.c.l.b16 %v560
    %v1260 = vunpack.c.h.b16 %v560
    %v1261 = vunpack.c.l.b16 %v561
    %v1262 = vunpack.c.l.b16 %v562
    %v1263 = vunpack.c.h.b16 %v562
    %v1264 = vunpack.c.l.b16 %v563
    %v1265 = vunpack.c.h.b16 %v563
    %v1266 = vunpack.c.l.b16 %v564
    %v1267 = vunpack.c.h.b16 %v564
    %v1268 = vunpack.c.l.b16 %v565
    %v1269 = vunpack.c.l.b16 %v566
    %v1270 = vunpack.c.h.b16 %v566
    %v1271 = vunpack.c.l.b16 %v567
    %v1272 = vunpack.c.h.b16 %v567
    %v1273 = vunpack.c.l.b16 %v568
    %v1274 = vunpack.c.h.b16 %v568
    %v1275 = vunpack.c.l.b16 %v569
    %v1276 = vunpack.c.l.b16 %v570
    %v1277 = vunpack.c.h.b16 %v570
    %v1278 = vunpack.c.l.b16 %v571
    %v1279 = vunpack.c.h.b16 %v571
    %v1280 = vunpack.c.l.b16 %v572
    %v1281 = vunpack.c.h.b16 %v572
    %v1282 = vunpack.c.l.b16 %v573
    %v1283 = vunpack.c.l.b16 %v574
    %v1284 = vunpack.c.h.b16 %v574
    %v1285 = vunpack.c.l.b16 %v575
    %v1286 = vunpack.c.h.b16 %v575
    %v1287 = vunpack.c.l.b16 %v576
    %v1288 = vunpack.c.h.b16 %v576
    %v1289 = vunpack.c.l.b16 %v577
    %v1290 = vunpack.c.l.b16 %v578
    %v1291 = vunpack.c.h.b16 %v578
    %v1292 = vunpack.c.l.b16 %v579
    %v1293 = vunpack.c.h.b16 %v579
    %v1294 = vunpack.c.l.b16 %v580
    %v1295 = vunpack.c.h.b16 %v580
    %v1296 = vunpack.c.l.b16 %v581
    %v1297 = vunpack.c.l.b16 %v582
    %v1298 = vunpack.c.h.b16 %v582
    %v1299 = vunpack.c.l.b16 %v583
    %v1300 = vunpack.c.h.b16 %v583
    %v1301 = vunpack.c.l.b16 %v584
    %v1302 = vunpack.c.h.b16 %v584
    %v1303 = vunpack.c.l.b16 %v585
    %v1304 = vunpack.c.l.b16 %v586
    %v1305 = vunpack.c.h.b16 %v586
    %v1306 = vunpack.c.l.b16 %v587
    %v1307 = vunpack.c.h.b16 %v587
    %v1308 = vunpack.c.l.b16 %v588
    %v1309 = vunpack.c.h.b16 %v588
    %v1310 = vunpack.c.l.b16 %v589
    %v1311 = vunpack.c.l.b16 %v590
    %v1312 = vunpack.c.h.b16 %v590
    %v1313 = vunpack.c.l.b16 %v591
    %v1314 = vunpack.c.h.b16 %v591
    %v1315 = vunpack.c.l.b16 %v592
    %v1316 = vunpack.c.h.b16 %v592
    %v1317 = vunpack.c.l.b16 %v593
    %v1318 = vunpack.c.l.b16 %v594
    %v1319 = vunpack.c.h.b16 %v594
    %v1320 = vunpack.c.l.b16 %v595
    %v1321 = vunpack.c.h.b16 %v595
    %v1322 = vunpack.c.l.b16 %v596
    %v1323 = vunpack.c.h.b16 %v596
    %v1324 = vunpack.c.l.b16 %v597
    %v1325 = vpack.c.b16 %v884, %v877
    %v1326 = vpack.c.b16 %v885, %v878
    %v1327 = vpack.c.b16 %v886, %v879
    %v1328 = vpack.c.b16 %v887, %v880
    %v1329 = vpack.c.b16 %v888, %v881
    %v1330 = vpack.c.b16 %v889, %v882
    %v1331 = vpack.c.b16 %v890, %v883
    %v1332 = vpack.c.b16 %v898, %v891
    %v1333 = vpack.c.b16 %v899, %v892
    %v1334 = vpack.c.b16 %v900, %v893
    %v1335 = vpack.c.b16 %v901, %v894
    %v1336 = vpack.c.b16 %v902, %v895
    %v1337 = vpack.c.b16 %v903, %v896
    %v1338 = vpack.c.b16 %v904, %v897
    %v1339 = vpack.c.b16 %v912, %v905
    %v1340 = vpack.c.b16 %v913, %v906
    %v1341 = vpack.c.b16 %v914, %v907
    %v1342 = vpack.c.b16 %v915, %v908
    %v1343 = vpack.c.b16 %v916, %v909
    %v1344 = vpack.c.b16 %v917, %v910
    %v1345 = vpack.c.b16 %v918, %v911
    %v1346 = vpack.c.b16 %v926, %v919
    %v1347 = vpack.c.b16 %v927, %v920
    %v1348 = vpack.c.b16 %v928, %v921
    %v1349 = vpack.c.b16 %v929, %v922
    %v1350 = vpack.c.b16 %v930, %v923
    %v1351 = vpack.c.b16 %v931, %v924
    %v1352 = vpack.c.b16 %v932, %v925
    %v1353 = vpack.c.b16 %v940, %v933
    %v1354 = vpack.c.b16 %v941, %v934
    %v1355 = vpack.c.b16 %v942, %v935
    %v1356 = vpack.c.b16 %v943, %v936
    %v1357 = vpack.c.b16 %v944, %v937
    %v1358 = vpack.c.b16 %v945, %v938
    %v1359 = vpack.c.b16 %v946, %v939
    %v1360 = vpack.c.b16 %v954, %v947
    %v1361 = vpack.c.b16 %v955, %v948
    %v1362 = vpack.c.b16 %v956, %v949
    %v1363 = vpack.c.b16 %v957, %v950
    %v1364 = vpack.c.b16 %v958, %v951
    %v1365 = vpack.c.b16 %v959, %v952
    %v1366 = vpack.c.b16 %v960, %v953
    %v1367 = vpack.c.b16 %v968, %v961
    %v1368 = vpack.c.b16 %v969, %v962
    %v1369 = vpack.c.b16 %v970, %v963
    %v1370 = vpack.c.b16 %v971, %v964
    %v1371 = vpack.c.b16 %v972, %v965
    %v1372 = vpack.c.b16 %v973, %v966
    %v1373 = vpack.c.b16 %v974, %v967
    %v1374 = vpack.c.b16 %v982, %v975
    %v1375 = vpack.c.b16 %v983, %v976
    %v1376 = vpack.c.b16 %v984, %v977
    %v1377 = vpack.c.b16 %v985, %v978
    %v1378 = vpack.c.b16 %v986, %v979
    %v1379 = vpack.c.b16 %v987, %v980
    %v1380 = vpack.c.b16 %v988, %v981
    %v1381 = vpack.c.b16 %v996, %v989
    %v1382 = vpack.c.b16 %v997, %v990
    %v1383 = vpack.c.b16 %v998, %v991
    %v1384 = vpack.c.b16 %v999, %v992
    %v1385 = vpack.c.b16 %v1000, %v993
    %v1386 = vpack.c.b16 %v1001, %v994
    %v1387 = vpack.c.b16 %v1002, %v995
    %v1388 = vpack.c.b16 %v1010, %v1003
    %v1389 = vpack.c.b16 %v1011, %v1004
    %v1390 = vpack.c.b16 %v1012, %v1005
    %v1391 = vpack.c.b16 %v1013, %v1006
    %v1392 = vpack.c.b16 %v1014, %v1007
    %v1393 = vpack.c.b16 %v1015, %v1008
    %v1394 = vpack.c.b16 %v1016, %v1009
    %v1395 = vpack.c.b16 %v1024, %v1017
    %v1396 = vpack.c.b16 %v1025, %v1018
    %v1397 = vpack.c.b16 %v1026, %v1019
    %v1398 = vpack.c.b16 %v1027, %v1020
    %v1399 = vpack.c.b16 %v1028, %v1021
    %v1400 = vpack.c.b16 %v1029, %v1022
    %v1401 = vpack.c.b16 %v1030, %v1023
    %v1402 = vpack.c.b16 %v1038, %v1031
    %v1403 = vpack.c.b16 %v1039, %v1032
    %v1404 = vpack.c.b16 %v1040, %v1033
    %v1405 = vpack.c.b16 %v1041, %v1034
    %v1406 = vpack.c.b16 %v1042, %v1035
    %v1407 = vpack.c.b16 %v1043, %v1036
    %v1408 = vpack.c.b16 %v1044, %v1037
    %v1409 = vpack.c.b16 %v1052, %v1045
    %v1410 = vpack.c.b16 %v1053, %v1046
    %v1411 = vpack.c.b16 %v1054, %v1047
    %v1412 = vpack.c.b16 %v1055, %v1048
    %v1413 = vpack.c.b16 %v1056, %v1049
    %v1414 = vpack.c.b16 %v1057, %v1050
    %v1415 = vpack.c.b16 %v1058, %v1051
    %v1416 = vpack.c.b16 %v1066, %v1059
    %v1417 = vpack.c.b16 %v1067, %v1060
    %v1418 = vpack.c.b16 %v1068, %v1061
    %v1419 = vpack.c.b16 %v1069, %v1062
    %v1420 = vpack.c.b16 %v1070, %v1063
    %v1421 = vpack.c.b16 %v1071, %v1064
    %v1422 = vpack.c.b16 %v1072, %v1065
    %v1423 = vpack.c.b16 %v1080, %v1073
    %v1424 = vpack.c.b16 %v1081, %v1074
    %v1425 = vpack.c.b16 %v1082, %v1075
    %v1426 = vpack.c.b16 %v1083, %v1076
    %v1427 = vpack.c.b16 %v1084, %v1077
    %v1428 = vpack.c.b16 %v1085, %v1078
    %v1429 = vpack.c.b16 %v1086, %v1079
    %v1430 = vpack.c.b16 %v1094, %v1087
    %v1431 = vpack.c.b16 %v1095, %v1088
    %v1432 = vpack.c.b16 %v1096, %v1089
    %v1433 = vpack.c.b16 %v1097, %v1090
    %v1434 = vpack.c.b16 %v1098, %v1091
    %v1435 = vpack.c.b16 %v1099, %v1092
    %v1436 = vpack.c.b16 %v1100, %v1093
    %v1437 = vpack.c.b16 %v1108, %v1101
    %v1438 = vpack.c.b16 %v1109, %v1102
    %v1439 = vpack.c.b16 %v1110, %v1103
    %v1440 = vpack.c.b16 %v1111, %v1104
    %v1441 = vpack.c.b16 %v1112, %v1105
    %v1442 = vpack.c.b16 %v1113, %v1106
    %v1443 = vpack.c.b16 %v1114, %v1107
    %v1444 = vpack.c.b16 %v1122, %v1115
    %v1445 = vpack.c.b16 %v1123, %v1116
    %v1446 = vpack.c.b16 %v1124, %v1117
    %v1447 = vpack.c.b16 %v1125, %v1118
    %v1448 = vpack.c.b16 %v1126, %v1119
    %v1449 = vpack.c.b16 %v1127, %v1120
    %v1450 = vpack.c.b16 %v1128, %v1121
    %v1451 = vpack.c.b16 %v1136, %v1129
    %v1452 = vpack.c.b16 %v1137, %v1130
    %v1453 = vpack.c.b16 %v1138, %v1131
    %v1454 = vpack.c.b16 %v1139, %v1132
    %v1455 = vpack.c.b16 %v1140, %v1133
    %v1456 = vpack.c.b16 %v1141, %v1134
    %v1457 = vpack.c.b16 %v1142, %v1135
    %v1458 = vpack.c.b16 %v1150, %v1143
    %v1459 = vpack.c.b16 %v1151, %v1144
    %v1460 = vpack.c.b16 %v1152, %v1145
    %v1461 = vpack.c.b16 %v1153, %v1146
    %v1462 = vpack.c.b16 %v1154, %v1147
    %v1463 = vpack.c.b16 %v1155, %v1148
    %v1464 = vpack.c.b16 %v1156, %v1149
    %v1465 = vpack.c.b16 %v1164, %v1157
    %v1466 = vpack.c.b16 %v1165, %v1158
    %v1467 = vpack.c.b16 %v1166, %v1159
    %v1468 = vpack.c.b16 %v1167, %v1160
    %v1469 = vpack.c.b16 %v1168, %v1161
    %v1470 = vpack.c.b16 %v1169, %v1162
    %v1471 = vpack.c.b16 %v1170, %v1163
    %v1472 = vpack.c.b16 %v1178, %v1171
    %v1473 = vpack.c.b16 %v1179, %v1172
    %v1474 = vpack.c.b16 %v1180, %v1173
    %v1475 = vpack.c.b16 %v1181, %v1174
    %v1476 = vpack.c.b16 %v1182, %v1175
    %v1477 = vpack.c.b16 %v1183, %v1176
    %v1478 = vpack.c.b16 %v1184, %v1177
    %v1479 = vpack.c.b16 %v1192, %v1185
    %v1480 = vpack.c.b16 %v1193, %v1186
    %v1481 = vpack.c.b16 %v1194, %v1187
    %v1482 = vpack.c.b16 %v1195, %v1188
    %v1483 = vpack.c.b16 %v1196, %v1189
    %v1484 = vpack.c.b16 %v1197, %v1190
    %v1485 = vpack.c.b16 %v1198, %v1191
    %v1486 = vpack.c.b16 %v1206, %v1199
    %v1487 = vpack.c.b16 %v1207, %v1200
    %v1488 = vpack.c.b16 %v1208, %v1201
    %v1489 = vpack.c.b16 %v1209, %v1202
    %v1490 = vpack.c.b16 %v1210, %v1203
    %v1491 = vpack.c.b16 %v1211, %v1204
    %v1492 = vpack.c.b16 %v1212, %v1205
    %v1493 = vpack.c.b16 %v1220, %v1213
    %v1494 = vpack.c.b16 %v1221, %v1214
    %v1495 = vpack.c.b16 %v1222, %v1215
    %v1496 = vpack.c.b16 %v1223, %v1216
    %v1497 = vpack.c.b16 %v1224, %v1217
    %v1498 = vpack.c.b16 %v1225, %v1218
    %v1499 = vpack.c.b16 %v1226, %v1219
    %v1500 = vpack.c.b16 %v1234, %v1227
    %v1501 = vpack.c.b16 %v1235, %v1228
    %v1502 = vpack.c.b16 %v1236, %v1229
    %v1503 = vpack.c.b16 %v1237, %v1230
    %v1504 = vpack.c.b16 %v1238, %v1231
    %v1505 = vpack.c.b16 %v1239, %v1232
    %v1506 = vpack.c.b16 %v1240, %v1233
    %v1507 = vpack.c.b16 %v1248, %v1241
    %v1508 = vpack.c.b16 %v1249, %v1242
    %v1509 = vpack.c.b16 %v1250, %v1243
    %v1510 = vpack.c.b16 %v1251, %v1244
    %v1511 = vpack.c.b16 %v1252, %v1245
    %v1512 = vpack.c.b16 %v1253, %v1246
    %v1513 = vpack.c.b16 %v1254, %v1247
    %v1514 = vpack.c.b16 %v1262, %v1255
    %v1515 = vpack.c.b16 %v1263, %v1256
    %v1516 = vpack.c.b16 %v1264, %v1257
    %v1517 = vpack.c.b16 %v1265, %v1258
    %v1518 = vpack.c.b16 %v1266, %v1259
    %v1519 = vpack.c.b16 %v1267, %v1260
    %v1520 = vpack.c.b16 %v1268, %v1261
    %v1521 = vpack.c.b16 %v1276, %v1269
    %v1522 = vpack.c.b16 %v1277, %v1270
    %v1523 = vpack.c.b16 %v1278, %v1271
    %v1524 = vpack.c.b16 %v1279, %v1272
    %v1525 = vpack.c.b16 %v1280, %v1273
    %v1526 = vpack.c.b16 %v1281, %v1274
    %v1527 = vpack.c.b16 %v1282, %v1275
    %v1528 = vpack.c.b16 %v1290, %v1283
    %v1529 = vpack.c.b16 %v1291, %v1284
    %v1530 = vpack.c.b16 %v1292, %v1285
    %v1531 = vpack.c.b16 %v1293, %v1286
    %v1532 = vpack.c.b16 %v1294, %v1287
    %v1533 = vpack.c.b16 %v1295, %v1288
    %v1534 = vpack.c.b16 %v1296, %v1289
    %v1535 = vpack.c.b16 %v1304, %v1297
    %v1536 = vpack.c.b16 %v1305, %v1298
    %v1537 = vpack.c.b16 %v1306, %v1299
    %v1538 = vpack.c.b16 %v1307, %v1300
    %v1539 = vpack.c.b16 %v1308, %v1301
    %v1540 = vpack.c.b16 %v1309, %v1302
    %v1541 = vpack.c.b16 %v1310, %v1303
    %v1542 = vpack.c.b16 %v1318, %v1311
    %v1543 = vpack.c.b16 %v1319, %v1312
    %v1544 = vpack.c.b16 %v1320, %v1313
    %v1545 = vpack.c.b16 %v1321, %v1314
    %v1546 = vpack.c.b16 %v1322, %v1315
    %v1547 = vpack.c.b16 %v1323, %v1316
    %v1548 = vpack.c.b16 %v1324, %v1317
    %1773 = vmatpush.bf16.msra.mxu0 %v1374
    %1774 = vmatpush.bf16.msra.mxu0 %v1367
    %1775 = vmatpush.bf16.msra.mxu0 %v1360
    %1776 = vmatpush.bf16.msra.mxu0 %v1353
    %1777 = vmatpush.bf16.msra.mxu0 %v1346
    %1778 = vmatpush.bf16.msra.mxu0 %v1339
    %1779 = vmatpush.bf16.msra.mxu0 %v1332
    %1780 = vmatpush.bf16.msra.mxu0 %v1325
    %1781 = vmatmul.bf16.gmra.mxu0 %v598
    %v1782 = vpop.f32.mrf.mxu0
    %v1783 = vadd.f32 %v607, %v1782
    %v1784 = vpop.f32.mrf.mxu0
    %1785 = vdwg.mxu0
    %1786 = vmatpush.bf16.msra.mxu0 %v1430
    %1787 = vmatpush.bf16.msra.mxu0 %v1423
    %1788 = vmatpush.bf16.msra.mxu0 %v1416
    %1789 = vmatpush.bf16.msra.mxu0 %v1409
    %1790 = vmatpush.bf16.msra.mxu0 %v1402
    %1791 = vmatpush.bf16.msra.mxu0 %v1395
    %1792 = vmatpush.bf16.msra.mxu0 %v1388
    %1793 = vmatpush.bf16.msra.mxu0 %v1381
    %1794 = vmatmul.bf16.gmra.mxu0 %v599
    %v1795 = vpop.f32.mrf.mxu0
    %v1796 = vadd.f32 %v1783, %v1795
    %v1797 = vpop.f32.mrf.mxu0
    %1798 = vdwg.mxu0
    %1799 = vmatpush.bf16.msra.mxu0 %v1486
    %1800 = vmatpush.bf16.msra.mxu0 %v1479
    %1801 = vmatpush.bf16.msra.mxu0 %v1472
    %1802 = vmatpush.bf16.msra.mxu0 %v1465
    %1803 = vmatpush.bf16.msra.mxu0 %v1458
    %1804 = vmatpush.bf16.msra.mxu0 %v1451
    %1805 = vmatpush.bf16.msra.mxu0 %v1444
    %1806 = vmatpush.bf16.msra.mxu0 %v1437
    %1807 = vmatmul.bf16.gmra.mxu0 %v600
    %v1808 = vpop.f32.mrf.mxu0
    %v1809 = vadd.f32 %v1796, %v1808
    %v1810 = vpop.f32.mrf.mxu0
    %1811 = vdwg.mxu0
    %1812 = vmatpush.bf16.msra.mxu0 %v1542
    %1813 = vmatpush.bf16.msra.mxu0 %v1535
    %1814 = vmatpush.bf16.msra.mxu0 %v1528
    %1815 = vmatpush.bf16.msra.mxu0 %v1521
    %1816 = vmatpush.bf16.msra.mxu0 %v1514
    %1817 = vmatpush.bf16.msra.mxu0 %v1507
    %1818 = vmatpush.bf16.msra.mxu0 %v1500
    %1819 = vmatpush.bf16.msra.mxu0 %v1493
    %1820 = vmatmul.bf16.gmra.mxu0 %v601
    %v1821 = vpop.f32.mrf.mxu0
    %v1822 = vadd.f32 %v1809, %v1821
    %v1823 = vpop.f32.mrf.mxu0
    %1824 = vdwg.mxu0
    %1825 = vmatpush.bf16.msra.mxu0 %v1375
    %1826 = vmatpush.bf16.msra.mxu0 %v1368
    %1827 = vmatpush.bf16.msra.mxu0 %v1361
    %1828 = vmatpush.bf16.msra.mxu0 %v1354
    %1829 = vmatpush.bf16.msra.mxu0 %v1347
    %1830 = vmatpush.bf16.msra.mxu0 %v1340
    %1831 = vmatpush.bf16.msra.mxu0 %v1333
    %1832 = vmatpush.bf16.msra.mxu0 %v1326
    %1833 = vmatmul.bf16.gmra.mxu0 %v598
    %v1834 = vpop.f32.mrf.mxu0
    %v1835 = vadd.f32 %v608, %v1834
    %v1836 = vpop.f32.mrf.mxu0
    %1837 = vdwg.mxu0
    %1838 = vmatpush.bf16.msra.mxu0 %v1431
    %1839 = vmatpush.bf16.msra.mxu0 %v1424
    %1840 = vmatpush.bf16.msra.mxu0 %v1417
    %1841 = vmatpush.bf16.msra.mxu0 %v1410
    %1842 = vmatpush.bf16.msra.mxu0 %v1403
    %1843 = vmatpush.bf16.msra.mxu0 %v1396
    %1844 = vmatpush.bf16.msra.mxu0 %v1389
    %1845 = vmatpush.bf16.msra.mxu0 %v1382
    %1846 = vmatmul.bf16.gmra.mxu0 %v599
    %v1847 = vpop.f32.mrf.mxu0
    %v1848 = vadd.f32 %v1835, %v1847
    %v1849 = vpop.f32.mrf.mxu0
    %1850 = vdwg.mxu0
    %1851 = vmatpush.bf16.msra.mxu0 %v1487
    %1852 = vmatpush.bf16.msra.mxu0 %v1480
    %1853 = vmatpush.bf16.msra.mxu0 %v1473
    %1854 = vmatpush.bf16.msra.mxu0 %v1466
    %1855 = vmatpush.bf16.msra.mxu0 %v1459
    %1856 = vmatpush.bf16.msra.mxu0 %v1452
    %1857 = vmatpush.bf16.msra.mxu0 %v1445
    %1858 = vmatpush.bf16.msra.mxu0 %v1438
    %1859 = vmatmul.bf16.gmra.mxu0 %v600
    %v1860 = vpop.f32.mrf.mxu0
    %v1861 = vadd.f32 %v1848, %v1860
    %v1862 = vpop.f32.mrf.mxu0
    %1863 = vdwg.mxu0
    %1864 = vmatpush.bf16.msra.mxu0 %v1543
    %1865 = vmatpush.bf16.msra.mxu0 %v1536
    %1866 = vmatpush.bf16.msra.mxu0 %v1529
    %1867 = vmatpush.bf16.msra.mxu0 %v1522
    %1868 = vmatpush.bf16.msra.mxu0 %v1515
    %1869 = vmatpush.bf16.msra.mxu0 %v1508
    %1870 = vmatpush.bf16.msra.mxu0 %v1501
    %1871 = vmatpush.bf16.msra.mxu0 %v1494
    %1872 = vmatmul.bf16.gmra.mxu0 %v601
    %v1873 = vpop.f32.mrf.mxu0
    %v1874 = vadd.f32 %v1861, %v1873
    %v1875 = vpop.f32.mrf.mxu0
    %1876 = vdwg.mxu0
    %1877 = vmatpush.bf16.msra.mxu0 %v1376
    %1878 = vmatpush.bf16.msra.mxu0 %v1369
    %1879 = vmatpush.bf16.msra.mxu0 %v1362
    %1880 = vmatpush.bf16.msra.mxu0 %v1355
    %1881 = vmatpush.bf16.msra.mxu0 %v1348
    %1882 = vmatpush.bf16.msra.mxu0 %v1341
    %1883 = vmatpush.bf16.msra.mxu0 %v1334
    %1884 = vmatpush.bf16.msra.mxu0 %v1327
    %1885 = vmatmul.bf16.gmra.mxu0 %v598
    %v1886 = vpop.f32.mrf.mxu0
    %v1887 = vadd.f32 %v609, %v1886
    %v1888 = vpop.f32.mrf.mxu0
    %1889 = vdwg.mxu0
    %1890 = vmatpush.bf16.msra.mxu0 %v1432
    %1891 = vmatpush.bf16.msra.mxu0 %v1425
    %1892 = vmatpush.bf16.msra.mxu0 %v1418
    %1893 = vmatpush.bf16.msra.mxu0 %v1411
    %1894 = vmatpush.bf16.msra.mxu0 %v1404
    %1895 = vmatpush.bf16.msra.mxu0 %v1397
    %1896 = vmatpush.bf16.msra.mxu0 %v1390
    %1897 = vmatpush.bf16.msra.mxu0 %v1383
    %1898 = vmatmul.bf16.gmra.mxu0 %v599
    %v1899 = vpop.f32.mrf.mxu0
    %v1900 = vadd.f32 %v1887, %v1899
    %v1901 = vpop.f32.mrf.mxu0
    %1902 = vdwg.mxu0
    %1903 = vmatpush.bf16.msra.mxu0 %v1488
    %1904 = vmatpush.bf16.msra.mxu0 %v1481
    %1905 = vmatpush.bf16.msra.mxu0 %v1474
    %1906 = vmatpush.bf16.msra.mxu0 %v1467
    %1907 = vmatpush.bf16.msra.mxu0 %v1460
    %1908 = vmatpush.bf16.msra.mxu0 %v1453
    %1909 = vmatpush.bf16.msra.mxu0 %v1446
    %1910 = vmatpush.bf16.msra.mxu0 %v1439
    %1911 = vmatmul.bf16.gmra.mxu0 %v600
    %v1912 = vpop.f32.mrf.mxu0
    %v1913 = vadd.f32 %v1900, %v1912
    %v1914 = vpop.f32.mrf.mxu0
    %1915 = vdwg.mxu0
    %1916 = vmatpush.bf16.msra.mxu0 %v1544
    %1917 = vmatpush.bf16.msra.mxu0 %v1537
    %1918 = vmatpush.bf16.msra.mxu0 %v1530
    %1919 = vmatpush.bf16.msra.mxu0 %v1523
    %1920 = vmatpush.bf16.msra.mxu0 %v1516
    %1921 = vmatpush.bf16.msra.mxu0 %v1509
    %1922 = vmatpush.bf16.msra.mxu0 %v1502
    %1923 = vmatpush.bf16.msra.mxu0 %v1495
    %1924 = vmatmul.bf16.gmra.mxu0 %v601
    %v1925 = vpop.f32.mrf.mxu0
    %v1926 = vadd.f32 %v1913, %v1925
    %v1927 = vpop.f32.mrf.mxu0
    %1928 = vdwg.mxu0
    %1929 = vmatpush.bf16.msra.mxu0 %v1377
    %1930 = vmatpush.bf16.msra.mxu0 %v1370
    %1931 = vmatpush.bf16.msra.mxu0 %v1363
    %1932 = vmatpush.bf16.msra.mxu0 %v1356
    %1933 = vmatpush.bf16.msra.mxu0 %v1349
    %1934 = vmatpush.bf16.msra.mxu0 %v1342
    %1935 = vmatpush.bf16.msra.mxu0 %v1335
    %1936 = vmatpush.bf16.msra.mxu0 %v1328
    %1937 = vmatmul.bf16.gmra.mxu0 %v598
    %v1938 = vpop.f32.mrf.mxu0
    %v1939 = vadd.f32 %v610, %v1938
    %v1940 = vpop.f32.mrf.mxu0
    %1941 = vdwg.mxu0
    %1942 = vmatpush.bf16.msra.mxu0 %v1433
    %1943 = vmatpush.bf16.msra.mxu0 %v1426
    %1944 = vmatpush.bf16.msra.mxu0 %v1419
    %1945 = vmatpush.bf16.msra.mxu0 %v1412
    %1946 = vmatpush.bf16.msra.mxu0 %v1405
    %1947 = vmatpush.bf16.msra.mxu0 %v1398
    %1948 = vmatpush.bf16.msra.mxu0 %v1391
    %1949 = vmatpush.bf16.msra.mxu0 %v1384
    %1950 = vmatmul.bf16.gmra.mxu0 %v599
    %v1951 = vpop.f32.mrf.mxu0
    %v1952 = vadd.f32 %v1939, %v1951
    %v1953 = vpop.f32.mrf.mxu0
    %1954 = vdwg.mxu0
    %1955 = vmatpush.bf16.msra.mxu0 %v1489
    %1956 = vmatpush.bf16.msra.mxu0 %v1482
    %1957 = vmatpush.bf16.msra.mxu0 %v1475
    %1958 = vmatpush.bf16.msra.mxu0 %v1468
    %1959 = vmatpush.bf16.msra.mxu0 %v1461
    %1960 = vmatpush.bf16.msra.mxu0 %v1454
    %1961 = vmatpush.bf16.msra.mxu0 %v1447
    %1962 = vmatpush.bf16.msra.mxu0 %v1440
    %1963 = vmatmul.bf16.gmra.mxu0 %v600
    %v1964 = vpop.f32.mrf.mxu0
    %v1965 = vadd.f32 %v1952, %v1964
    %v1966 = vpop.f32.mrf.mxu0
    %1967 = vdwg.mxu0
    %1968 = vmatpush.bf16.msra.mxu0 %v1545
    %1969 = vmatpush.bf16.msra.mxu0 %v1538
    %1970 = vmatpush.bf16.msra.mxu0 %v1531
    %1971 = vmatpush.bf16.msra.mxu0 %v1524
    %1972 = vmatpush.bf16.msra.mxu0 %v1517
    %1973 = vmatpush.bf16.msra.mxu0 %v1510
    %1974 = vmatpush.bf16.msra.mxu0 %v1503
    %1975 = vmatpush.bf16.msra.mxu0 %v1496
    %1976 = vmatmul.bf16.gmra.mxu0 %v601
    %v1977 = vpop.f32.mrf.mxu0
    %v1978 = vadd.f32 %v1965, %v1977
    %v1979 = vpop.f32.mrf.mxu0
    %1980 = vdwg.mxu0
    %1981 = vmatpush.bf16.msra.mxu0 %v1378
    %1982 = vmatpush.bf16.msra.mxu0 %v1371
    %1983 = vmatpush.bf16.msra.mxu0 %v1364
    %1984 = vmatpush.bf16.msra.mxu0 %v1357
    %1985 = vmatpush.bf16.msra.mxu0 %v1350
    %1986 = vmatpush.bf16.msra.mxu0 %v1343
    %1987 = vmatpush.bf16.msra.mxu0 %v1336
    %1988 = vmatpush.bf16.msra.mxu0 %v1329
    %1989 = vmatmul.bf16.gmra.mxu0 %v598
    %v1990 = vpop.f32.mrf.mxu0
    %v1991 = vadd.f32 %v611, %v1990
    %v1992 = vpop.f32.mrf.mxu0
    %1993 = vdwg.mxu0
    %1994 = vmatpush.bf16.msra.mxu0 %v1434
    %1995 = vmatpush.bf16.msra.mxu0 %v1427
    %1996 = vmatpush.bf16.msra.mxu0 %v1420
    %1997 = vmatpush.bf16.msra.mxu0 %v1413
    %1998 = vmatpush.bf16.msra.mxu0 %v1406
    %1999 = vmatpush.bf16.msra.mxu0 %v1399
    %2000 = vmatpush.bf16.msra.mxu0 %v1392
    %2001 = vmatpush.bf16.msra.mxu0 %v1385
    %2002 = vmatmul.bf16.gmra.mxu0 %v599
    %v2003 = vpop.f32.mrf.mxu0
    %v2004 = vadd.f32 %v1991, %v2003
    %v2005 = vpop.f32.mrf.mxu0
    %2006 = vdwg.mxu0
    %2007 = vmatpush.bf16.msra.mxu0 %v1490
    %2008 = vmatpush.bf16.msra.mxu0 %v1483
    %2009 = vmatpush.bf16.msra.mxu0 %v1476
    %2010 = vmatpush.bf16.msra.mxu0 %v1469
    %2011 = vmatpush.bf16.msra.mxu0 %v1462
    %2012 = vmatpush.bf16.msra.mxu0 %v1455
    %2013 = vmatpush.bf16.msra.mxu0 %v1448
    %2014 = vmatpush.bf16.msra.mxu0 %v1441
    %2015 = vmatmul.bf16.gmra.mxu0 %v600
    %v2016 = vpop.f32.mrf.mxu0
    %v2017 = vadd.f32 %v2004, %v2016
    %v2018 = vpop.f32.mrf.mxu0
    %2019 = vdwg.mxu0
    %2020 = vmatpush.bf16.msra.mxu0 %v1546
    %2021 = vmatpush.bf16.msra.mxu0 %v1539
    %2022 = vmatpush.bf16.msra.mxu0 %v1532
    %2023 = vmatpush.bf16.msra.mxu0 %v1525
    %2024 = vmatpush.bf16.msra.mxu0 %v1518
    %2025 = vmatpush.bf16.msra.mxu0 %v1511
    %2026 = vmatpush.bf16.msra.mxu0 %v1504
    %2027 = vmatpush.bf16.msra.mxu0 %v1497
    %2028 = vmatmul.bf16.gmra.mxu0 %v601
    %v2029 = vpop.f32.mrf.mxu0
    %v2030 = vadd.f32 %v2017, %v2029
    %v2031 = vpop.f32.mrf.mxu0
    %2032 = vdwg.mxu0
    %2033 = vmatpush.bf16.msra.mxu0 %v1379
    %2034 = vmatpush.bf16.msra.mxu0 %v1372
    %2035 = vmatpush.bf16.msra.mxu0 %v1365
    %2036 = vmatpush.bf16.msra.mxu0 %v1358
    %2037 = vmatpush.bf16.msra.mxu0 %v1351
    %2038 = vmatpush.bf16.msra.mxu0 %v1344
    %2039 = vmatpush.bf16.msra.mxu0 %v1337
    %2040 = vmatpush.bf16.msra.mxu0 %v1330
    %2041 = vmatmul.bf16.gmra.mxu0 %v598
    %v2042 = vpop.f32.mrf.mxu0
    %v2043 = vadd.f32 %v612, %v2042
    %v2044 = vpop.f32.mrf.mxu0
    %2045 = vdwg.mxu0
    %2046 = vmatpush.bf16.msra.mxu0 %v1435
    %2047 = vmatpush.bf16.msra.mxu0 %v1428
    %2048 = vmatpush.bf16.msra.mxu0 %v1421
    %2049 = vmatpush.bf16.msra.mxu0 %v1414
    %2050 = vmatpush.bf16.msra.mxu0 %v1407
    %2051 = vmatpush.bf16.msra.mxu0 %v1400
    %2052 = vmatpush.bf16.msra.mxu0 %v1393
    %2053 = vmatpush.bf16.msra.mxu0 %v1386
    %2054 = vmatmul.bf16.gmra.mxu0 %v599
    %v2055 = vpop.f32.mrf.mxu0
    %v2056 = vadd.f32 %v2043, %v2055
    %v2057 = vpop.f32.mrf.mxu0
    %2058 = vdwg.mxu0
    %2059 = vmatpush.bf16.msra.mxu0 %v1491
    %2060 = vmatpush.bf16.msra.mxu0 %v1484
    %2061 = vmatpush.bf16.msra.mxu0 %v1477
    %2062 = vmatpush.bf16.msra.mxu0 %v1470
    %2063 = vmatpush.bf16.msra.mxu0 %v1463
    %2064 = vmatpush.bf16.msra.mxu0 %v1456
    %2065 = vmatpush.bf16.msra.mxu0 %v1449
    %2066 = vmatpush.bf16.msra.mxu0 %v1442
    %2067 = vmatmul.bf16.gmra.mxu0 %v600
    %v2068 = vpop.f32.mrf.mxu0
    %v2069 = vadd.f32 %v2056, %v2068
    %v2070 = vpop.f32.mrf.mxu0
    %2071 = vdwg.mxu0
    %2072 = vmatpush.bf16.msra.mxu0 %v1547
    %2073 = vmatpush.bf16.msra.mxu0 %v1540
    %2074 = vmatpush.bf16.msra.mxu0 %v1533
    %2075 = vmatpush.bf16.msra.mxu0 %v1526
    %2076 = vmatpush.bf16.msra.mxu0 %v1519
    %2077 = vmatpush.bf16.msra.mxu0 %v1512
    %2078 = vmatpush.bf16.msra.mxu0 %v1505
    %2079 = vmatpush.bf16.msra.mxu0 %v1498
    %2080 = vmatmul.bf16.gmra.mxu0 %v601
    %v2081 = vpop.f32.mrf.mxu0
    %v2082 = vadd.f32 %v2069, %v2081
    %v2083 = vpop.f32.mrf.mxu0
    %2084 = vdwg.mxu0
    %2085 = vmatpush.bf16.msra.mxu0 %v1380
    %2086 = vmatpush.bf16.msra.mxu0 %v1373
    %2087 = vmatpush.bf16.msra.mxu0 %v1366
    %2088 = vmatpush.bf16.msra.mxu0 %v1359
    %2089 = vmatpush.bf16.msra.mxu0 %v1352
    %2090 = vmatpush.bf16.msra.mxu0 %v1345
    %2091 = vmatpush.bf16.msra.mxu0 %v1338
    %2092 = vmatpush.bf16.msra.mxu0 %v1331
    %2093 = vmatmul.bf16.gmra.mxu0 %v598
    %v2094 = vpop.f32.mrf.mxu0
    %v2095 = vadd.f32 %v613, %v2094
    %v2096 = vpop.f32.mrf.mxu0
    %2097 = vdwg.mxu0
    %2098 = vmatpush.bf16.msra.mxu0 %v1436
    %2099 = vmatpush.bf16.msra.mxu0 %v1429
    %2100 = vmatpush.bf16.msra.mxu0 %v1422
    %2101 = vmatpush.bf16.msra.mxu0 %v1415
    %2102 = vmatpush.bf16.msra.mxu0 %v1408
    %2103 = vmatpush.bf16.msra.mxu0 %v1401
    %2104 = vmatpush.bf16.msra.mxu0 %v1394
    %2105 = vmatpush.bf16.msra.mxu0 %v1387
    %2106 = vmatmul.bf16.gmra.mxu0 %v599
    %v2107 = vpop.f32.mrf.mxu0
    %v2108 = vadd.f32 %v2095, %v2107
    %v2109 = vpop.f32.mrf.mxu0
    %2110 = vdwg.mxu0
    %2111 = vmatpush.bf16.msra.mxu0 %v1492
    %2112 = vmatpush.bf16.msra.mxu0 %v1485
    %2113 = vmatpush.bf16.msra.mxu0 %v1478
    %2114 = vmatpush.bf16.msra.mxu0 %v1471
    %2115 = vmatpush.bf16.msra.mxu0 %v1464
    %2116 = vmatpush.bf16.msra.mxu0 %v1457
    %2117 = vmatpush.bf16.msra.mxu0 %v1450
    %2118 = vmatpush.bf16.msra.mxu0 %v1443
    %2119 = vmatmul.bf16.gmra.mxu0 %v600
    %v2120 = vpop.f32.mrf.mxu0
    %v2121 = vadd.f32 %v2108, %v2120
    %v2122 = vpop.f32.mrf.mxu0
    %2123 = vdwg.mxu0
    %2124 = vmatpush.bf16.msra.mxu0 %v1548
    %2125 = vmatpush.bf16.msra.mxu0 %v1541
    %2126 = vmatpush.bf16.msra.mxu0 %v1534
    %2127 = vmatpush.bf16.msra.mxu0 %v1527
    %2128 = vmatpush.bf16.msra.mxu0 %v1520
    %2129 = vmatpush.bf16.msra.mxu0 %v1513
    %2130 = vmatpush.bf16.msra.mxu0 %v1506
    %2131 = vmatpush.bf16.msra.mxu0 %v1499
    %2132 = vmatmul.bf16.gmra.mxu0 %v601
    %v2133 = vpop.f32.mrf.mxu0
    %v2134 = vadd.f32 %v2121, %v2133
    %v2135 = vpop.f32.mrf.mxu0
    %2136 = vdwg.mxu0
    %v2137 = vmax.f32 %v1822, 0.0
    %v2138 = vmax.f32 %v1874, 0.0
    %v2139 = vmax.f32 %v1926, 0.0
    %v2140 = vmax.f32 %v1978, 0.0
    %v2141 = vmax.f32 %v2030, 0.0
    %v2142 = vmax.f32 %v2082, 0.0
    %v2143 = vmax.f32 %v2134, 0.0
    %v2144 = vld [vmem:[#allocation6] sm:$0xf]
    %v2145 = vld [vmem:[#allocation6 + $0x14] sm:$0xf]
    %v2146 = vld [vmem:[#allocation6 + $0x28] sm:$0xf]
    %v2147 = vld [vmem:[#allocation6 + $0x3c] sm:$0xf]
    %v2148 = vld [vmem:[#allocation6 + $0x50] sm:$0xf]
    %v2149 = vld [vmem:[#allocation6 + $0x64] sm:$0xf]
    %v2150 = vld [vmem:[#allocation6 + $0x78] sm:$0xf]
    %v2151 = vld [vmem:[#allocation6 + $0x8c] sm:$0xf]
    %v2152 = vld [vmem:[#allocation6 + $0xa0] sm:$0xf]
    %v2153 = vld [vmem:[#allocation6 + $0xb4] sm:$0xf]
    %v2154 = vld [vmem:[#allocation6 + $0xc8] sm:$0xf]
    %v2155 = vld [vmem:[#allocation6 + $0xdc] sm:$0xf]
    %v2156 = vld [vmem:[#allocation6 + $0xf0] sm:$0xf]
    %v2157 = vld [vmem:[#allocation6 + $0x104] sm:$0xf]
    %v2158 = vld [vmem:[#allocation6 + $0x118] sm:$0xf]
    %v2159 = vld [vmem:[#allocation6 + $0x12c] sm:$0xf]
    %v2160 = vld [vmem:[#allocation6 + $0x140] sm:$0xf]
    %v2161 = vld [vmem:[#allocation6 + $0x154] sm:$0xf]
    %v2162 = vld [vmem:[#allocation6 + $0x168] sm:$0xf]
    %v2163 = vld [vmem:[#allocation6 + $0x17c] sm:$0xf]
    %v2164 = vld [vmem:[#allocation6 + $0x190] sm:$0xf]
    %v2165 = vld [vmem:[#allocation6 + $0x1a4] sm:$0xf]
    %v2166 = vld [vmem:[#allocation6 + $0x1b8] sm:$0xf]
    %v2167 = vld [vmem:[#allocation6 + $0x1cc] sm:$0xf]
    %v2168 = vld [vmem:[#allocation6 + $0x1e0] sm:$0xf]
    %v2169 = vld [vmem:[#allocation6 + $0x1f4] sm:$0xf]
    %v2170 = vld [vmem:[#allocation6 + $0x208] sm:$0xf]
    %v2171 = vld [vmem:[#allocation6 + $0x21c] sm:$0xf]
    %v2172 = vld [vmem:[#allocation6 + $0x230] sm:$0xf]
    %v2173 = vld [vmem:[#allocation6 + $0x244] sm:$0xf]
    %v2174 = vld [vmem:[#allocation6 + $0x258] sm:$0xf]
    %v2175 = vld [vmem:[#allocation6 + $0x26c] sm:$0xf]
    %v2176 = vld [vmem:[#allocation6 + $0x280] sm:$0xf]
    %v2177 = vld [vmem:[#allocation6 + $0x294] sm:$0xf]
    %v2178 = vld [vmem:[#allocation6 + $0x2a8] sm:$0xf]
    %v2179 = vld [vmem:[#allocation6 + $0x2bc] sm:$0xf]
    %v2180 = vld [vmem:[#allocation6 + $0x2d0] sm:$0xf]
    %v2181 = vld [vmem:[#allocation6 + $0x2e4] sm:$0xf]
    %v2182 = vld [vmem:[#allocation6 + $0x2f8] sm:$0xf]
    %v2183 = vld [vmem:[#allocation6 + $0x30c] sm:$0xf]
    %v2184 = vld [vmem:[#allocation6 + $0x320] sm:$0xf]
    %v2185 = vld [vmem:[#allocation6 + $0x334] sm:$0xf]
    %v2186 = vld [vmem:[#allocation6 + $0x348] sm:$0xf]
    %v2187 = vld [vmem:[#allocation6 + $0x35c] sm:$0xf]
    %v2188 = vld [vmem:[#allocation6 + $0x370] sm:$0xf]
    %v2189 = vld [vmem:[#allocation6 + $0x384] sm:$0xf]
    %v2190 = vld [vmem:[#allocation6 + $0x398] sm:$0xf]
    %v2191 = vld [vmem:[#allocation6 + $0x3ac] sm:$0xf]
    %v2192 = vld [vmem:[#allocation6 + $0x3c0] sm:$0xf]
    %v2193 = vld [vmem:[#allocation6 + $0x3d4] sm:$0xf]
    %v2194 = vld [vmem:[#allocation6 + $0x3e8] sm:$0xf]
    %v2195 = vld [vmem:[#allocation6 + $0x3fc] sm:$0xf]
    %v2196 = vld [vmem:[#allocation6 + $0x410] sm:$0xf]
    %v2197 = vld [vmem:[#allocation6 + $0x424] sm:$0xf]
    %v2198 = vld [vmem:[#allocation6 + $0x438] sm:$0xf]
    %v2199 = vld [vmem:[#allocation6 + $0x44c] sm:$0xf]
    %v2200 = vld [vmem:[#allocation6 + $0x460] sm:$0xf]
    %v2201 = vld [vmem:[#allocation6 + $0x474] sm:$0xf]
    %v2202 = vld [vmem:[#allocation6 + $0x488] sm:$0xf]
    %v2203 = vld [vmem:[#allocation6 + $0x49c] sm:$0xf]
    %v2204 = vld [vmem:[#allocation6 + $0x4b0] sm:$0xf]
    %v2205 = vld [vmem:[#allocation6 + $0x4c4] sm:$0xf]
    %v2206 = vld [vmem:[#allocation6 + $0x4d8] sm:$0xf]
    %v2207 = vld [vmem:[#allocation6 + $0x4ec] sm:$0xf]
    %v2208 = vld [vmem:[#allocation6 + $0x500] sm:$0xf]
    %v2209 = vld [vmem:[#allocation6 + $0x514] sm:$0xf]
    %v2210 = vld [vmem:[#allocation6 + $0x528] sm:$0xf]
    %v2211 = vld [vmem:[#allocation6 + $0x53c] sm:$0xf]
    %v2212 = vld [vmem:[#allocation6 + $0x550] sm:$0xf]
    %v2213 = vld [vmem:[#allocation6 + $0x564] sm:$0xf]
    %v2214 = vld [vmem:[#allocation6 + $0x578] sm:$0xf]
    %v2215 = vld [vmem:[#allocation6 + $0x58c] sm:$0xf]
    %v2216 = vld [vmem:[#allocation6 + $0x5a0] sm:$0xf]
    %v2217 = vld [vmem:[#allocation6 + $0x5b4] sm:$0xf]
    %v2218 = vld [vmem:[#allocation6 + $0x5c8] sm:$0xf]
    %v2219 = vld [vmem:[#allocation6 + $0x5dc] sm:$0xf]
    %v2220 = vld [vmem:[#allocation6 + $0x5f0] sm:$0xf]
    %v2221 = vld [vmem:[#allocation6 + $0x604] sm:$0xf]
    %v2222 = vld [vmem:[#allocation6 + $0x618] sm:$0xf]
    %v2223 = vld [vmem:[#allocation6 + $0x62c] sm:$0xf]
    %v2224 = vld [vmem:[#allocation6 + $0x640] sm:$0xf]
    %v2225 = vld [vmem:[#allocation6 + $0x654] sm:$0xf]
    %v2226 = vld [vmem:[#allocation6 + $0x668] sm:$0xf]
    %v2227 = vld [vmem:[#allocation6 + $0x67c] sm:$0xf]
    %v2228 = vld [vmem:[#allocation6 + $0x690] sm:$0xf]
    %v2229 = vld [vmem:[#allocation6 + $0x6a4] sm:$0xf]
    %v2230 = vld [vmem:[#allocation6 + $0x6b8] sm:$0xf]
    %v2231 = vld [vmem:[#allocation6 + $0x6cc] sm:$0xf]
    %v2232 = vld [vmem:[#allocation6 + $0x6e0] sm:$0xf]
    %v2233 = vld [vmem:[#allocation6 + $0x6f4] sm:$0xf]
    %v2234 = vld [vmem:[#allocation6 + $0x708] sm:$0xf]
    %v2235 = vld [vmem:[#allocation6 + $0x71c] sm:$0xf]
    %v2236 = vld [vmem:[#allocation6 + $0x730] sm:$0xf]
    %v2237 = vld [vmem:[#allocation6 + $0x744] sm:$0xf]
    %v2238 = vld [vmem:[#allocation6 + $0x758] sm:$0xf]
    %v2239 = vld [vmem:[#allocation6 + $0x76c] sm:$0xf]
    %v2240 = vld [vmem:[#allocation6 + $0x780] sm:$0xf]
    %v2241 = vld [vmem:[#allocation6 + $0x794] sm:$0xf]
    %v2242 = vld [vmem:[#allocation6 + $0x7a8] sm:$0xf]
    %v2243 = vld [vmem:[#allocation6 + $0x7bc] sm:$0xf]
    %v2244 = vld [vmem:[#allocation6 + $0x7d0] sm:$0xf]
    %v2245 = vld [vmem:[#allocation6 + $0x7e4] sm:$0xf]
    %v2246 = vld [vmem:[#allocation6 + $0x7f8] sm:$0xf]
    %v2247 = vld [vmem:[#allocation6 + $0x80c] sm:$0xf]
    %v2248 = vld [vmem:[#allocation6 + $0x820] sm:$0xf]
    %v2249 = vld [vmem:[#allocation6 + $0x834] sm:$0xf]
    %v2250 = vld [vmem:[#allocation6 + $0x848] sm:$0xf]
    %v2251 = vld [vmem:[#allocation6 + $0x85c] sm:$0xf]
    %v2252 = vld [vmem:[#allocation6 + $0x870] sm:$0xf]
    %v2253 = vld [vmem:[#allocation6 + $0x884] sm:$0xf]
    %v2254 = vld [vmem:[#allocation6 + $0x898] sm:$0xf]
    %v2255 = vld [vmem:[#allocation6 + $0x8ac] sm:$0xf]
    %v2256 = vpack.c.bf16 %v2137, %v2137
    %v2257 = vpack.c.bf16 %v2138, %v2138
    %v2258 = vpack.c.bf16 %v2139, %v2139
    %v2259 = vpack.c.bf16 %v2140, %v2140
    %v2260 = vpack.c.bf16 %v2141, %v2141
    %v2261 = vpack.c.bf16 %v2142, %v2142
    %v2262 = vpack.c.bf16 %v2143, %v2143
    %v2263 = vld [vmem:[#allocation7 + $0x2] ss:$0 sm:$0xff]
    %v2376 = vunpack.c.l.b16 %v2144
    %v2377 = vunpack.c.l.b16 %v2145
    %v2378 = vunpack.c.l.b16 %v2146
    %v2379 = vunpack.c.l.b16 %v2147
    %v2380 = vunpack.c.l.b16 %v2148
    %v2381 = vunpack.c.l.b16 %v2149
    %v2382 = vunpack.c.l.b16 %v2150
    %v2383 = vunpack.c.l.b16 %v2151
    %v2384 = vunpack.c.l.b16 %v2152
    %v2385 = vunpack.c.l.b16 %v2153
    %v2386 = vunpack.c.l.b16 %v2154
    %v2387 = vunpack.c.l.b16 %v2155
    %v2388 = vunpack.c.l.b16 %v2156
    %v2389 = vunpack.c.l.b16 %v2157
    %v2390 = vunpack.c.l.b16 %v2158
    %v2391 = vunpack.c.l.b16 %v2159
    %v2392 = vunpack.c.l.b16 %v2160
    %v2393 = vunpack.c.l.b16 %v2161
    %v2394 = vunpack.c.l.b16 %v2162
    %v2395 = vunpack.c.l.b16 %v2163
    %v2396 = vunpack.c.l.b16 %v2164
    %v2397 = vunpack.c.l.b16 %v2165
    %v2398 = vunpack.c.l.b16 %v2166
    %v2399 = vunpack.c.l.b16 %v2167
    %v2400 = vunpack.c.l.b16 %v2168
    %v2401 = vunpack.c.l.b16 %v2169
    %v2402 = vunpack.c.l.b16 %v2170
    %v2403 = vunpack.c.l.b16 %v2171
    %v2404 = vunpack.c.l.b16 %v2172
    %v2405 = vunpack.c.l.b16 %v2173
    %v2406 = vunpack.c.l.b16 %v2174
    %v2407 = vunpack.c.l.b16 %v2175
    %v2408 = vunpack.c.l.b16 %v2176
    %v2409 = vunpack.c.l.b16 %v2177
    %v2410 = vunpack.c.l.b16 %v2178
    %v2411 = vunpack.c.l.b16 %v2179
    %v2412 = vunpack.c.l.b16 %v2180
    %v2413 = vunpack.c.l.b16 %v2181
    %v2414 = vunpack.c.l.b16 %v2182
    %v2415 = vunpack.c.l.b16 %v2183
    %v2416 = vunpack.c.l.b16 %v2184
    %v2417 = vunpack.c.l.b16 %v2185
    %v2418 = vunpack.c.l.b16 %v2186
    %v2419 = vunpack.c.l.b16 %v2187
    %v2420 = vunpack.c.l.b16 %v2188
    %v2421 = vunpack.c.l.b16 %v2189
    %v2422 = vunpack.c.l.b16 %v2190
    %v2423 = vunpack.c.l.b16 %v2191
    %v2424 = vunpack.c.l.b16 %v2192
    %v2425 = vunpack.c.l.b16 %v2193
    %v2426 = vunpack.c.l.b16 %v2194
    %v2427 = vunpack.c.l.b16 %v2195
    %v2428 = vunpack.c.l.b16 %v2196
    %v2429 = vunpack.c.l.b16 %v2197
    %v2430 = vunpack.c.l.b16 %v2198
    %v2431 = vunpack.c.l.b16 %v2199
    %v2432 = vunpack.c.l.b16 %v2200
    %v2433 = vunpack.c.l.b16 %v2201
    %v2434 = vunpack.c.l.b16 %v2202
    %v2435 = vunpack.c.l.b16 %v2203
    %v2436 = vunpack.c.l.b16 %v2204
    %v2437 = vunpack.c.l.b16 %v2205
    %v2438 = vunpack.c.l.b16 %v2206
    %v2439 = vunpack.c.l.b16 %v2207
    %v2440 = vunpack.c.l.b16 %v2208
    %v2441 = vunpack.c.l.b16 %v2209
    %v2442 = vunpack.c.l.b16 %v2210
    %v2443 = vunpack.c.l.b16 %v2211
    %v2444 = vunpack.c.l.b16 %v2212
    %v2445 = vunpack.c.l.b16 %v2213
    %v2446 = vunpack.c.l.b16 %v2214
    %v2447 = vunpack.c.l.b16 %v2215
    %v2448 = vunpack.c.l.b16 %v2216
    %v2449 = vunpack.c.l.b16 %v2217
    %v2450 = vunpack.c.l.b16 %v2218
    %v2451 = vunpack.c.l.b16 %v2219
    %v2452 = vunpack.c.l.b16 %v2220
    %v2453 = vunpack.c.l.b16 %v2221
    %v2454 = vunpack.c.l.b16 %v2222
    %v2455 = vunpack.c.l.b16 %v2223
    %v2456 = vunpack.c.l.b16 %v2224
    %v2457 = vunpack.c.l.b16 %v2225
    %v2458 = vunpack.c.l.b16 %v2226
    %v2459 = vunpack.c.l.b16 %v2227
    %v2460 = vunpack.c.l.b16 %v2228
    %v2461 = vunpack.c.l.b16 %v2229
    %v2462 = vunpack.c.l.b16 %v2230
    %v2463 = vunpack.c.l.b16 %v2231
    %v2464 = vunpack.c.l.b16 %v2232
    %v2465 = vunpack.c.l.b16 %v2233
    %v2466 = vunpack.c.l.b16 %v2234
    %v2467 = vunpack.c.l.b16 %v2235
    %v2468 = vunpack.c.l.b16 %v2236
    %v2469 = vunpack.c.l.b16 %v2237
    %v2470 = vunpack.c.l.b16 %v2238
    %v2471 = vunpack.c.l.b16 %v2239
    %v2472 = vunpack.c.l.b16 %v2240
    %v2473 = vunpack.c.l.b16 %v2241
    %v2474 = vunpack.c.l.b16 %v2242
    %v2475 = vunpack.c.l.b16 %v2243
    %v2476 = vunpack.c.l.b16 %v2244
    %v2477 = vunpack.c.l.b16 %v2245
    %v2478 = vunpack.c.l.b16 %v2246
    %v2479 = vunpack.c.l.b16 %v2247
    %v2480 = vunpack.c.l.b16 %v2248
    %v2481 = vunpack.c.l.b16 %v2249
    %v2482 = vunpack.c.l.b16 %v2250
    %v2483 = vunpack.c.l.b16 %v2251
    %v2484 = vunpack.c.l.b16 %v2252
    %v2485 = vunpack.c.l.b16 %v2253
    %v2486 = vunpack.c.l.b16 %v2254
    %v2487 = vunpack.c.l.b16 %v2255
    %v2488 = vpack.c.b16 %v2377, %v2376
    %v2489 = vpack.c.b16 %v2379, %v2378
    %v2490 = vpack.c.b16 %v2381, %v2380
    %v2491 = vpack.c.b16 %v2383, %v2382
    %v2492 = vpack.c.b16 %v2385, %v2384
    %v2493 = vpack.c.b16 %v2387, %v2386
    %v2494 = vpack.c.b16 %v2389, %v2388
    %v2495 = vpack.c.b16 %v2391, %v2390
    %v2496 = vpack.c.b16 %v2393, %v2392
    %v2497 = vpack.c.b16 %v2395, %v2394
    %v2498 = vpack.c.b16 %v2397, %v2396
    %v2499 = vpack.c.b16 %v2399, %v2398
    %v2500 = vpack.c.b16 %v2401, %v2400
    %v2501 = vpack.c.b16 %v2403, %v2402
    %v2502 = vpack.c.b16 %v2405, %v2404
    %v2503 = vpack.c.b16 %v2407, %v2406
    %v2504 = vpack.c.b16 %v2409, %v2408
    %v2505 = vpack.c.b16 %v2411, %v2410
    %v2506 = vpack.c.b16 %v2413, %v2412
    %v2507 = vpack.c.b16 %v2415, %v2414
    %v2508 = vpack.c.b16 %v2417, %v2416
    %v2509 = vpack.c.b16 %v2419, %v2418
    %v2510 = vpack.c.b16 %v2421, %v2420
    %v2511 = vpack.c.b16 %v2423, %v2422
    %v2512 = vpack.c.b16 %v2425, %v2424
    %v2513 = vpack.c.b16 %v2427, %v2426
    %v2514 = vpack.c.b16 %v2429, %v2428
    %v2515 = vpack.c.b16 %v2431, %v2430
    %v2516 = vpack.c.b16 %v2433, %v2432
    %v2517 = vpack.c.b16 %v2435, %v2434
    %v2518 = vpack.c.b16 %v2437, %v2436
    %v2519 = vpack.c.b16 %v2439, %v2438
    %v2520 = vpack.c.b16 %v2441, %v2440
    %v2521 = vpack.c.b16 %v2443, %v2442
    %v2522 = vpack.c.b16 %v2445, %v2444
    %v2523 = vpack.c.b16 %v2447, %v2446
    %v2524 = vpack.c.b16 %v2449, %v2448
    %v2525 = vpack.c.b16 %v2451, %v2450
    %v2526 = vpack.c.b16 %v2453, %v2452
    %v2527 = vpack.c.b16 %v2455, %v2454
    %v2528 = vpack.c.b16 %v2457, %v2456
    %v2529 = vpack.c.b16 %v2459, %v2458
    %v2530 = vpack.c.b16 %v2461, %v2460
    %v2531 = vpack.c.b16 %v2463, %v2462
    %v2532 = vpack.c.b16 %v2465, %v2464
    %v2533 = vpack.c.b16 %v2467, %v2466
    %v2534 = vpack.c.b16 %v2469, %v2468
    %v2535 = vpack.c.b16 %v2471, %v2470
    %v2536 = vpack.c.b16 %v2473, %v2472
    %v2537 = vpack.c.b16 %v2475, %v2474
    %v2538 = vpack.c.b16 %v2477, %v2476
    %v2539 = vpack.c.b16 %v2479, %v2478
    %v2540 = vpack.c.b16 %v2481, %v2480
    %v2541 = vpack.c.b16 %v2483, %v2482
    %v2542 = vpack.c.b16 %v2485, %v2484
    %v2543 = vpack.c.b16 %v2487, %v2486
    %2600 = vmatpush.bf16.msra.mxu0 %v2495
    %2601 = vmatpush.bf16.msra.mxu0 %v2494
    %2602 = vmatpush.bf16.msra.mxu0 %v2493
    %2603 = vmatpush.bf16.msra.mxu0 %v2492
    %2604 = vmatpush.bf16.msra.mxu0 %v2491
    %2605 = vmatpush.bf16.msra.mxu0 %v2490
    %2606 = vmatpush.bf16.msra.mxu0 %v2489
    %2607 = vmatpush.bf16.msra.mxu0 %v2488
    %2608 = vmatmul.bf16.gmra.mxu0 %v2256
    %v2609 = vpop.f32.mrf.mxu0
    %v2610 = vadd.f32 %v2263, %v2609
    %v2611 = vpop.f32.mrf.mxu0
    %2612 = vdwg.mxu0
    %2613 = vmatpush.bf16.msra.mxu0 %v2503
    %2614 = vmatpush.bf16.msra.mxu0 %v2502
    %2615 = vmatpush.bf16.msra.mxu0 %v2501
    %2616 = vmatpush.bf16.msra.mxu0 %v2500
    %2617 = vmatpush.bf16.msra.mxu0 %v2499
    %2618 = vmatpush.bf16.msra.mxu0 %v2498
    %2619 = vmatpush.bf16.msra.mxu0 %v2497
    %2620 = vmatpush.bf16.msra.mxu0 %v2496
    %2621 = vmatmul.bf16.gmra.mxu0 %v2257
    %v2622 = vpop.f32.mrf.mxu0
    %v2623 = vadd.f32 %v2610, %v2622
    %v2624 = vpop.f32.mrf.mxu0
    %2625 = vdwg.mxu0
    %2626 = vmatpush.bf16.msra.mxu0 %v2511
    %2627 = vmatpush.bf16.msra.mxu0 %v2510
    %2628 = vmatpush.bf16.msra.mxu0 %v2509
    %2629 = vmatpush.bf16.msra.mxu0 %v2508
    %2630 = vmatpush.bf16.msra.mxu0 %v2507
    %2631 = vmatpush.bf16.msra.mxu0 %v2506
    %2632 = vmatpush.bf16.msra.mxu0 %v2505
    %2633 = vmatpush.bf16.msra.mxu0 %v2504
    %2634 = vmatmul.bf16.gmra.mxu0 %v2258
    %v2635 = vpop.f32.mrf.mxu0
    %v2636 = vadd.f32 %v2623, %v2635
    %v2637 = vpop.f32.mrf.mxu0
    %2638 = vdwg.mxu0
    %2639 = vmatpush.bf16.msra.mxu0 %v2519
    %2640 = vmatpush.bf16.msra.mxu0 %v2518
    %2641 = vmatpush.bf16.msra.mxu0 %v2517
    %2642 = vmatpush.bf16.msra.mxu0 %v2516
    %2643 = vmatpush.bf16.msra.mxu0 %v2515
    %2644 = vmatpush.bf16.msra.mxu0 %v2514
    %2645 = vmatpush.bf16.msra.mxu0 %v2513
    %2646 = vmatpush.bf16.msra.mxu0 %v2512
    %2647 = vmatmul.bf16.gmra.mxu0 %v2259
    %v2648 = vpop.f32.mrf.mxu0
    %v2649 = vadd.f32 %v2636, %v2648
    %v2650 = vpop.f32.mrf.mxu0
    %2651 = vdwg.mxu0
    %2652 = vmatpush.bf16.msra.mxu0 %v2527
    %2653 = vmatpush.bf16.msra.mxu0 %v2526
    %2654 = vmatpush.bf16.msra.mxu0 %v2525
    %2655 = vmatpush.bf16.msra.mxu0 %v2524
    %2656 = vmatpush.bf16.msra.mxu0 %v2523
    %2657 = vmatpush.bf16.msra.mxu0 %v2522
    %2658 = vmatpush.bf16.msra.mxu0 %v2521
    %2659 = vmatpush.bf16.msra.mxu0 %v2520
    %2660 = vmatmul.bf16.gmra.mxu0 %v2260
    %v2661 = vpop.f32.mrf.mxu0
    %v2662 = vadd.f32 %v2649, %v2661
    %v2663 = vpop.f32.mrf.mxu0
    %2664 = vdwg.mxu0
    %2665 = vmatpush.bf16.msra.mxu0 %v2535
    %2666 = vmatpush.bf16.msra.mxu0 %v2534
    %2667 = vmatpush.bf16.msra.mxu0 %v2533
    %2668 = vmatpush.bf16.msra.mxu0 %v2532
    %2669 = vmatpush.bf16.msra.mxu0 %v2531
    %2670 = vmatpush.bf16.msra.mxu0 %v2530
    %2671 = vmatpush.bf16.msra.mxu0 %v2529
    %2672 = vmatpush.bf16.msra.mxu0 %v2528
    %2673 = vmatmul.bf16.gmra.mxu0 %v2261
    %v2674 = vpop.f32.mrf.mxu0
    %v2675 = vadd.f32 %v2662, %v2674
    %v2676 = vpop.f32.mrf.mxu0
    %2677 = vdwg.mxu0
    %2678 = vmatpush.bf16.msra.mxu0 %v2543
    %2679 = vmatpush.bf16.msra.mxu0 %v2542
    %2680 = vmatpush.bf16.msra.mxu0 %v2541
    %2681 = vmatpush.bf16.msra.mxu0 %v2540
    %2682 = vmatpush.bf16.msra.mxu0 %v2539
    %2683 = vmatpush.bf16.msra.mxu0 %v2538
    %2684 = vmatpush.bf16.msra.mxu0 %v2537
    %2685 = vmatpush.bf16.msra.mxu0 %v2536
    %2686 = vmatmul.bf16.gmra.mxu0 %v2262
    %v2687 = vpop.f32.mrf.mxu0
    %v2688 = vadd.f32 %v2675, %v2687
    %v2689 = vpop.f32.mrf.mxu0
    %2690 = vdwg.mxu0
    %v2691 = vmax.f32 %v2688, 0.0
    %v2692 = vld [vmem:[#allocation2 + $0x10] sm:$0xff]
    %v2693 = vld [vmem:[#allocation2 + $0x48] sm:$0xff]
    %v2694 = vld [vmem:[#allocation2 + $0x80] sm:$0xff]
    %v2695 = vld [vmem:[#allocation2 + $0xb8] sm:$0xff]
    %v2696 = vld [vmem:[#allocation2 + $0xf0] sm:$0xff]
    %v2697 = vld [vmem:[#allocation2 + $0x128] sm:$0xff]
    %v2698 = vld [vmem:[#allocation2 + $0x160] sm:$0xff]
    %v2699 = vld [vmem:[#allocation2 + $0x198] sm:$0xff]
    %v2700 = vld [vmem:[#allocation2 + $0x1d0] sm:$0xff]
    %v2701 = vld [vmem:[#allocation2 + $0x208] sm:$0xff]
    %v2702 = vld [vmem:[#allocation2 + $0x240] sm:$0xff]
    %v2703 = vld [vmem:[#allocation2 + $0x278] sm:$0xff]
    %v2704 = vld [vmem:[#allocation2 + $0x2b0] sm:$0xff]
    %v2705 = vld [vmem:[#allocation2 + $0x2e8] sm:$0xff]
    %v2706 = vld [vmem:[#allocation2 + $0x320] sm:$0xff]
    %v2707 = vld [vmem:[#allocation2 + $0x358] sm:$0xff]
    %v2708 = vpack.c.bf16 %v2691, %v2691
    %s2709 = scalar_lea.vmem [#allocation7], 3
    %v2710 = vld [vmem:[%s2709] ss:$8 sm:$0x3]
    %v2712 = vperm.slane %v2710, 0
    %v2713 = vperm.slane %v2710, 1
    %v2732 = vunpack.c.l.b16 %v2692
    %v2733 = vunpack.c.h.b16 %v2692
    %v2734 = vunpack.c.l.b16 %v2693
    %v2735 = vunpack.c.h.b16 %v2693
    %v2736 = vunpack.c.l.b16 %v2694
    %v2737 = vunpack.c.h.b16 %v2694
    %v2738 = vunpack.c.l.b16 %v2695
    %v2739 = vunpack.c.h.b16 %v2695
    %v2740 = vunpack.c.l.b16 %v2696
    %v2741 = vunpack.c.h.b16 %v2696
    %v2742 = vunpack.c.l.b16 %v2697
    %v2743 = vunpack.c.h.b16 %v2697
    %v2744 = vunpack.c.l.b16 %v2698
    %v2745 = vunpack.c.h.b16 %v2698
    %v2746 = vunpack.c.l.b16 %v2699
    %v2747 = vunpack.c.h.b16 %v2699
    %v2748 = vunpack.c.l.b16 %v2700
    %v2749 = vunpack.c.h.b16 %v2700
    %v2750 = vunpack.c.l.b16 %v2701
    %v2751 = vunpack.c.h.b16 %v2701
    %v2752 = vunpack.c.l.b16 %v2702
    %v2753 = vunpack.c.h.b16 %v2702
    %v2754 = vunpack.c.l.b16 %v2703
    %v2755 = vunpack.c.h.b16 %v2703
    %v2756 = vunpack.c.l.b16 %v2704
    %v2757 = vunpack.c.h.b16 %v2704
    %v2758 = vunpack.c.l.b16 %v2705
    %v2759 = vunpack.c.h.b16 %v2705
    %v2760 = vunpack.c.l.b16 %v2706
    %v2761 = vunpack.c.h.b16 %v2706
    %v2762 = vunpack.c.l.b16 %v2707
    %v2763 = vunpack.c.h.b16 %v2707
    %v2764 = vpack.c.b16 %v2734, %v2732
    %v2765 = vpack.c.b16 %v2735, %v2733
    %v2766 = vpack.c.b16 %v2738, %v2736
    %v2767 = vpack.c.b16 %v2739, %v2737
    %v2768 = vpack.c.b16 %v2742, %v2740
    %v2769 = vpack.c.b16 %v2743, %v2741
    %v2770 = vpack.c.b16 %v2746, %v2744
    %v2771 = vpack.c.b16 %v2747, %v2745
    %v2772 = vpack.c.b16 %v2750, %v2748
    %v2773 = vpack.c.b16 %v2751, %v2749
    %v2774 = vpack.c.b16 %v2754, %v2752
    %v2775 = vpack.c.b16 %v2755, %v2753
    %v2776 = vpack.c.b16 %v2758, %v2756
    %v2777 = vpack.c.b16 %v2759, %v2757
    %v2778 = vpack.c.b16 %v2762, %v2760
    %v2779 = vpack.c.b16 %v2763, %v2761
    %2796 = vmatpush.bf16.msra.mxu0 %v2778
    %2797 = vmatpush.bf16.msra.mxu0 %v2776
    %2798 = vmatpush.bf16.msra.mxu0 %v2774
    %2799 = vmatpush.bf16.msra.mxu0 %v2772
    %2800 = vmatpush.bf16.msra.mxu0 %v2770
    %2801 = vmatpush.bf16.msra.mxu0 %v2768
    %2802 = vmatpush.bf16.msra.mxu0 %v2766
    %2803 = vmatpush.bf16.msra.mxu0 %v2764
    %2804 = vmatmul.bf16.gmra.mxu0 %v2708
    %v2805 = vpop.f32.mrf.mxu0
    %v2806 = vadd.f32 %v2712, %v2805
    %v2807 = vpop.f32.mrf.mxu0
    %2808 = vdwg.mxu0
    %2809 = vmatpush.bf16.msra.mxu0 %v2779
    %2810 = vmatpush.bf16.msra.mxu0 %v2777
    %2811 = vmatpush.bf16.msra.mxu0 %v2775
    %2812 = vmatpush.bf16.msra.mxu0 %v2773
    %2813 = vmatpush.bf16.msra.mxu0 %v2771
    %2814 = vmatpush.bf16.msra.mxu0 %v2769
    %2815 = vmatpush.bf16.msra.mxu0 %v2767
    %2816 = vmatpush.bf16.msra.mxu0 %v2765
    %2817 = vmatmul.bf16.gmra.mxu0 %v2708
    %v2818 = vpop.f32.mrf.mxu0
    %v2819 = vadd.f32 %v2713, %v2818
    %v2820 = vpop.f32.mrf.mxu0
    %2821 = vdwg.mxu0
    %v2822 = vmul.f32 %v2819, 0.5
    %v2823 = vmul.f32 %v2822, 1.442695
    %v2824 = vpow.pop %v2823
    %v2825 = vmul.f32 %v2824, %v82
    %v2826 = vadd.f32 %v2806, %v2825
    %v2827 = vld [vmem:[#allocation2 + $0x18] sm:$0xf]
    %v2828 = vld [vmem:[#allocation2 + $0x50] sm:$0xf]
    %v2829 = vld [vmem:[#allocation2 + $0x88] sm:$0xf]
    %v2830 = vld [vmem:[#allocation2 + $0xc0] sm:$0xf]
    %v2831 = vld [vmem:[#allocation2 + $0xf8] sm:$0xf]
    %v2832 = vld [vmem:[#allocation2 + $0x130] sm:$0xf]
    %v2833 = vld [vmem:[#allocation2 + $0x168] sm:$0xf]
    %v2834 = vld [vmem:[#allocation2 + $0x1a0] sm:$0xf]
    %v2835 = vld [vmem:[#allocation2 + $0x1d8] sm:$0xf]
    %v2836 = vld [vmem:[#allocation2 + $0x210] sm:$0xf]
    %v2837 = vld [vmem:[#allocation2 + $0x248] sm:$0xf]
    %v2838 = vld [vmem:[#allocation2 + $0x280] sm:$0xf]
    %v2839 = vld [vmem:[#allocation2 + $0x2b8] sm:$0xf]
    %v2840 = vld [vmem:[#allocation2 + $0x2f0] sm:$0xf]
    %v2841 = vld [vmem:[#allocation2 + $0x328] sm:$0xf]
    %v2842 = vld [vmem:[#allocation2 + $0x360] sm:$0xf]
    %v2843 = vpack.c.bf16 %v2826, %v2826
    %v2844 = vld [vmem:[#allocation7 + $0x4] ss:$0 sm:$0xff]
    %v2861 = vunpack.c.l.b16 %v2827
    %v2862 = vunpack.c.l.b16 %v2828
    %v2863 = vunpack.c.l.b16 %v2829
    %v2864 = vunpack.c.l.b16 %v2830
    %v2865 = vunpack.c.l.b16 %v2831
    %v2866 = vunpack.c.l.b16 %v2832
    %v2867 = vunpack.c.l.b16 %v2833
    %v2868 = vunpack.c.l.b16 %v2834
    %v2869 = vunpack.c.l.b16 %v2835
    %v2870 = vunpack.c.l.b16 %v2836
    %v2871 = vunpack.c.l.b16 %v2837
    %v2872 = vunpack.c.l.b16 %v2838
    %v2873 = vunpack.c.l.b16 %v2839
    %v2874 = vunpack.c.l.b16 %v2840
    %v2875 = vunpack.c.l.b16 %v2841
    %v2876 = vunpack.c.l.b16 %v2842
    %v2877 = vpack.c.b16 %v2862, %v2861
    %v2878 = vpack.c.b16 %v2864, %v2863
    %v2879 = vpack.c.b16 %v2866, %v2865
    %v2880 = vpack.c.b16 %v2868, %v2867
    %v2881 = vpack.c.b16 %v2870, %v2869
    %v2882 = vpack.c.b16 %v2872, %v2871
    %v2883 = vpack.c.b16 %v2874, %v2873
    %v2884 = vpack.c.b16 %v2876, %v2875
    %2893 = vmatpush.bf16.msra.mxu0 %v2884
    %2894 = vmatpush.bf16.msra.mxu0 %v2883
    %2895 = vmatpush.bf16.msra.mxu0 %v2882
    %2896 = vmatpush.bf16.msra.mxu0 %v2881
    %2897 = vmatpush.bf16.msra.mxu0 %v2880
    %2898 = vmatpush.bf16.msra.mxu0 %v2879
    %2899 = vmatpush.bf16.msra.mxu0 %v2878
    %2900 = vmatpush.bf16.msra.mxu0 %v2877
    %2901 = vmatmul.bf16.gmra.mxu0 %v2843
    %v2902 = vpop.f32.mrf.mxu0
    %v2903 = vadd.f32 %v2844, %v2902
    %v2904 = vpop.f32.mrf.mxu0
    %2905 = vdwg.mxu0
    %v2906 = vmax.f32 %v2903, 0.0
    %v2907 = vld [vmem:[#allocation2 + $0x1c] sm:$0xff]
    %v2908 = vld [vmem:[#allocation2 + $0x24] sm:$0xff]
    %v2909 = vld [vmem:[#allocation2 + $0x2c] sm:$0xff]
    %v2910 = vld [vmem:[#allocation2 + $0x34] sm:$0xf]
    %v2911 = vld [vmem:[#allocation2 + $0x54] sm:$0xff]
    %v2912 = vld [vmem:[#allocation2 + $0x5c] sm:$0xff]
    %v2913 = vld [vmem:[#allocation2 + $0x64] sm:$0xff]
    %v2914 = vld [vmem:[#allocation2 + $0x6c] sm:$0xf]
    %v2915 = vld [vmem:[#allocation2 + $0x8c] sm:$0xff]
    %v2916 = vld [vmem:[#allocation2 + $0x94] sm:$0xff]
    %v2917 = vld [vmem:[#allocation2 + $0x9c] sm:$0xff]
    %v2918 = vld [vmem:[#allocation2 + $0xa4] sm:$0xf]
    %v2919 = vld [vmem:[#allocation2 + $0xc4] sm:$0xff]
    %v2920 = vld [vmem:[#allocation2 + $0xcc] sm:$0xff]
    %v2921 = vld [vmem:[#allocation2 + $0xd4] sm:$0xff]
    %v2922 = vld [vmem:[#allocation2 + $0xdc] sm:$0xf]
    %v2923 = vld [vmem:[#allocation2 + $0xfc] sm:$0xff]
    %v2924 = vld [vmem:[#allocation2 + $0x104] sm:$0xff]
    %v2925 = vld [vmem:[#allocation2 + $0x10c] sm:$0xff]
    %v2926 = vld [vmem:[#allocation2 + $0x114] sm:$0xf]
    %v2927 = vld [vmem:[#allocation2 + $0x134] sm:$0xff]
    %v2928 = vld [vmem:[#allocation2 + $0x13c] sm:$0xff]
    %v2929 = vld [vmem:[#allocation2 + $0x144] sm:$0xff]
    %v2930 = vld [vmem:[#allocation2 + $0x14c] sm:$0xf]
    %v2931 = vld [vmem:[#allocation2 + $0x16c] sm:$0xff]
    %v2932 = vld [vmem:[#allocation2 + $0x174] sm:$0xff]
    %v2933 = vld [vmem:[#allocation2 + $0x17c] sm:$0xff]
    %v2934 = vld [vmem:[#allocation2 + $0x184] sm:$0xf]
    %v2935 = vld [vmem:[#allocation2 + $0x1a4] sm:$0xff]
    %v2936 = vld [vmem:[#allocation2 + $0x1ac] sm:$0xff]
    %v2937 = vld [vmem:[#allocation2 + $0x1b4] sm:$0xff]
    %v2938 = vld [vmem:[#allocation2 + $0x1bc] sm:$0xf]
    %v2939 = vld [vmem:[#allocation2 + $0x1dc] sm:$0xff]
    %v2940 = vld [vmem:[#allocation2 + $0x1e4] sm:$0xff]
    %v2941 = vld [vmem:[#allocation2 + $0x1ec] sm:$0xff]
    %v2942 = vld [vmem:[#allocation2 + $0x1f4] sm:$0xf]
    %v2943 = vld [vmem:[#allocation2 + $0x214] sm:$0xff]
    %v2944 = vld [vmem:[#allocation2 + $0x21c] sm:$0xff]
    %v2945 = vld [vmem:[#allocation2 + $0x224] sm:$0xff]
    %v2946 = vld [vmem:[#allocation2 + $0x22c] sm:$0xf]
    %v2947 = vld [vmem:[#allocation2 + $0x24c] sm:$0xff]
    %v2948 = vld [vmem:[#allocation2 + $0x254] sm:$0xff]
    %v2949 = vld [vmem:[#allocation2 + $0x25c] sm:$0xff]
    %v2950 = vld [vmem:[#allocation2 + $0x264] sm:$0xf]
    %v2951 = vld [vmem:[#allocation2 + $0x284] sm:$0xff]
    %v2952 = vld [vmem:[#allocation2 + $0x28c] sm:$0xff]
    %v2953 = vld [vmem:[#allocation2 + $0x294] sm:$0xff]
    %v2954 = vld [vmem:[#allocation2 + $0x29c] sm:$0xf]
    %v2955 = vld [vmem:[#allocation2 + $0x2bc] sm:$0xff]
    %v2956 = vld [vmem:[#allocation2 + $0x2c4] sm:$0xff]
    %v2957 = vld [vmem:[#allocation2 + $0x2cc] sm:$0xff]
    %v2958 = vld [vmem:[#allocation2 + $0x2d4] sm:$0xf]
    %v2959 = vld [vmem:[#allocation2 + $0x2f4] sm:$0xff]
    %v2960 = vld [vmem:[#allocation2 + $0x2fc] sm:$0xff]
    %v2961 = vld [vmem:[#allocation2 + $0x304] sm:$0xff]
    %v2962 = vld [vmem:[#allocation2 + $0x30c] sm:$0xf]
    %v2963 = vld [vmem:[#allocation2 + $0x32c] sm:$0xff]
    %v2964 = vld [vmem:[#allocation2 + $0x334] sm:$0xff]
    %v2965 = vld [vmem:[#allocation2 + $0x33c] sm:$0xff]
    %v2966 = vld [vmem:[#allocation2 + $0x344] sm:$0xf]
    %v2967 = vld [vmem:[#allocation2 + $0x364] sm:$0xff]
    %v2968 = vld [vmem:[#allocation2 + $0x36c] sm:$0xff]
    %v2969 = vld [vmem:[#allocation2 + $0x374] sm:$0xff]
    %v2970 = vld [vmem:[#allocation2 + $0x37c] sm:$0xf]
    %v2971 = vpack.c.bf16 %v2906, %v2906
    %s2972 = scalar_lea.vmem [#allocation7], 5
    %v2973 = vld [vmem:[%s2972] ss:$8 sm:$0xf]
    %v2974 = vld [vmem:[%s2972] ss:$8 sm:$0xf0]
    %v2975 = vor.u32 %v2973, %v2974
    %v2977 = vperm.slane %v2975, 0
    %v2978 = vperm.slane %v2975, 1
    %v2979 = vperm.slane %v2975, 2
    %v2980 = vperm.slane %v2975, 3
    %v2981 = vperm.slane %v2975, 4
    %v2982 = vperm.slane %v2975, 5
    %v2983 = vperm.slane %v2975, 6
    %v3055 = vunpack.c.l.b16 %v2907
    %v3056 = vunpack.c.h.b16 %v2907
    %v3057 = vunpack.c.l.b16 %v2908
    %v3058 = vunpack.c.h.b16 %v2908
    %v3059 = vunpack.c.l.b16 %v2909
    %v3060 = vunpack.c.h.b16 %v2909
    %v3061 = vunpack.c.l.b16 %v2910
    %v3062 = vunpack.c.l.b16 %v2911
    %v3063 = vunpack.c.h.b16 %v2911
    %v3064 = vunpack.c.l.b16 %v2912
    %v3065 = vunpack.c.h.b16 %v2912
    %v3066 = vunpack.c.l.b16 %v2913
    %v3067 = vunpack.c.h.b16 %v2913
    %v3068 = vunpack.c.l.b16 %v2914
    %v3069 = vunpack.c.l.b16 %v2915
    %v3070 = vunpack.c.h.b16 %v2915
    %v3071 = vunpack.c.l.b16 %v2916
    %v3072 = vunpack.c.h.b16 %v2916
    %v3073 = vunpack.c.l.b16 %v2917
    %v3074 = vunpack.c.h.b16 %v2917
    %v3075 = vunpack.c.l.b16 %v2918
    %v3076 = vunpack.c.l.b16 %v2919
    %v3077 = vunpack.c.h.b16 %v2919
    %v3078 = vunpack.c.l.b16 %v2920
    %v3079 = vunpack.c.h.b16 %v2920
    %v3080 = vunpack.c.l.b16 %v2921
    %v3081 = vunpack.c.h.b16 %v2921
    %v3082 = vunpack.c.l.b16 %v2922
    %v3083 = vunpack.c.l.b16 %v2923
    %v3084 = vunpack.c.h.b16 %v2923
    %v3085 = vunpack.c.l.b16 %v2924
    %v3086 = vunpack.c.h.b16 %v2924
    %v3087 = vunpack.c.l.b16 %v2925
    %v3088 = vunpack.c.h.b16 %v2925
    %v3089 = vunpack.c.l.b16 %v2926
    %v3090 = vunpack.c.l.b16 %v2927
    %v3091 = vunpack.c.h.b16 %v2927
    %v3092 = vunpack.c.l.b16 %v2928
    %v3093 = vunpack.c.h.b16 %v2928
    %v3094 = vunpack.c.l.b16 %v2929
    %v3095 = vunpack.c.h.b16 %v2929
    %v3096 = vunpack.c.l.b16 %v2930
    %v3097 = vunpack.c.l.b16 %v2931
    %v3098 = vunpack.c.h.b16 %v2931
    %v3099 = vunpack.c.l.b16 %v2932
    %v3100 = vunpack.c.h.b16 %v2932
    %v3101 = vunpack.c.l.b16 %v2933
    %v3102 = vunpack.c.h.b16 %v2933
    %v3103 = vunpack.c.l.b16 %v2934
    %v3104 = vunpack.c.l.b16 %v2935
    %v3105 = vunpack.c.h.b16 %v2935
    %v3106 = vunpack.c.l.b16 %v2936
    %v3107 = vunpack.c.h.b16 %v2936
    %v3108 = vunpack.c.l.b16 %v2937
    %v3109 = vunpack.c.h.b16 %v2937
    %v3110 = vunpack.c.l.b16 %v2938
    %v3111 = vunpack.c.l.b16 %v2939
    %v3112 = vunpack.c.h.b16 %v2939
    %v3113 = vunpack.c.l.b16 %v2940
    %v3114 = vunpack.c.h.b16 %v2940
    %v3115 = vunpack.c.l.b16 %v2941
    %v3116 = vunpack.c.h.b16 %v2941
    %v3117 = vunpack.c.l.b16 %v2942
    %v3118 = vunpack.c.l.b16 %v2943
    %v3119 = vunpack.c.h.b16 %v2943
    %v3120 = vunpack.c.l.b16 %v2944
    %v3121 = vunpack.c.h.b16 %v2944
    %v3122 = vunpack.c.l.b16 %v2945
    %v3123 = vunpack.c.h.b16 %v2945
    %v3124 = vunpack.c.l.b16 %v2946
    %v3125 = vunpack.c.l.b16 %v2947
    %v3126 = vunpack.c.h.b16 %v2947
    %v3127 = vunpack.c.l.b16 %v2948
    %v3128 = vunpack.c.h.b16 %v2948
    %v3129 = vunpack.c.l.b16 %v2949
    %v3130 = vunpack.c.h.b16 %v2949
    %v3131 = vunpack.c.l.b16 %v2950
    %v3132 = vunpack.c.l.b16 %v2951
    %v3133 = vunpack.c.h.b16 %v2951
    %v3134 = vunpack.c.l.b16 %v2952
    %v3135 = vunpack.c.h.b16 %v2952
    %v3136 = vunpack.c.l.b16 %v2953
    %v3137 = vunpack.c.h.b16 %v2953
    %v3138 = vunpack.c.l.b16 %v2954
    %v3139 = vunpack.c.l.b16 %v2955
    %v3140 = vunpack.c.h.b16 %v2955
    %v3141 = vunpack.c.l.b16 %v2956
    %v3142 = vunpack.c.h.b16 %v2956
    %v3143 = vunpack.c.l.b16 %v2957
    %v3144 = vunpack.c.h.b16 %v2957
    %v3145 = vunpack.c.l.b16 %v2958
    %v3146 = vunpack.c.l.b16 %v2959
    %v3147 = vunpack.c.h.b16 %v2959
    %v3148 = vunpack.c.l.b16 %v2960
    %v3149 = vunpack.c.h.b16 %v2960
    %v3150 = vunpack.c.l.b16 %v2961
    %v3151 = vunpack.c.h.b16 %v2961
    %v3152 = vunpack.c.l.b16 %v2962
    %v3153 = vunpack.c.l.b16 %v2963
    %v3154 = vunpack.c.h.b16 %v2963
    %v3155 = vunpack.c.l.b16 %v2964
    %v3156 = vunpack.c.h.b16 %v2964
    %v3157 = vunpack.c.l.b16 %v2965
    %v3158 = vunpack.c.h.b16 %v2965
    %v3159 = vunpack.c.l.b16 %v2966
    %v3160 = vunpack.c.l.b16 %v2967
    %v3161 = vunpack.c.h.b16 %v2967
    %v3162 = vunpack.c.l.b16 %v2968
    %v3163 = vunpack.c.h.b16 %v2968
    %v3164 = vunpack.c.l.b16 %v2969
    %v3165 = vunpack.c.h.b16 %v2969
    %v3166 = vunpack.c.l.b16 %v2970
    %v3167 = vpack.c.b16 %v3062, %v3055
    %v3168 = vpack.c.b16 %v3063, %v3056
    %v3169 = vpack.c.b16 %v3064, %v3057
    %v3170 = vpack.c.b16 %v3065, %v3058
    %v3171 = vpack.c.b16 %v3066, %v3059
    %v3172 = vpack.c.b16 %v3067, %v3060
    %v3173 = vpack.c.b16 %v3068, %v3061
    %v3174 = vpack.c.b16 %v3076, %v3069
    %v3175 = vpack.c.b16 %v3077, %v3070
    %v3176 = vpack.c.b16 %v3078, %v3071
    %v3177 = vpack.c.b16 %v3079, %v3072
    %v3178 = vpack.c.b16 %v3080, %v3073
    %v3179 = vpack.c.b16 %v3081, %v3074
    %v3180 = vpack.c.b16 %v3082, %v3075
    %v3181 = vpack.c.b16 %v3090, %v3083
    %v3182 = vpack.c.b16 %v3091, %v3084
    %v3183 = vpack.c.b16 %v3092, %v3085
    %v3184 = vpack.c.b16 %v3093, %v3086
    %v3185 = vpack.c.b16 %v3094, %v3087
    %v3186 = vpack.c.b16 %v3095, %v3088
    %v3187 = vpack.c.b16 %v3096, %v3089
    %v3188 = vpack.c.b16 %v3104, %v3097
    %v3189 = vpack.c.b16 %v3105, %v3098
    %v3190 = vpack.c.b16 %v3106, %v3099
    %v3191 = vpack.c.b16 %v3107, %v3100
    %v3192 = vpack.c.b16 %v3108, %v3101
    %v3193 = vpack.c.b16 %v3109, %v3102
    %v3194 = vpack.c.b16 %v3110, %v3103
    %v3195 = vpack.c.b16 %v3118, %v3111
    %v3196 = vpack.c.b16 %v3119, %v3112
    %v3197 = vpack.c.b16 %v3120, %v3113
    %v3198 = vpack.c.b16 %v3121, %v3114
    %v3199 = vpack.c.b16 %v3122, %v3115
    %v3200 = vpack.c.b16 %v3123, %v3116
    %v3201 = vpack.c.b16 %v3124, %v3117
    %v3202 = vpack.c.b16 %v3132, %v3125
    %v3203 = vpack.c.b16 %v3133, %v3126
    %v3204 = vpack.c.b16 %v3134, %v3127
    %v3205 = vpack.c.b16 %v3135, %v3128
    %v3206 = vpack.c.b16 %v3136, %v3129
    %v3207 = vpack.c.b16 %v3137, %v3130
    %v3208 = vpack.c.b16 %v3138, %v3131
    %v3209 = vpack.c.b16 %v3146, %v3139
    %v3210 = vpack.c.b16 %v3147, %v3140
    %v3211 = vpack.c.b16 %v3148, %v3141
    %v3212 = vpack.c.b16 %v3149, %v3142
    %v3213 = vpack.c.b16 %v3150, %v3143
    %v3214 = vpack.c.b16 %v3151, %v3144
    %v3215 = vpack.c.b16 %v3152, %v3145
    %v3216 = vpack.c.b16 %v3160, %v3153
    %v3217 = vpack.c.b16 %v3161, %v3154
    %v3218 = vpack.c.b16 %v3162, %v3155
    %v3219 = vpack.c.b16 %v3163, %v3156
    %v3220 = vpack.c.b16 %v3164, %v3157
    %v3221 = vpack.c.b16 %v3165, %v3158
    %v3222 = vpack.c.b16 %v3166, %v3159
    %3279 = vmatpush.bf16.msra.mxu0 %v3216
    %3280 = vmatpush.bf16.msra.mxu0 %v3209
    %3281 = vmatpush.bf16.msra.mxu0 %v3202
    %3282 = vmatpush.bf16.msra.mxu0 %v3195
    %3283 = vmatpush.bf16.msra.mxu0 %v3188
    %3284 = vmatpush.bf16.msra.mxu0 %v3181
    %3285 = vmatpush.bf16.msra.mxu0 %v3174
    %3286 = vmatpush.bf16.msra.mxu0 %v3167
    %3287 = vmatmul.bf16.gmra.mxu0 %v2971
    %v3288 = vpop.f32.mrf.mxu0
    %v3289 = vadd.f32 %v2977, %v3288
    %v3290 = vpop.f32.mrf.mxu0
    %3291 = vdwg.mxu0
    %3292 = vmatpush.bf16.msra.mxu0 %v3217
    %3293 = vmatpush.bf16.msra.mxu0 %v3210
    %3294 = vmatpush.bf16.msra.mxu0 %v3203
    %3295 = vmatpush.bf16.msra.mxu0 %v3196
    %3296 = vmatpush.bf16.msra.mxu0 %v3189
    %3297 = vmatpush.bf16.msra.mxu0 %v3182
    %3298 = vmatpush.bf16.msra.mxu0 %v3175
    %3299 = vmatpush.bf16.msra.mxu0 %v3168
    %3300 = vmatmul.bf16.gmra.mxu0 %v2971
    %v3301 = vpop.f32.mrf.mxu0
    %v3302 = vadd.f32 %v2978, %v3301
    %v3303 = vpop.f32.mrf.mxu0
    %3304 = vdwg.mxu0
    %3305 = vmatpush.bf16.msra.mxu0 %v3218
    %3306 = vmatpush.bf16.msra.mxu0 %v3211
    %3307 = vmatpush.bf16.msra.mxu0 %v3204
    %3308 = vmatpush.bf16.msra.mxu0 %v3197
    %3309 = vmatpush.bf16.msra.mxu0 %v3190
    %3310 = vmatpush.bf16.msra.mxu0 %v3183
    %3311 = vmatpush.bf16.msra.mxu0 %v3176
    %3312 = vmatpush.bf16.msra.mxu0 %v3169
    %3313 = vmatmul.bf16.gmra.mxu0 %v2971
    %v3314 = vpop.f32.mrf.mxu0
    %v3315 = vadd.f32 %v2979, %v3314
    %v3316 = vpop.f32.mrf.mxu0
    %3317 = vdwg.mxu0
    %3318 = vmatpush.bf16.msra.mxu0 %v3219
    %3319 = vmatpush.bf16.msra.mxu0 %v3212
    %3320 = vmatpush.bf16.msra.mxu0 %v3205
    %3321 = vmatpush.bf16.msra.mxu0 %v3198
    %3322 = vmatpush.bf16.msra.mxu0 %v3191
    %3323 = vmatpush.bf16.msra.mxu0 %v3184
    %3324 = vmatpush.bf16.msra.mxu0 %v3177
    %3325 = vmatpush.bf16.msra.mxu0 %v3170
    %3326 = vmatmul.bf16.gmra.mxu0 %v2971
    %v3327 = vpop.f32.mrf.mxu0
    %v3328 = vadd.f32 %v2980, %v3327
    %v3329 = vpop.f32.mrf.mxu0
    %3330 = vdwg.mxu0
    %3331 = vmatpush.bf16.msra.mxu0 %v3220
    %3332 = vmatpush.bf16.msra.mxu0 %v3213
    %3333 = vmatpush.bf16.msra.mxu0 %v3206
    %3334 = vmatpush.bf16.msra.mxu0 %v3199
    %3335 = vmatpush.bf16.msra.mxu0 %v3192
    %3336 = vmatpush.bf16.msra.mxu0 %v3185
    %3337 = vmatpush.bf16.msra.mxu0 %v3178
    %3338 = vmatpush.bf16.msra.mxu0 %v3171
    %3339 = vmatmul.bf16.gmra.mxu0 %v2971
    %v3340 = vpop.f32.mrf.mxu0
    %v3341 = vadd.f32 %v2981, %v3340
    %v3342 = vpop.f32.mrf.mxu0
    %3343 = vdwg.mxu0
    %3344 = vmatpush.bf16.msra.mxu0 %v3221
    %3345 = vmatpush.bf16.msra.mxu0 %v3214
    %3346 = vmatpush.bf16.msra.mxu0 %v3207
    %3347 = vmatpush.bf16.msra.mxu0 %v3200
    %3348 = vmatpush.bf16.msra.mxu0 %v3193
    %3349 = vmatpush.bf16.msra.mxu0 %v3186
    %3350 = vmatpush.bf16.msra.mxu0 %v3179
    %3351 = vmatpush.bf16.msra.mxu0 %v3172
    %3352 = vmatmul.bf16.gmra.mxu0 %v2971
    %v3353 = vpop.f32.mrf.mxu0
    %v3354 = vadd.f32 %v2982, %v3353
    %v3355 = vpop.f32.mrf.mxu0
    %3356 = vdwg.mxu0
    %3357 = vmatpush.bf16.msra.mxu0 %v3222
    %3358 = vmatpush.bf16.msra.mxu0 %v3215
    %3359 = vmatpush.bf16.msra.mxu0 %v3208
    %3360 = vmatpush.bf16.msra.mxu0 %v3201
    %3361 = vmatpush.bf16.msra.mxu0 %v3194
    %3362 = vmatpush.bf16.msra.mxu0 %v3187
    %3363 = vmatpush.bf16.msra.mxu0 %v3180
    %3364 = vmatpush.bf16.msra.mxu0 %v3173
    %3365 = vmatmul.bf16.gmra.mxu0 %v2971
    %v3366 = vpop.f32.mrf.mxu0
    %v3367 = vadd.f32 %v2983, %v3366
    %v3368 = vpop.f32.mrf.mxu0
    %3369 = vdwg.mxu0
    %v3370 = vmax.f32 %v3289, 0.0
    %v3371 = vmax.f32 %v3302, 0.0
    %v3372 = vmax.f32 %v3315, 0.0
    %v3373 = vmax.f32 %v3328, 0.0
    %v3374 = vmax.f32 %v3341, 0.0
    %v3375 = vmax.f32 %v3354, 0.0
    %v3376 = vmax.f32 %v3367, 0.0
    %v3377 = vld [vmem:[#allocation6 + $0x4] sm:$0xff]
    %v3378 = vld [vmem:[#allocation6 + $0xc] sm:$0xff]
    %v3379 = vld [vmem:[#allocation6 + $0x18] sm:$0xff]
    %v3380 = vld [vmem:[#allocation6 + $0x20] sm:$0xff]
    %v3381 = vld [vmem:[#allocation6 + $0x2c] sm:$0xff]
    %v3382 = vld [vmem:[#allocation6 + $0x34] sm:$0xff]
    %v3383 = vld [vmem:[#allocation6 + $0x40] sm:$0xff]
    %v3384 = vld [vmem:[#allocation6 + $0x48] sm:$0xff]
    %v3385 = vld [vmem:[#allocation6 + $0x54] sm:$0xff]
    %v3386 = vld [vmem:[#allocation6 + $0x5c] sm:$0xff]
    %v3387 = vld [vmem:[#allocation6 + $0x68] sm:$0xff]
    %v3388 = vld [vmem:[#allocation6 + $0x70] sm:$0xff]
    %v3389 = vld [vmem:[#allocation6 + $0x7c] sm:$0xff]
    %v3390 = vld [vmem:[#allocation6 + $0x84] sm:$0xff]
    %v3391 = vld [vmem:[#allocation6 + $0x90] sm:$0xff]
    %v3392 = vld [vmem:[#allocation6 + $0x98] sm:$0xff]
    %v3393 = vld [vmem:[#allocation6 + $0xa4] sm:$0xff]
    %v3394 = vld [vmem:[#allocation6 + $0xac] sm:$0xff]
    %v3395 = vld [vmem:[#allocation6 + $0xb8] sm:$0xff]
    %v3396 = vld [vmem:[#allocation6 + $0xc0] sm:$0xff]
    %v3397 = vld [vmem:[#allocation6 + $0xcc] sm:$0xff]
    %v3398 = vld [vmem:[#allocation6 + $0xd4] sm:$0xff]
    %v3399 = vld [vmem:[#allocation6 + $0xe0] sm:$0xff]
    %v3400 = vld [vmem:[#allocation6 + $0xe8] sm:$0xff]
    %v3401 = vld [vmem:[#allocation6 + $0xf4] sm:$0xff]
    %v3402 = vld [vmem:[#allocation6 + $0xfc] sm:$0xff]
    %v3403 = vld [vmem:[#allocation6 + $0x108] sm:$0xff]
    %v3404 = vld [vmem:[#allocation6 + $0x110] sm:$0xff]
    %v3405 = vld [vmem:[#allocation6 + $0x11c] sm:$0xff]
    %v3406 = vld [vmem:[#allocation6 + $0x124] sm:$0xff]
    %v3407 = vld [vmem:[#allocation6 + $0x130] sm:$0xff]
    %v3408 = vld [vmem:[#allocation6 + $0x138] sm:$0xff]
    %v3409 = vld [vmem:[#allocation6 + $0x144] sm:$0xff]
    %v3410 = vld [vmem:[#allocation6 + $0x14c] sm:$0xff]
    %v3411 = vld [vmem:[#allocation6 + $0x158] sm:$0xff]
    %v3412 = vld [vmem:[#allocation6 + $0x160] sm:$0xff]
    %v3413 = vld [vmem:[#allocation6 + $0x16c] sm:$0xff]
    %v3414 = vld [vmem:[#allocation6 + $0x174] sm:$0xff]
    %v3415 = vld [vmem:[#allocation6 + $0x180] sm:$0xff]
    %v3416 = vld [vmem:[#allocation6 + $0x188] sm:$0xff]
    %v3417 = vld [vmem:[#allocation6 + $0x194] sm:$0xff]
    %v3418 = vld [vmem:[#allocation6 + $0x19c] sm:$0xff]
    %v3419 = vld [vmem:[#allocation6 + $0x1a8] sm:$0xff]
    %v3420 = vld [vmem:[#allocation6 + $0x1b0] sm:$0xff]
    %v3421 = vld [vmem:[#allocation6 + $0x1bc] sm:$0xff]
    %v3422 = vld [vmem:[#allocation6 + $0x1c4] sm:$0xff]
    %v3423 = vld [vmem:[#allocation6 + $0x1d0] sm:$0xff]
    %v3424 = vld [vmem:[#allocation6 + $0x1d8] sm:$0xff]
    %v3425 = vld [vmem:[#allocation6 + $0x1e4] sm:$0xff]
    %v3426 = vld [vmem:[#allocation6 + $0x1ec] sm:$0xff]
    %v3427 = vld [vmem:[#allocation6 + $0x1f8] sm:$0xff]
    %v3428 = vld [vmem:[#allocation6 + $0x200] sm:$0xff]
    %v3429 = vld [vmem:[#allocation6 + $0x20c] sm:$0xff]
    %v3430 = vld [vmem:[#allocation6 + $0x214] sm:$0xff]
    %v3431 = vld [vmem:[#allocation6 + $0x220] sm:$0xff]
    %v3432 = vld [vmem:[#allocation6 + $0x228] sm:$0xff]
    %v3433 = vld [vmem:[#allocation6 + $0x234] sm:$0xff]
    %v3434 = vld [vmem:[#allocation6 + $0x23c] sm:$0xff]
    %v3435 = vld [vmem:[#allocation6 + $0x248] sm:$0xff]
    %v3436 = vld [vmem:[#allocation6 + $0x250] sm:$0xff]
    %v3437 = vld [vmem:[#allocation6 + $0x25c] sm:$0xff]
    %v3438 = vld [vmem:[#allocation6 + $0x264] sm:$0xff]
    %v3439 = vld [vmem:[#allocation6 + $0x270] sm:$0xff]
    %v3440 = vld [vmem:[#allocation6 + $0x278] sm:$0xff]
    %v3441 = vld [vmem:[#allocation6 + $0x284] sm:$0xff]
    %v3442 = vld [vmem:[#allocation6 + $0x28c] sm:$0xff]
    %v3443 = vld [vmem:[#allocation6 + $0x298] sm:$0xff]
    %v3444 = vld [vmem:[#allocation6 + $0x2a0] sm:$0xff]
    %v3445 = vld [vmem:[#allocation6 + $0x2ac] sm:$0xff]
    %v3446 = vld [vmem:[#allocation6 + $0x2b4] sm:$0xff]
    %v3447 = vld [vmem:[#allocation6 + $0x2c0] sm:$0xff]
    %v3448 = vld [vmem:[#allocation6 + $0x2c8] sm:$0xff]
    %v3449 = vld [vmem:[#allocation6 + $0x2d4] sm:$0xff]
    %v3450 = vld [vmem:[#allocation6 + $0x2dc] sm:$0xff]
    %v3451 = vld [vmem:[#allocation6 + $0x2e8] sm:$0xff]
    %v3452 = vld [vmem:[#allocation6 + $0x2f0] sm:$0xff]
    %v3453 = vld [vmem:[#allocation6 + $0x2fc] sm:$0xff]
    %v3454 = vld [vmem:[#allocation6 + $0x304] sm:$0xff]
    %v3455 = vld [vmem:[#allocation6 + $0x310] sm:$0xff]
    %v3456 = vld [vmem:[#allocation6 + $0x318] sm:$0xff]
    %v3457 = vld [vmem:[#allocation6 + $0x324] sm:$0xff]
    %v3458 = vld [vmem:[#allocation6 + $0x32c] sm:$0xff]
    %v3459 = vld [vmem:[#allocation6 + $0x338] sm:$0xff]
    %v3460 = vld [vmem:[#allocation6 + $0x340] sm:$0xff]
    %v3461 = vld [vmem:[#allocation6 + $0x34c] sm:$0xff]
    %v3462 = vld [vmem:[#allocation6 + $0x354] sm:$0xff]
    %v3463 = vld [vmem:[#allocation6 + $0x360] sm:$0xff]
    %v3464 = vld [vmem:[#allocation6 + $0x368] sm:$0xff]
    %v3465 = vld [vmem:[#allocation6 + $0x374] sm:$0xff]
    %v3466 = vld [vmem:[#allocation6 + $0x37c] sm:$0xff]
    %v3467 = vld [vmem:[#allocation6 + $0x388] sm:$0xff]
    %v3468 = vld [vmem:[#allocation6 + $0x390] sm:$0xff]
    %v3469 = vld [vmem:[#allocation6 + $0x39c] sm:$0xff]
    %v3470 = vld [vmem:[#allocation6 + $0x3a4] sm:$0xff]
    %v3471 = vld [vmem:[#allocation6 + $0x3b0] sm:$0xff]
    %v3472 = vld [vmem:[#allocation6 + $0x3b8] sm:$0xff]
    %v3473 = vld [vmem:[#allocation6 + $0x3c4] sm:$0xff]
    %v3474 = vld [vmem:[#allocation6 + $0x3cc] sm:$0xff]
    %v3475 = vld [vmem:[#allocation6 + $0x3d8] sm:$0xff]
    %v3476 = vld [vmem:[#allocation6 + $0x3e0] sm:$0xff]
    %v3477 = vld [vmem:[#allocation6 + $0x3ec] sm:$0xff]
    %v3478 = vld [vmem:[#allocation6 + $0x3f4] sm:$0xff]
    %v3479 = vld [vmem:[#allocation6 + $0x400] sm:$0xff]
    %v3480 = vld [vmem:[#allocation6 + $0x408] sm:$0xff]
    %v3481 = vld [vmem:[#allocation6 + $0x414] sm:$0xff]
    %v3482 = vld [vmem:[#allocation6 + $0x41c] sm:$0xff]
    %v3483 = vld [vmem:[#allocation6 + $0x428] sm:$0xff]
    %v3484 = vld [vmem:[#allocation6 + $0x430] sm:$0xff]
    %v3485 = vld [vmem:[#allocation6 + $0x43c] sm:$0xff]
    %v3486 = vld [vmem:[#allocation6 + $0x444] sm:$0xff]
    %v3487 = vld [vmem:[#allocation6 + $0x450] sm:$0xff]
    %v3488 = vld [vmem:[#allocation6 + $0x458] sm:$0xff]
    %v3489 = vld [vmem:[#allocation6 + $0x464] sm:$0xff]
    %v3490 = vld [vmem:[#allocation6 + $0x46c] sm:$0xff]
    %v3491 = vld [vmem:[#allocation6 + $0x478] sm:$0xff]
    %v3492 = vld [vmem:[#allocation6 + $0x480] sm:$0xff]
    %v3493 = vld [vmem:[#allocation6 + $0x48c] sm:$0xff]
    %v3494 = vld [vmem:[#allocation6 + $0x494] sm:$0xff]
    %v3495 = vld [vmem:[#allocation6 + $0x4a0] sm:$0xff]
    %v3496 = vld [vmem:[#allocation6 + $0x4a8] sm:$0xff]
    %v3497 = vld [vmem:[#allocation6 + $0x4b4] sm:$0xff]
    %v3498 = vld [vmem:[#allocation6 + $0x4bc] sm:$0xff]
    %v3499 = vld [vmem:[#allocation6 + $0x4c8] sm:$0xff]
    %v3500 = vld [vmem:[#allocation6 + $0x4d0] sm:$0xff]
    %v3501 = vld [vmem:[#allocation6 + $0x4dc] sm:$0xff]
    %v3502 = vld [vmem:[#allocation6 + $0x4e4] sm:$0xff]
    %v3503 = vld [vmem:[#allocation6 + $0x4f0] sm:$0xff]
    %v3504 = vld [vmem:[#allocation6 + $0x4f8] sm:$0xff]
    %v3505 = vld [vmem:[#allocation6 + $0x504] sm:$0xff]
    %v3506 = vld [vmem:[#allocation6 + $0x50c] sm:$0xff]
    %v3507 = vld [vmem:[#allocation6 + $0x518] sm:$0xff]
    %v3508 = vld [vmem:[#allocation6 + $0x520] sm:$0xff]
    %v3509 = vld [vmem:[#allocation6 + $0x52c] sm:$0xff]
    %v3510 = vld [vmem:[#allocation6 + $0x534] sm:$0xff]
    %v3511 = vld [vmem:[#allocation6 + $0x540] sm:$0xff]
    %v3512 = vld [vmem:[#allocation6 + $0x548] sm:$0xff]
    %v3513 = vld [vmem:[#allocation6 + $0x554] sm:$0xff]
    %v3514 = vld [vmem:[#allocation6 + $0x55c] sm:$0xff]
    %v3515 = vld [vmem:[#allocation6 + $0x568] sm:$0xff]
    %v3516 = vld [vmem:[#allocation6 + $0x570] sm:$0xff]
    %v3517 = vld [vmem:[#allocation6 + $0x57c] sm:$0xff]
    %v3518 = vld [vmem:[#allocation6 + $0x584] sm:$0xff]
    %v3519 = vld [vmem:[#allocation6 + $0x590] sm:$0xff]
    %v3520 = vld [vmem:[#allocation6 + $0x598] sm:$0xff]
    %v3521 = vld [vmem:[#allocation6 + $0x5a4] sm:$0xff]
    %v3522 = vld [vmem:[#allocation6 + $0x5ac] sm:$0xff]
    %v3523 = vld [vmem:[#allocation6 + $0x5b8] sm:$0xff]
    %v3524 = vld [vmem:[#allocation6 + $0x5c0] sm:$0xff]
    %v3525 = vld [vmem:[#allocation6 + $0x5cc] sm:$0xff]
    %v3526 = vld [vmem:[#allocation6 + $0x5d4] sm:$0xff]
    %v3527 = vld [vmem:[#allocation6 + $0x5e0] sm:$0xff]
    %v3528 = vld [vmem:[#allocation6 + $0x5e8] sm:$0xff]
    %v3529 = vld [vmem:[#allocation6 + $0x5f4] sm:$0xff]
    %v3530 = vld [vmem:[#allocation6 + $0x5fc] sm:$0xff]
    %v3531 = vld [vmem:[#allocation6 + $0x608] sm:$0xff]
    %v3532 = vld [vmem:[#allocation6 + $0x610] sm:$0xff]
    %v3533 = vld [vmem:[#allocation6 + $0x61c] sm:$0xff]
    %v3534 = vld [vmem:[#allocation6 + $0x624] sm:$0xff]
    %v3535 = vld [vmem:[#allocation6 + $0x630] sm:$0xff]
    %v3536 = vld [vmem:[#allocation6 + $0x638] sm:$0xff]
    %v3537 = vld [vmem:[#allocation6 + $0x644] sm:$0xff]
    %v3538 = vld [vmem:[#allocation6 + $0x64c] sm:$0xff]
    %v3539 = vld [vmem:[#allocation6 + $0x658] sm:$0xff]
    %v3540 = vld [vmem:[#allocation6 + $0x660] sm:$0xff]
    %v3541 = vld [vmem:[#allocation6 + $0x66c] sm:$0xff]
    %v3542 = vld [vmem:[#allocation6 + $0x674] sm:$0xff]
    %v3543 = vld [vmem:[#allocation6 + $0x680] sm:$0xff]
    %v3544 = vld [vmem:[#allocation6 + $0x688] sm:$0xff]
    %v3545 = vld [vmem:[#allocation6 + $0x694] sm:$0xff]
    %v3546 = vld [vmem:[#allocation6 + $0x69c] sm:$0xff]
    %v3547 = vld [vmem:[#allocation6 + $0x6a8] sm:$0xff]
    %v3548 = vld [vmem:[#allocation6 + $0x6b0] sm:$0xff]
    %v3549 = vld [vmem:[#allocation6 + $0x6bc] sm:$0xff]
    %v3550 = vld [vmem:[#allocation6 + $0x6c4] sm:$0xff]
    %v3551 = vld [vmem:[#allocation6 + $0x6d0] sm:$0xff]
    %v3552 = vld [vmem:[#allocation6 + $0x6d8] sm:$0xff]
    %v3553 = vld [vmem:[#allocation6 + $0x6e4] sm:$0xff]
    %v3554 = vld [vmem:[#allocation6 + $0x6ec] sm:$0xff]
    %v3555 = vld [vmem:[#allocation6 + $0x6f8] sm:$0xff]
    %v3556 = vld [vmem:[#allocation6 + $0x700] sm:$0xff]
    %v3557 = vld [vmem:[#allocation6 + $0x70c] sm:$0xff]
    %v3558 = vld [vmem:[#allocation6 + $0x714] sm:$0xff]
    %v3559 = vld [vmem:[#allocation6 + $0x720] sm:$0xff]
    %v3560 = vld [vmem:[#allocation6 + $0x728] sm:$0xff]
    %v3561 = vld [vmem:[#allocation6 + $0x734] sm:$0xff]
    %v3562 = vld [vmem:[#allocation6 + $0x73c] sm:$0xff]
    %v3563 = vld [vmem:[#allocation6 + $0x748] sm:$0xff]
    %v3564 = vld [vmem:[#allocation6 + $0x750] sm:$0xff]
    %v3565 = vld [vmem:[#allocation6 + $0x75c] sm:$0xff]
    %v3566 = vld [vmem:[#allocation6 + $0x764] sm:$0xff]
    %v3567 = vld [vmem:[#allocation6 + $0x770] sm:$0xff]
    %v3568 = vld [vmem:[#allocation6 + $0x778] sm:$0xff]
    %v3569 = vld [vmem:[#allocation6 + $0x784] sm:$0xff]
    %v3570 = vld [vmem:[#allocation6 + $0x78c] sm:$0xff]
    %v3571 = vld [vmem:[#allocation6 + $0x798] sm:$0xff]
    %v3572 = vld [vmem:[#allocation6 + $0x7a0] sm:$0xff]
    %v3573 = vld [vmem:[#allocation6 + $0x7ac] sm:$0xff]
    %v3574 = vld [vmem:[#allocation6 + $0x7b4] sm:$0xff]
    %v3575 = vld [vmem:[#allocation6 + $0x7c0] sm:$0xff]
    %v3576 = vld [vmem:[#allocation6 + $0x7c8] sm:$0xff]
    %v3577 = vld [vmem:[#allocation6 + $0x7d4] sm:$0xff]
    %v3578 = vld [vmem:[#allocation6 + $0x7dc] sm:$0xff]
    %v3579 = vld [vmem:[#allocation6 + $0x7e8] sm:$0xff]
    %v3580 = vld [vmem:[#allocation6 + $0x7f0] sm:$0xff]
    %v3581 = vld [vmem:[#allocation6 + $0x7fc] sm:$0xff]
    %v3582 = vld [vmem:[#allocation6 + $0x804] sm:$0xff]
    %v3583 = vld [vmem:[#allocation6 + $0x810] sm:$0xff]
    %v3584 = vld [vmem:[#allocation6 + $0x818] sm:$0xff]
    %v3585 = vld [vmem:[#allocation6 + $0x824] sm:$0xff]
    %v3586 = vld [vmem:[#allocation6 + $0x82c] sm:$0xff]
    %v3587 = vld [vmem:[#allocation6 + $0x838] sm:$0xff]
    %v3588 = vld [vmem:[#allocation6 + $0x840] sm:$0xff]
    %v3589 = vld [vmem:[#allocation6 + $0x84c] sm:$0xff]
    %v3590 = vld [vmem:[#allocation6 + $0x854] sm:$0xff]
    %v3591 = vld [vmem:[#allocation6 + $0x860] sm:$0xff]
    %v3592 = vld [vmem:[#allocation6 + $0x868] sm:$0xff]
    %v3593 = vld [vmem:[#allocation6 + $0x874] sm:$0xff]
    %v3594 = vld [vmem:[#allocation6 + $0x87c] sm:$0xff]
    %v3595 = vld [vmem:[#allocation6 + $0x888] sm:$0xff]
    %v3596 = vld [vmem:[#allocation6 + $0x890] sm:$0xff]
    %v3597 = vld [vmem:[#allocation6 + $0x89c] sm:$0xff]
    %v3598 = vld [vmem:[#allocation6 + $0x8a4] sm:$0xff]
    %v3599 = vld [vmem:[#allocation6 + $0x8b0] sm:$0xff]
    %v3600 = vld [vmem:[#allocation6 + $0x8b8] sm:$0xff]
    %v3601 = vpack.c.bf16 %v3370, %v3370
    %v3602 = vpack.c.bf16 %v3371, %v3371
    %v3603 = vpack.c.bf16 %v3372, %v3372
    %v3604 = vpack.c.bf16 %v3373, %v3373
    %v3605 = vpack.c.bf16 %v3374, %v3374
    %v3606 = vpack.c.bf16 %v3375, %v3375
    %v3607 = vpack.c.bf16 %v3376, %v3376
    %s3608 = scalar_lea.vmem [#allocation7], 6
    %v3609 = vld [vmem:[%s3608] ss:$8 sm:$0xf]
    %v3611 = vperm.slane %v3609, 0
    %v3612 = vperm.slane %v3609, 1
    %v3613 = vperm.slane %v3609, 2
    %v3614 = vperm.slane %v3609, 3
    %v3843 = vunpack.c.l.b16 %v3377
    %v3844 = vunpack.c.h.b16 %v3377
    %v3845 = vunpack.c.l.b16 %v3378
    %v3846 = vunpack.c.h.b16 %v3378
    %v3847 = vunpack.c.l.b16 %v3379
    %v3848 = vunpack.c.h.b16 %v3379
    %v3849 = vunpack.c.l.b16 %v3380
    %v3850 = vunpack.c.h.b16 %v3380
    %v3851 = vunpack.c.l.b16 %v3381
    %v3852 = vunpack.c.h.b16 %v3381
    %v3853 = vunpack.c.l.b16 %v3382
    %v3854 = vunpack.c.h.b16 %v3382
    %v3855 = vunpack.c.l.b16 %v3383
    %v3856 = vunpack.c.h.b16 %v3383
    %v3857 = vunpack.c.l.b16 %v3384
    %v3858 = vunpack.c.h.b16 %v3384
    %v3859 = vunpack.c.l.b16 %v3385
    %v3860 = vunpack.c.h.b16 %v3385
    %v3861 = vunpack.c.l.b16 %v3386
    %v3862 = vunpack.c.h.b16 %v3386
    %v3863 = vunpack.c.l.b16 %v3387
    %v3864 = vunpack.c.h.b16 %v3387
    %v3865 = vunpack.c.l.b16 %v3388
    %v3866 = vunpack.c.h.b16 %v3388
    %v3867 = vunpack.c.l.b16 %v3389
    %v3868 = vunpack.c.h.b16 %v3389
    %v3869 = vunpack.c.l.b16 %v3390
    %v3870 = vunpack.c.h.b16 %v3390
    %v3871 = vunpack.c.l.b16 %v3391
    %v3872 = vunpack.c.h.b16 %v3391
    %v3873 = vunpack.c.l.b16 %v3392
    %v3874 = vunpack.c.h.b16 %v3392
    %v3875 = vunpack.c.l.b16 %v3393
    %v3876 = vunpack.c.h.b16 %v3393
    %v3877 = vunpack.c.l.b16 %v3394
    %v3878 = vunpack.c.h.b16 %v3394
    %v3879 = vunpack.c.l.b16 %v3395
    %v3880 = vunpack.c.h.b16 %v3395
    %v3881 = vunpack.c.l.b16 %v3396
    %v3882 = vunpack.c.h.b16 %v3396
    %v3883 = vunpack.c.l.b16 %v3397
    %v3884 = vunpack.c.h.b16 %v3397
    %v3885 = vunpack.c.l.b16 %v3398
    %v3886 = vunpack.c.h.b16 %v3398
    %v3887 = vunpack.c.l.b16 %v3399
    %v3888 = vunpack.c.h.b16 %v3399
    %v3889 = vunpack.c.l.b16 %v3400
    %v3890 = vunpack.c.h.b16 %v3400
    %v3891 = vunpack.c.l.b16 %v3401
    %v3892 = vunpack.c.h.b16 %v3401
    %v3893 = vunpack.c.l.b16 %v3402
    %v3894 = vunpack.c.h.b16 %v3402
    %v3895 = vunpack.c.l.b16 %v3403
    %v3896 = vunpack.c.h.b16 %v3403
    %v3897 = vunpack.c.l.b16 %v3404
    %v3898 = vunpack.c.h.b16 %v3404
    %v3899 = vunpack.c.l.b16 %v3405
    %v3900 = vunpack.c.h.b16 %v3405
    %v3901 = vunpack.c.l.b16 %v3406
    %v3902 = vunpack.c.h.b16 %v3406
    %v3903 = vunpack.c.l.b16 %v3407
    %v3904 = vunpack.c.h.b16 %v3407
    %v3905 = vunpack.c.l.b16 %v3408
    %v3906 = vunpack.c.h.b16 %v3408
    %v3907 = vunpack.c.l.b16 %v3409
    %v3908 = vunpack.c.h.b16 %v3409
    %v3909 = vunpack.c.l.b16 %v3410
    %v3910 = vunpack.c.h.b16 %v3410
    %v3911 = vunpack.c.l.b16 %v3411
    %v3912 = vunpack.c.h.b16 %v3411
    %v3913 = vunpack.c.l.b16 %v3412
    %v3914 = vunpack.c.h.b16 %v3412
    %v3915 = vunpack.c.l.b16 %v3413
    %v3916 = vunpack.c.h.b16 %v3413
    %v3917 = vunpack.c.l.b16 %v3414
    %v3918 = vunpack.c.h.b16 %v3414
    %v3919 = vunpack.c.l.b16 %v3415
    %v3920 = vunpack.c.h.b16 %v3415
    %v3921 = vunpack.c.l.b16 %v3416
    %v3922 = vunpack.c.h.b16 %v3416
    %v3923 = vunpack.c.l.b16 %v3417
    %v3924 = vunpack.c.h.b16 %v3417
    %v3925 = vunpack.c.l.b16 %v3418
    %v3926 = vunpack.c.h.b16 %v3418
    %v3927 = vunpack.c.l.b16 %v3419
    %v3928 = vunpack.c.h.b16 %v3419
    %v3929 = vunpack.c.l.b16 %v3420
    %v3930 = vunpack.c.h.b16 %v3420
    %v3931 = vunpack.c.l.b16 %v3421
    %v3932 = vunpack.c.h.b16 %v3421
    %v3933 = vunpack.c.l.b16 %v3422
    %v3934 = vunpack.c.h.b16 %v3422
    %v3935 = vunpack.c.l.b16 %v3423
    %v3936 = vunpack.c.h.b16 %v3423
    %v3937 = vunpack.c.l.b16 %v3424
    %v3938 = vunpack.c.h.b16 %v3424
    %v3939 = vunpack.c.l.b16 %v3425
    %v3940 = vunpack.c.h.b16 %v3425
    %v3941 = vunpack.c.l.b16 %v3426
    %v3942 = vunpack.c.h.b16 %v3426
    %v3943 = vunpack.c.l.b16 %v3427
    %v3944 = vunpack.c.h.b16 %v3427
    %v3945 = vunpack.c.l.b16 %v3428
    %v3946 = vunpack.c.h.b16 %v3428
    %v3947 = vunpack.c.l.b16 %v3429
    %v3948 = vunpack.c.h.b16 %v3429
    %v3949 = vunpack.c.l.b16 %v3430
    %v3950 = vunpack.c.h.b16 %v3430
    %v3951 = vunpack.c.l.b16 %v3431
    %v3952 = vunpack.c.h.b16 %v3431
    %v3953 = vunpack.c.l.b16 %v3432
    %v3954 = vunpack.c.h.b16 %v3432
    %v3955 = vunpack.c.l.b16 %v3433
    %v3956 = vunpack.c.h.b16 %v3433
    %v3957 = vunpack.c.l.b16 %v3434
    %v3958 = vunpack.c.h.b16 %v3434
    %v3959 = vunpack.c.l.b16 %v3435
    %v3960 = vunpack.c.h.b16 %v3435
    %v3961 = vunpack.c.l.b16 %v3436
    %v3962 = vunpack.c.h.b16 %v3436
    %v3963 = vunpack.c.l.b16 %v3437
    %v3964 = vunpack.c.h.b16 %v3437
    %v3965 = vunpack.c.l.b16 %v3438
    %v3966 = vunpack.c.h.b16 %v3438
    %v3967 = vunpack.c.l.b16 %v3439
    %v3968 = vunpack.c.h.b16 %v3439
    %v3969 = vunpack.c.l.b16 %v3440
    %v3970 = vunpack.c.h.b16 %v3440
    %v3971 = vunpack.c.l.b16 %v3441
    %v3972 = vunpack.c.h.b16 %v3441
    %v3973 = vunpack.c.l.b16 %v3442
    %v3974 = vunpack.c.h.b16 %v3442
    %v3975 = vunpack.c.l.b16 %v3443
    %v3976 = vunpack.c.h.b16 %v3443
    %v3977 = vunpack.c.l.b16 %v3444
    %v3978 = vunpack.c.h.b16 %v3444
    %v3979 = vunpack.c.l.b16 %v3445
    %v3980 = vunpack.c.h.b16 %v3445
    %v3981 = vunpack.c.l.b16 %v3446
    %v3982 = vunpack.c.h.b16 %v3446
    %v3983 = vunpack.c.l.b16 %v3447
    %v3984 = vunpack.c.h.b16 %v3447
    %v3985 = vunpack.c.l.b16 %v3448
    %v3986 = vunpack.c.h.b16 %v3448
    %v3987 = vunpack.c.l.b16 %v3449
    %v3988 = vunpack.c.h.b16 %v3449
    %v3989 = vunpack.c.l.b16 %v3450
    %v3990 = vunpack.c.h.b16 %v3450
    %v3991 = vunpack.c.l.b16 %v3451
    %v3992 = vunpack.c.h.b16 %v3451
    %v3993 = vunpack.c.l.b16 %v3452
    %v3994 = vunpack.c.h.b16 %v3452
    %v3995 = vunpack.c.l.b16 %v3453
    %v3996 = vunpack.c.h.b16 %v3453
    %v3997 = vunpack.c.l.b16 %v3454
    %v3998 = vunpack.c.h.b16 %v3454
    %v3999 = vunpack.c.l.b16 %v3455
    %v4000 = vunpack.c.h.b16 %v3455
    %v4001 = vunpack.c.l.b16 %v3456
    %v4002 = vunpack.c.h.b16 %v3456
    %v4003 = vunpack.c.l.b16 %v3457
    %v4004 = vunpack.c.h.b16 %v3457
    %v4005 = vunpack.c.l.b16 %v3458
    %v4006 = vunpack.c.h.b16 %v3458
    %v4007 = vunpack.c.l.b16 %v3459
    %v4008 = vunpack.c.h.b16 %v3459
    %v4009 = vunpack.c.l.b16 %v3460
    %v4010 = vunpack.c.h.b16 %v3460
    %v4011 = vunpack.c.l.b16 %v3461
    %v4012 = vunpack.c.h.b16 %v3461
    %v4013 = vunpack.c.l.b16 %v3462
    %v4014 = vunpack.c.h.b16 %v3462
    %v4015 = vunpack.c.l.b16 %v3463
    %v4016 = vunpack.c.h.b16 %v3463
    %v4017 = vunpack.c.l.b16 %v3464
    %v4018 = vunpack.c.h.b16 %v3464
    %v4019 = vunpack.c.l.b16 %v3465
    %v4020 = vunpack.c.h.b16 %v3465
    %v4021 = vunpack.c.l.b16 %v3466
    %v4022 = vunpack.c.h.b16 %v3466
    %v4023 = vunpack.c.l.b16 %v3467
    %v4024 = vunpack.c.h.b16 %v3467
    %v4025 = vunpack.c.l.b16 %v3468
    %v4026 = vunpack.c.h.b16 %v3468
    %v4027 = vunpack.c.l.b16 %v3469
    %v4028 = vunpack.c.h.b16 %v3469
    %v4029 = vunpack.c.l.b16 %v3470
    %v4030 = vunpack.c.h.b16 %v3470
    %v4031 = vunpack.c.l.b16 %v3471
    %v4032 = vunpack.c.h.b16 %v3471
    %v4033 = vunpack.c.l.b16 %v3472
    %v4034 = vunpack.c.h.b16 %v3472
    %v4035 = vunpack.c.l.b16 %v3473
    %v4036 = vunpack.c.h.b16 %v3473
    %v4037 = vunpack.c.l.b16 %v3474
    %v4038 = vunpack.c.h.b16 %v3474
    %v4039 = vunpack.c.l.b16 %v3475
    %v4040 = vunpack.c.h.b16 %v3475
    %v4041 = vunpack.c.l.b16 %v3476
    %v4042 = vunpack.c.h.b16 %v3476
    %v4043 = vunpack.c.l.b16 %v3477
    %v4044 = vunpack.c.h.b16 %v3477
    %v4045 = vunpack.c.l.b16 %v3478
    %v4046 = vunpack.c.h.b16 %v3478
    %v4047 = vunpack.c.l.b16 %v3479
    %v4048 = vunpack.c.h.b16 %v3479
    %v4049 = vunpack.c.l.b16 %v3480
    %v4050 = vunpack.c.h.b16 %v3480
    %v4051 = vunpack.c.l.b16 %v3481
    %v4052 = vunpack.c.h.b16 %v3481
    %v4053 = vunpack.c.l.b16 %v3482
    %v4054 = vunpack.c.h.b16 %v3482
    %v4055 = vunpack.c.l.b16 %v3483
    %v4056 = vunpack.c.h.b16 %v3483
    %v4057 = vunpack.c.l.b16 %v3484
    %v4058 = vunpack.c.h.b16 %v3484
    %v4059 = vunpack.c.l.b16 %v3485
    %v4060 = vunpack.c.h.b16 %v3485
    %v4061 = vunpack.c.l.b16 %v3486
    %v4062 = vunpack.c.h.b16 %v3486
    %v4063 = vunpack.c.l.b16 %v3487
    %v4064 = vunpack.c.h.b16 %v3487
    %v4065 = vunpack.c.l.b16 %v3488
    %v4066 = vunpack.c.h.b16 %v3488
    %v4067 = vunpack.c.l.b16 %v3489
    %v4068 = vunpack.c.h.b16 %v3489
    %v4069 = vunpack.c.l.b16 %v3490
    %v4070 = vunpack.c.h.b16 %v3490
    %v4071 = vunpack.c.l.b16 %v3491
    %v4072 = vunpack.c.h.b16 %v3491
    %v4073 = vunpack.c.l.b16 %v3492
    %v4074 = vunpack.c.h.b16 %v3492
    %v4075 = vunpack.c.l.b16 %v3493
    %v4076 = vunpack.c.h.b16 %v3493
    %v4077 = vunpack.c.l.b16 %v3494
    %v4078 = vunpack.c.h.b16 %v3494
    %v4079 = vunpack.c.l.b16 %v3495
    %v4080 = vunpack.c.h.b16 %v3495
    %v4081 = vunpack.c.l.b16 %v3496
    %v4082 = vunpack.c.h.b16 %v3496
    %v4083 = vunpack.c.l.b16 %v3497
    %v4084 = vunpack.c.h.b16 %v3497
    %v4085 = vunpack.c.l.b16 %v3498
    %v4086 = vunpack.c.h.b16 %v3498
    %v4087 = vunpack.c.l.b16 %v3499
    %v4088 = vunpack.c.h.b16 %v3499
    %v4089 = vunpack.c.l.b16 %v3500
    %v4090 = vunpack.c.h.b16 %v3500
    %v4091 = vunpack.c.l.b16 %v3501
    %v4092 = vunpack.c.h.b16 %v3501
    %v4093 = vunpack.c.l.b16 %v3502
    %v4094 = vunpack.c.h.b16 %v3502
    %v4095 = vunpack.c.l.b16 %v3503
    %v4096 = vunpack.c.h.b16 %v3503
    %v4097 = vunpack.c.l.b16 %v3504
    %v4098 = vunpack.c.h.b16 %v3504
    %v4099 = vunpack.c.l.b16 %v3505
    %v4100 = vunpack.c.h.b16 %v3505
    %v4101 = vunpack.c.l.b16 %v3506
    %v4102 = vunpack.c.h.b16 %v3506
    %v4103 = vunpack.c.l.b16 %v3507
    %v4104 = vunpack.c.h.b16 %v3507
    %v4105 = vunpack.c.l.b16 %v3508
    %v4106 = vunpack.c.h.b16 %v3508
    %v4107 = vunpack.c.l.b16 %v3509
    %v4108 = vunpack.c.h.b16 %v3509
    %v4109 = vunpack.c.l.b16 %v3510
    %v4110 = vunpack.c.h.b16 %v3510
    %v4111 = vunpack.c.l.b16 %v3511
    %v4112 = vunpack.c.h.b16 %v3511
    %v4113 = vunpack.c.l.b16 %v3512
    %v4114 = vunpack.c.h.b16 %v3512
    %v4115 = vunpack.c.l.b16 %v3513
    %v4116 = vunpack.c.h.b16 %v3513
    %v4117 = vunpack.c.l.b16 %v3514
    %v4118 = vunpack.c.h.b16 %v3514
    %v4119 = vunpack.c.l.b16 %v3515
    %v4120 = vunpack.c.h.b16 %v3515
    %v4121 = vunpack.c.l.b16 %v3516
    %v4122 = vunpack.c.h.b16 %v3516
    %v4123 = vunpack.c.l.b16 %v3517
    %v4124 = vunpack.c.h.b16 %v3517
    %v4125 = vunpack.c.l.b16 %v3518
    %v4126 = vunpack.c.h.b16 %v3518
    %v4127 = vunpack.c.l.b16 %v3519
    %v4128 = vunpack.c.h.b16 %v3519
    %v4129 = vunpack.c.l.b16 %v3520
    %v4130 = vunpack.c.h.b16 %v3520
    %v4131 = vunpack.c.l.b16 %v3521
    %v4132 = vunpack.c.h.b16 %v3521
    %v4133 = vunpack.c.l.b16 %v3522
    %v4134 = vunpack.c.h.b16 %v3522
    %v4135 = vunpack.c.l.b16 %v3523
    %v4136 = vunpack.c.h.b16 %v3523
    %v4137 = vunpack.c.l.b16 %v3524
    %v4138 = vunpack.c.h.b16 %v3524
    %v4139 = vunpack.c.l.b16 %v3525
    %v4140 = vunpack.c.h.b16 %v3525
    %v4141 = vunpack.c.l.b16 %v3526
    %v4142 = vunpack.c.h.b16 %v3526
    %v4143 = vunpack.c.l.b16 %v3527
    %v4144 = vunpack.c.h.b16 %v3527
    %v4145 = vunpack.c.l.b16 %v3528
    %v4146 = vunpack.c.h.b16 %v3528
    %v4147 = vunpack.c.l.b16 %v3529
    %v4148 = vunpack.c.h.b16 %v3529
    %v4149 = vunpack.c.l.b16 %v3530
    %v4150 = vunpack.c.h.b16 %v3530
    %v4151 = vunpack.c.l.b16 %v3531
    %v4152 = vunpack.c.h.b16 %v3531
    %v4153 = vunpack.c.l.b16 %v3532
    %v4154 = vunpack.c.h.b16 %v3532
    %v4155 = vunpack.c.l.b16 %v3533
    %v4156 = vunpack.c.h.b16 %v3533
    %v4157 = vunpack.c.l.b16 %v3534
    %v4158 = vunpack.c.h.b16 %v3534
    %v4159 = vunpack.c.l.b16 %v3535
    %v4160 = vunpack.c.h.b16 %v3535
    %v4161 = vunpack.c.l.b16 %v3536
    %v4162 = vunpack.c.h.b16 %v3536
    %v4163 = vunpack.c.l.b16 %v3537
    %v4164 = vunpack.c.h.b16 %v3537
    %v4165 = vunpack.c.l.b16 %v3538
    %v4166 = vunpack.c.h.b16 %v3538
    %v4167 = vunpack.c.l.b16 %v3539
    %v4168 = vunpack.c.h.b16 %v3539
    %v4169 = vunpack.c.l.b16 %v3540
    %v4170 = vunpack.c.h.b16 %v3540
    %v4171 = vunpack.c.l.b16 %v3541
    %v4172 = vunpack.c.h.b16 %v3541
    %v4173 = vunpack.c.l.b16 %v3542
    %v4174 = vunpack.c.h.b16 %v3542
    %v4175 = vunpack.c.l.b16 %v3543
    %v4176 = vunpack.c.h.b16 %v3543
    %v4177 = vunpack.c.l.b16 %v3544
    %v4178 = vunpack.c.h.b16 %v3544
    %v4179 = vunpack.c.l.b16 %v3545
    %v4180 = vunpack.c.h.b16 %v3545
    %v4181 = vunpack.c.l.b16 %v3546
    %v4182 = vunpack.c.h.b16 %v3546
    %v4183 = vunpack.c.l.b16 %v3547
    %v4184 = vunpack.c.h.b16 %v3547
    %v4185 = vunpack.c.l.b16 %v3548
    %v4186 = vunpack.c.h.b16 %v3548
    %v4187 = vunpack.c.l.b16 %v3549
    %v4188 = vunpack.c.h.b16 %v3549
    %v4189 = vunpack.c.l.b16 %v3550
    %v4190 = vunpack.c.h.b16 %v3550
    %v4191 = vunpack.c.l.b16 %v3551
    %v4192 = vunpack.c.h.b16 %v3551
    %v4193 = vunpack.c.l.b16 %v3552
    %v4194 = vunpack.c.h.b16 %v3552
    %v4195 = vunpack.c.l.b16 %v3553
    %v4196 = vunpack.c.h.b16 %v3553
    %v4197 = vunpack.c.l.b16 %v3554
    %v4198 = vunpack.c.h.b16 %v3554
    %v4199 = vunpack.c.l.b16 %v3555
    %v4200 = vunpack.c.h.b16 %v3555
    %v4201 = vunpack.c.l.b16 %v3556
    %v4202 = vunpack.c.h.b16 %v3556
    %v4203 = vunpack.c.l.b16 %v3557
    %v4204 = vunpack.c.h.b16 %v3557
    %v4205 = vunpack.c.l.b16 %v3558
    %v4206 = vunpack.c.h.b16 %v3558
    %v4207 = vunpack.c.l.b16 %v3559
    %v4208 = vunpack.c.h.b16 %v3559
    %v4209 = vunpack.c.l.b16 %v3560
    %v4210 = vunpack.c.h.b16 %v3560
    %v4211 = vunpack.c.l.b16 %v3561
    %v4212 = vunpack.c.h.b16 %v3561
    %v4213 = vunpack.c.l.b16 %v3562
    %v4214 = vunpack.c.h.b16 %v3562
    %v4215 = vunpack.c.l.b16 %v3563
    %v4216 = vunpack.c.h.b16 %v3563
    %v4217 = vunpack.c.l.b16 %v3564
    %v4218 = vunpack.c.h.b16 %v3564
    %v4219 = vunpack.c.l.b16 %v3565
    %v4220 = vunpack.c.h.b16 %v3565
    %v4221 = vunpack.c.l.b16 %v3566
    %v4222 = vunpack.c.h.b16 %v3566
    %v4223 = vunpack.c.l.b16 %v3567
    %v4224 = vunpack.c.h.b16 %v3567
    %v4225 = vunpack.c.l.b16 %v3568
    %v4226 = vunpack.c.h.b16 %v3568
    %v4227 = vunpack.c.l.b16 %v3569
    %v4228 = vunpack.c.h.b16 %v3569
    %v4229 = vunpack.c.l.b16 %v3570
    %v4230 = vunpack.c.h.b16 %v3570
    %v4231 = vunpack.c.l.b16 %v3571
    %v4232 = vunpack.c.h.b16 %v3571
    %v4233 = vunpack.c.l.b16 %v3572
    %v4234 = vunpack.c.h.b16 %v3572
    %v4235 = vunpack.c.l.b16 %v3573
    %v4236 = vunpack.c.h.b16 %v3573
    %v4237 = vunpack.c.l.b16 %v3574
    %v4238 = vunpack.c.h.b16 %v3574
    %v4239 = vunpack.c.l.b16 %v3575
    %v4240 = vunpack.c.h.b16 %v3575
    %v4241 = vunpack.c.l.b16 %v3576
    %v4242 = vunpack.c.h.b16 %v3576
    %v4243 = vunpack.c.l.b16 %v3577
    %v4244 = vunpack.c.h.b16 %v3577
    %v4245 = vunpack.c.l.b16 %v3578
    %v4246 = vunpack.c.h.b16 %v3578
    %v4247 = vunpack.c.l.b16 %v3579
    %v4248 = vunpack.c.h.b16 %v3579
    %v4249 = vunpack.c.l.b16 %v3580
    %v4250 = vunpack.c.h.b16 %v3580
    %v4251 = vunpack.c.l.b16 %v3581
    %v4252 = vunpack.c.h.b16 %v3581
    %v4253 = vunpack.c.l.b16 %v3582
    %v4254 = vunpack.c.h.b16 %v3582
    %v4255 = vunpack.c.l.b16 %v3583
    %v4256 = vunpack.c.h.b16 %v3583
    %v4257 = vunpack.c.l.b16 %v3584
    %v4258 = vunpack.c.h.b16 %v3584
    %v4259 = vunpack.c.l.b16 %v3585
    %v4260 = vunpack.c.h.b16 %v3585
    %v4261 = vunpack.c.l.b16 %v3586
    %v4262 = vunpack.c.h.b16 %v3586
    %v4263 = vunpack.c.l.b16 %v3587
    %v4264 = vunpack.c.h.b16 %v3587
    %v4265 = vunpack.c.l.b16 %v3588
    %v4266 = vunpack.c.h.b16 %v3588
    %v4267 = vunpack.c.l.b16 %v3589
    %v4268 = vunpack.c.h.b16 %v3589
    %v4269 = vunpack.c.l.b16 %v3590
    %v4270 = vunpack.c.h.b16 %v3590
    %v4271 = vunpack.c.l.b16 %v3591
    %v4272 = vunpack.c.h.b16 %v3591
    %v4273 = vunpack.c.l.b16 %v3592
    %v4274 = vunpack.c.h.b16 %v3592
    %v4275 = vunpack.c.l.b16 %v3593
    %v4276 = vunpack.c.h.b16 %v3593
    %v4277 = vunpack.c.l.b16 %v3594
    %v4278 = vunpack.c.h.b16 %v3594
    %v4279 = vunpack.c.l.b16 %v3595
    %v4280 = vunpack.c.h.b16 %v3595
    %v4281 = vunpack.c.l.b16 %v3596
    %v4282 = vunpack.c.h.b16 %v3596
    %v4283 = vunpack.c.l.b16 %v3597
    %v4284 = vunpack.c.h.b16 %v3597
    %v4285 = vunpack.c.l.b16 %v3598
    %v4286 = vunpack.c.h.b16 %v3598
    %v4287 = vunpack.c.l.b16 %v3599
    %v4288 = vunpack.c.h.b16 %v3599
    %v4289 = vunpack.c.l.b16 %v3600
    %v4290 = vunpack.c.h.b16 %v3600
    %v4291 = vpack.c.b16 %v3847, %v3843
    %v4292 = vpack.c.b16 %v3848, %v3844
    %v4293 = vpack.c.b16 %v3849, %v3845
    %v4294 = vpack.c.b16 %v3850, %v3846
    %v4295 = vpack.c.b16 %v3855, %v3851
    %v4296 = vpack.c.b16 %v3856, %v3852
    %v4297 = vpack.c.b16 %v3857, %v3853
    %v4298 = vpack.c.b16 %v3858, %v3854
    %v4299 = vpack.c.b16 %v3863, %v3859
    %v4300 = vpack.c.b16 %v3864, %v3860
    %v4301 = vpack.c.b16 %v3865, %v3861
    %v4302 = vpack.c.b16 %v3866, %v3862
    %v4303 = vpack.c.b16 %v3871, %v3867
    %v4304 = vpack.c.b16 %v3872, %v3868
    %v4305 = vpack.c.b16 %v3873, %v3869
    %v4306 = vpack.c.b16 %v3874, %v3870
    %v4307 = vpack.c.b16 %v3879, %v3875
    %v4308 = vpack.c.b16 %v3880, %v3876
    %v4309 = vpack.c.b16 %v3881, %v3877
    %v4310 = vpack.c.b16 %v3882, %v3878
    %v4311 = vpack.c.b16 %v3887, %v3883
    %v4312 = vpack.c.b16 %v3888, %v3884
    %v4313 = vpack.c.b16 %v3889, %v3885
    %v4314 = vpack.c.b16 %v3890, %v3886
    %v4315 = vpack.c.b16 %v3895, %v3891
    %v4316 = vpack.c.b16 %v3896, %v3892
    %v4317 = vpack.c.b16 %v3897, %v3893
    %v4318 = vpack.c.b16 %v3898, %v3894
    %v4319 = vpack.c.b16 %v3903, %v3899
    %v4320 = vpack.c.b16 %v3904, %v3900
    %v4321 = vpack.c.b16 %v3905, %v3901
    %v4322 = vpack.c.b16 %v3906, %v3902
    %v4323 = vpack.c.b16 %v3911, %v3907
    %v4324 = vpack.c.b16 %v3912, %v3908
    %v4325 = vpack.c.b16 %v3913, %v3909
    %v4326 = vpack.c.b16 %v3914, %v3910
    %v4327 = vpack.c.b16 %v3919, %v3915
    %v4328 = vpack.c.b16 %v3920, %v3916
    %v4329 = vpack.c.b16 %v3921, %v3917
    %v4330 = vpack.c.b16 %v3922, %v3918
    %v4331 = vpack.c.b16 %v3927, %v3923
    %v4332 = vpack.c.b16 %v3928, %v3924
    %v4333 = vpack.c.b16 %v3929, %v3925
    %v4334 = vpack.c.b16 %v3930, %v3926
    %v4335 = vpack.c.b16 %v3935, %v3931
    %v4336 = vpack.c.b16 %v3936, %v3932
    %v4337 = vpack.c.b16 %v3937, %v3933
    %v4338 = vpack.c.b16 %v3938, %v3934
    %v4339 = vpack.c.b16 %v3943, %v3939
    %v4340 = vpack.c.b16 %v3944, %v3940
    %v4341 = vpack.c.b16 %v3945, %v3941
    %v4342 = vpack.c.b16 %v3946, %v3942
    %v4343 = vpack.c.b16 %v3951, %v3947
    %v4344 = vpack.c.b16 %v3952, %v3948
    %v4345 = vpack.c.b16 %v3953, %v3949
    %v4346 = vpack.c.b16 %v3954, %v3950
    %v4347 = vpack.c.b16 %v3959, %v3955
    %v4348 = vpack.c.b16 %v3960, %v3956
    %v4349 = vpack.c.b16 %v3961, %v3957
    %v4350 = vpack.c.b16 %v3962, %v3958
    %v4351 = vpack.c.b16 %v3967, %v3963
    %v4352 = vpack.c.b16 %v3968, %v3964
    %v4353 = vpack.c.b16 %v3969, %v3965
    %v4354 = vpack.c.b16 %v3970, %v3966
    %v4355 = vpack.c.b16 %v3975, %v3971
    %v4356 = vpack.c.b16 %v3976, %v3972
    %v4357 = vpack.c.b16 %v3977, %v3973
    %v4358 = vpack.c.b16 %v3978, %v3974
    %v4359 = vpack.c.b16 %v3983, %v3979
    %v4360 = vpack.c.b16 %v3984, %v3980
    %v4361 = vpack.c.b16 %v3985, %v3981
    %v4362 = vpack.c.b16 %v3986, %v3982
    %v4363 = vpack.c.b16 %v3991, %v3987
    %v4364 = vpack.c.b16 %v3992, %v3988
    %v4365 = vpack.c.b16 %v3993, %v3989
    %v4366 = vpack.c.b16 %v3994, %v3990
    %v4367 = vpack.c.b16 %v3999, %v3995
    %v4368 = vpack.c.b16 %v4000, %v3996
    %v4369 = vpack.c.b16 %v4001, %v3997
    %v4370 = vpack.c.b16 %v4002, %v3998
    %v4371 = vpack.c.b16 %v4007, %v4003
    %v4372 = vpack.c.b16 %v4008, %v4004
    %v4373 = vpack.c.b16 %v4009, %v4005
    %v4374 = vpack.c.b16 %v4010, %v4006
    %v4375 = vpack.c.b16 %v4015, %v4011
    %v4376 = vpack.c.b16 %v4016, %v4012
    %v4377 = vpack.c.b16 %v4017, %v4013
    %v4378 = vpack.c.b16 %v4018, %v4014
    %v4379 = vpack.c.b16 %v4023, %v4019
    %v4380 = vpack.c.b16 %v4024, %v4020
    %v4381 = vpack.c.b16 %v4025, %v4021
    %v4382 = vpack.c.b16 %v4026, %v4022
    %v4383 = vpack.c.b16 %v4031, %v4027
    %v4384 = vpack.c.b16 %v4032, %v4028
    %v4385 = vpack.c.b16 %v4033, %v4029
    %v4386 = vpack.c.b16 %v4034, %v4030
    %v4387 = vpack.c.b16 %v4039, %v4035
    %v4388 = vpack.c.b16 %v4040, %v4036
    %v4389 = vpack.c.b16 %v4041, %v4037
    %v4390 = vpack.c.b16 %v4042, %v4038
    %v4391 = vpack.c.b16 %v4047, %v4043
    %v4392 = vpack.c.b16 %v4048, %v4044
    %v4393 = vpack.c.b16 %v4049, %v4045
    %v4394 = vpack.c.b16 %v4050, %v4046
    %v4395 = vpack.c.b16 %v4055, %v4051
    %v4396 = vpack.c.b16 %v4056, %v4052
    %v4397 = vpack.c.b16 %v4057, %v4053
    %v4398 = vpack.c.b16 %v4058, %v4054
    %v4399 = vpack.c.b16 %v4063, %v4059
    %v4400 = vpack.c.b16 %v4064, %v4060
    %v4401 = vpack.c.b16 %v4065, %v4061
    %v4402 = vpack.c.b16 %v4066, %v4062
    %v4403 = vpack.c.b16 %v4071, %v4067
    %v4404 = vpack.c.b16 %v4072, %v4068
    %v4405 = vpack.c.b16 %v4073, %v4069
    %v4406 = vpack.c.b16 %v4074, %v4070
    %v4407 = vpack.c.b16 %v4079, %v4075
    %v4408 = vpack.c.b16 %v4080, %v4076
    %v4409 = vpack.c.b16 %v4081, %v4077
    %v4410 = vpack.c.b16 %v4082, %v4078
    %v4411 = vpack.c.b16 %v4087, %v4083
    %v4412 = vpack.c.b16 %v4088, %v4084
    %v4413 = vpack.c.b16 %v4089, %v4085
    %v4414 = vpack.c.b16 %v4090, %v4086
    %v4415 = vpack.c.b16 %v4095, %v4091
    %v4416 = vpack.c.b16 %v4096, %v4092
    %v4417 = vpack.c.b16 %v4097, %v4093
    %v4418 = vpack.c.b16 %v4098, %v4094
    %v4419 = vpack.c.b16 %v4103, %v4099
    %v4420 = vpack.c.b16 %v4104, %v4100
    %v4421 = vpack.c.b16 %v4105, %v4101
    %v4422 = vpack.c.b16 %v4106, %v4102
    %v4423 = vpack.c.b16 %v4111, %v4107
    %v4424 = vpack.c.b16 %v4112, %v4108
    %v4425 = vpack.c.b16 %v4113, %v4109
    %v4426 = vpack.c.b16 %v4114, %v4110
    %v4427 = vpack.c.b16 %v4119, %v4115
    %v4428 = vpack.c.b16 %v4120, %v4116
    %v4429 = vpack.c.b16 %v4121, %v4117
    %v4430 = vpack.c.b16 %v4122, %v4118
    %v4431 = vpack.c.b16 %v4127, %v4123
    %v4432 = vpack.c.b16 %v4128, %v4124
    %v4433 = vpack.c.b16 %v4129, %v4125
    %v4434 = vpack.c.b16 %v4130, %v4126
    %v4435 = vpack.c.b16 %v4135, %v4131
    %v4436 = vpack.c.b16 %v4136, %v4132
    %v4437 = vpack.c.b16 %v4137, %v4133
    %v4438 = vpack.c.b16 %v4138, %v4134
    %v4439 = vpack.c.b16 %v4143, %v4139
    %v4440 = vpack.c.b16 %v4144, %v4140
    %v4441 = vpack.c.b16 %v4145, %v4141
    %v4442 = vpack.c.b16 %v4146, %v4142
    %v4443 = vpack.c.b16 %v4151, %v4147
    %v4444 = vpack.c.b16 %v4152, %v4148
    %v4445 = vpack.c.b16 %v4153, %v4149
    %v4446 = vpack.c.b16 %v4154, %v4150
    %v4447 = vpack.c.b16 %v4159, %v4155
    %v4448 = vpack.c.b16 %v4160, %v4156
    %v4449 = vpack.c.b16 %v4161, %v4157
    %v4450 = vpack.c.b16 %v4162, %v4158
    %v4451 = vpack.c.b16 %v4167, %v4163
    %v4452 = vpack.c.b16 %v4168, %v4164
    %v4453 = vpack.c.b16 %v4169, %v4165
    %v4454 = vpack.c.b16 %v4170, %v4166
    %v4455 = vpack.c.b16 %v4175, %v4171
    %v4456 = vpack.c.b16 %v4176, %v4172
    %v4457 = vpack.c.b16 %v4177, %v4173
    %v4458 = vpack.c.b16 %v4178, %v4174
    %v4459 = vpack.c.b16 %v4183, %v4179
    %v4460 = vpack.c.b16 %v4184, %v4180
    %v4461 = vpack.c.b16 %v4185, %v4181
    %v4462 = vpack.c.b16 %v4186, %v4182
    %v4463 = vpack.c.b16 %v4191, %v4187
    %v4464 = vpack.c.b16 %v4192, %v4188
    %v4465 = vpack.c.b16 %v4193, %v4189
    %v4466 = vpack.c.b16 %v4194, %v4190
    %v4467 = vpack.c.b16 %v4199, %v4195
    %v4468 = vpack.c.b16 %v4200, %v4196
    %v4469 = vpack.c.b16 %v4201, %v4197
    %v4470 = vpack.c.b16 %v4202, %v4198
    %v4471 = vpack.c.b16 %v4207, %v4203
    %v4472 = vpack.c.b16 %v4208, %v4204
    %v4473 = vpack.c.b16 %v4209, %v4205
    %v4474 = vpack.c.b16 %v4210, %v4206
    %v4475 = vpack.c.b16 %v4215, %v4211
    %v4476 = vpack.c.b16 %v4216, %v4212
    %v4477 = vpack.c.b16 %v4217, %v4213
    %v4478 = vpack.c.b16 %v4218, %v4214
    %v4479 = vpack.c.b16 %v4223, %v4219
    %v4480 = vpack.c.b16 %v4224, %v4220
    %v4481 = vpack.c.b16 %v4225, %v4221
    %v4482 = vpack.c.b16 %v4226, %v4222
    %v4483 = vpack.c.b16 %v4231, %v4227
    %v4484 = vpack.c.b16 %v4232, %v4228
    %v4485 = vpack.c.b16 %v4233, %v4229
    %v4486 = vpack.c.b16 %v4234, %v4230
    %v4487 = vpack.c.b16 %v4239, %v4235
    %v4488 = vpack.c.b16 %v4240, %v4236
    %v4489 = vpack.c.b16 %v4241, %v4237
    %v4490 = vpack.c.b16 %v4242, %v4238
    %v4491 = vpack.c.b16 %v4247, %v4243
    %v4492 = vpack.c.b16 %v4248, %v4244
    %v4493 = vpack.c.b16 %v4249, %v4245
    %v4494 = vpack.c.b16 %v4250, %v4246
    %v4495 = vpack.c.b16 %v4255, %v4251
    %v4496 = vpack.c.b16 %v4256, %v4252
    %v4497 = vpack.c.b16 %v4257, %v4253
    %v4498 = vpack.c.b16 %v4258, %v4254
    %v4499 = vpack.c.b16 %v4263, %v4259
    %v4500 = vpack.c.b16 %v4264, %v4260
    %v4501 = vpack.c.b16 %v4265, %v4261
    %v4502 = vpack.c.b16 %v4266, %v4262
    %v4503 = vpack.c.b16 %v4271, %v4267
    %v4504 = vpack.c.b16 %v4272, %v4268
    %v4505 = vpack.c.b16 %v4273, %v4269
    %v4506 = vpack.c.b16 %v4274, %v4270
    %v4507 = vpack.c.b16 %v4279, %v4275
    %v4508 = vpack.c.b16 %v4280, %v4276
    %v4509 = vpack.c.b16 %v4281, %v4277
    %v4510 = vpack.c.b16 %v4282, %v4278
    %v4511 = vpack.c.b16 %v4287, %v4283
    %v4512 = vpack.c.b16 %v4288, %v4284
    %v4513 = vpack.c.b16 %v4289, %v4285
    %v4514 = vpack.c.b16 %v4290, %v4286
    %4739 = vmatpush.bf16.msra.mxu0 %v4319
    %4740 = vmatpush.bf16.msra.mxu0 %v4315
    %4741 = vmatpush.bf16.msra.mxu0 %v4311
    %4742 = vmatpush.bf16.msra.mxu0 %v4307
    %4743 = vmatpush.bf16.msra.mxu0 %v4303
    %4744 = vmatpush.bf16.msra.mxu0 %v4299
    %4745 = vmatpush.bf16.msra.mxu0 %v4295
    %4746 = vmatpush.bf16.msra.mxu0 %v4291
    %4747 = vmatmul.bf16.gmra.mxu0 %v3601
    %v4748 = vpop.f32.mrf.mxu0
    %v4749 = vadd.f32 %v3611, %v4748
    %v4750 = vpop.f32.mrf.mxu0
    %4751 = vdwg.mxu0
    %4752 = vmatpush.bf16.msra.mxu0 %v4351
    %4753 = vmatpush.bf16.msra.mxu0 %v4347
    %4754 = vmatpush.bf16.msra.mxu0 %v4343
    %4755 = vmatpush.bf16.msra.mxu0 %v4339
    %4756 = vmatpush.bf16.msra.mxu0 %v4335
    %4757 = vmatpush.bf16.msra.mxu0 %v4331
    %4758 = vmatpush.bf16.msra.mxu0 %v4327
    %4759 = vmatpush.bf16.msra.mxu0 %v4323
    %4760 = vmatmul.bf16.gmra.mxu0 %v3602
    %v4761 = vpop.f32.mrf.mxu0
    %v4762 = vadd.f32 %v4749, %v4761
    %v4763 = vpop.f32.mrf.mxu0
    %4764 = vdwg.mxu0
    %4765 = vmatpush.bf16.msra.mxu0 %v4383
    %4766 = vmatpush.bf16.msra.mxu0 %v4379
    %4767 = vmatpush.bf16.msra.mxu0 %v4375
    %4768 = vmatpush.bf16.msra.mxu0 %v4371
    %4769 = vmatpush.bf16.msra.mxu0 %v4367
    %4770 = vmatpush.bf16.msra.mxu0 %v4363
    %4771 = vmatpush.bf16.msra.mxu0 %v4359
    %4772 = vmatpush.bf16.msra.mxu0 %v4355
    %4773 = vmatmul.bf16.gmra.mxu0 %v3603
    %v4774 = vpop.f32.mrf.mxu0
    %v4775 = vadd.f32 %v4762, %v4774
    %v4776 = vpop.f32.mrf.mxu0
    %4777 = vdwg.mxu0
    %4778 = vmatpush.bf16.msra.mxu0 %v4415
    %4779 = vmatpush.bf16.msra.mxu0 %v4411
    %4780 = vmatpush.bf16.msra.mxu0 %v4407
    %4781 = vmatpush.bf16.msra.mxu0 %v4403
    %4782 = vmatpush.bf16.msra.mxu0 %v4399
    %4783 = vmatpush.bf16.msra.mxu0 %v4395
    %4784 = vmatpush.bf16.msra.mxu0 %v4391
    %4785 = vmatpush.bf16.msra.mxu0 %v4387
    %4786 = vmatmul.bf16.gmra.mxu0 %v3604
    %v4787 = vpop.f32.mrf.mxu0
    %v4788 = vadd.f32 %v4775, %v4787
    %v4789 = vpop.f32.mrf.mxu0
    %4790 = vdwg.mxu0
    %4791 = vmatpush.bf16.msra.mxu0 %v4447
    %4792 = vmatpush.bf16.msra.mxu0 %v4443
    %4793 = vmatpush.bf16.msra.mxu0 %v4439
    %4794 = vmatpush.bf16.msra.mxu0 %v4435
    %4795 = vmatpush.bf16.msra.mxu0 %v4431
    %4796 = vmatpush.bf16.msra.mxu0 %v4427
    %4797 = vmatpush.bf16.msra.mxu0 %v4423
    %4798 = vmatpush.bf16.msra.mxu0 %v4419
    %4799 = vmatmul.bf16.gmra.mxu0 %v3605
    %v4800 = vpop.f32.mrf.mxu0
    %v4801 = vadd.f32 %v4788, %v4800
    %v4802 = vpop.f32.mrf.mxu0
    %4803 = vdwg.mxu0
    %4804 = vmatpush.bf16.msra.mxu0 %v4479
    %4805 = vmatpush.bf16.msra.mxu0 %v4475
    %4806 = vmatpush.bf16.msra.mxu0 %v4471
    %4807 = vmatpush.bf16.msra.mxu0 %v4467
    %4808 = vmatpush.bf16.msra.mxu0 %v4463
    %4809 = vmatpush.bf16.msra.mxu0 %v4459
    %4810 = vmatpush.bf16.msra.mxu0 %v4455
    %4811 = vmatpush.bf16.msra.mxu0 %v4451
    %4812 = vmatmul.bf16.gmra.mxu0 %v3606
    %v4813 = vpop.f32.mrf.mxu0
    %v4814 = vadd.f32 %v4801, %v4813
    %v4815 = vpop.f32.mrf.mxu0
    %4816 = vdwg.mxu0
    %4817 = vmatpush.bf16.msra.mxu0 %v4511
    %4818 = vmatpush.bf16.msra.mxu0 %v4507
    %4819 = vmatpush.bf16.msra.mxu0 %v4503
    %4820 = vmatpush.bf16.msra.mxu0 %v4499
    %4821 = vmatpush.bf16.msra.mxu0 %v4495
    %4822 = vmatpush.bf16.msra.mxu0 %v4491
    %4823 = vmatpush.bf16.msra.mxu0 %v4487
    %4824 = vmatpush.bf16.msra.mxu0 %v4483
    %4825 = vmatmul.bf16.gmra.mxu0 %v3607
    %v4826 = vpop.f32.mrf.mxu0
    %v4827 = vadd.f32 %v4814, %v4826
    %v4828 = vpop.f32.mrf.mxu0
    %4829 = vdwg.mxu0
    %4830 = vmatpush.bf16.msra.mxu0 %v4320
    %4831 = vmatpush.bf16.msra.mxu0 %v4316
    %4832 = vmatpush.bf16.msra.mxu0 %v4312
    %4833 = vmatpush.bf16.msra.mxu0 %v4308
    %4834 = vmatpush.bf16.msra.mxu0 %v4304
    %4835 = vmatpush.bf16.msra.mxu0 %v4300
    %4836 = vmatpush.bf16.msra.mxu0 %v4296
    %4837 = vmatpush.bf16.msra.mxu0 %v4292
    %4838 = vmatmul.bf16.gmra.mxu0 %v3601
    %v4839 = vpop.f32.mrf.mxu0
    %v4840 = vadd.f32 %v3612, %v4839
    %v4841 = vpop.f32.mrf.mxu0
    %4842 = vdwg.mxu0
    %4843 = vmatpush.bf16.msra.mxu0 %v4352
    %4844 = vmatpush.bf16.msra.mxu0 %v4348
    %4845 = vmatpush.bf16.msra.mxu0 %v4344
    %4846 = vmatpush.bf16.msra.mxu0 %v4340
    %4847 = vmatpush.bf16.msra.mxu0 %v4336
    %4848 = vmatpush.bf16.msra.mxu0 %v4332
    %4849 = vmatpush.bf16.msra.mxu0 %v4328
    %4850 = vmatpush.bf16.msra.mxu0 %v4324
    %4851 = vmatmul.bf16.gmra.mxu0 %v3602
    %v4852 = vpop.f32.mrf.mxu0
    %v4853 = vadd.f32 %v4840, %v4852
    %v4854 = vpop.f32.mrf.mxu0
    %4855 = vdwg.mxu0
    %4856 = vmatpush.bf16.msra.mxu0 %v4384
    %4857 = vmatpush.bf16.msra.mxu0 %v4380
    %4858 = vmatpush.bf16.msra.mxu0 %v4376
    %4859 = vmatpush.bf16.msra.mxu0 %v4372
    %4860 = vmatpush.bf16.msra.mxu0 %v4368
    %4861 = vmatpush.bf16.msra.mxu0 %v4364
    %4862 = vmatpush.bf16.msra.mxu0 %v4360
    %4863 = vmatpush.bf16.msra.mxu0 %v4356
    %4864 = vmatmul.bf16.gmra.mxu0 %v3603
    %v4865 = vpop.f32.mrf.mxu0
    %v4866 = vadd.f32 %v4853, %v4865
    %v4867 = vpop.f32.mrf.mxu0
    %4868 = vdwg.mxu0
    %4869 = vmatpush.bf16.msra.mxu0 %v4416
    %4870 = vmatpush.bf16.msra.mxu0 %v4412
    %4871 = vmatpush.bf16.msra.mxu0 %v4408
    %4872 = vmatpush.bf16.msra.mxu0 %v4404
    %4873 = vmatpush.bf16.msra.mxu0 %v4400
    %4874 = vmatpush.bf16.msra.mxu0 %v4396
    %4875 = vmatpush.bf16.msra.mxu0 %v4392
    %4876 = vmatpush.bf16.msra.mxu0 %v4388
    %4877 = vmatmul.bf16.gmra.mxu0 %v3604
    %v4878 = vpop.f32.mrf.mxu0
    %v4879 = vadd.f32 %v4866, %v4878
    %v4880 = vpop.f32.mrf.mxu0
    %4881 = vdwg.mxu0
    %4882 = vmatpush.bf16.msra.mxu0 %v4448
    %4883 = vmatpush.bf16.msra.mxu0 %v4444
    %4884 = vmatpush.bf16.msra.mxu0 %v4440
    %4885 = vmatpush.bf16.msra.mxu0 %v4436
    %4886 = vmatpush.bf16.msra.mxu0 %v4432
    %4887 = vmatpush.bf16.msra.mxu0 %v4428
    %4888 = vmatpush.bf16.msra.mxu0 %v4424
    %4889 = vmatpush.bf16.msra.mxu0 %v4420
    %4890 = vmatmul.bf16.gmra.mxu0 %v3605
    %v4891 = vpop.f32.mrf.mxu0
    %v4892 = vadd.f32 %v4879, %v4891
    %v4893 = vpop.f32.mrf.mxu0
    %4894 = vdwg.mxu0
    %4895 = vmatpush.bf16.msra.mxu0 %v4480
    %4896 = vmatpush.bf16.msra.mxu0 %v4476
    %4897 = vmatpush.bf16.msra.mxu0 %v4472
    %4898 = vmatpush.bf16.msra.mxu0 %v4468
    %4899 = vmatpush.bf16.msra.mxu0 %v4464
    %4900 = vmatpush.bf16.msra.mxu0 %v4460
    %4901 = vmatpush.bf16.msra.mxu0 %v4456
    %4902 = vmatpush.bf16.msra.mxu0 %v4452
    %4903 = vmatmul.bf16.gmra.mxu0 %v3606
    %v4904 = vpop.f32.mrf.mxu0
    %v4905 = vadd.f32 %v4892, %v4904
    %v4906 = vpop.f32.mrf.mxu0
    %4907 = vdwg.mxu0
    %4908 = vmatpush.bf16.msra.mxu0 %v4512
    %4909 = vmatpush.bf16.msra.mxu0 %v4508
    %4910 = vmatpush.bf16.msra.mxu0 %v4504
    %4911 = vmatpush.bf16.msra.mxu0 %v4500
    %4912 = vmatpush.bf16.msra.mxu0 %v4496
    %4913 = vmatpush.bf16.msra.mxu0 %v4492
    %4914 = vmatpush.bf16.msra.mxu0 %v4488
    %4915 = vmatpush.bf16.msra.mxu0 %v4484
    %4916 = vmatmul.bf16.gmra.mxu0 %v3607
    %v4917 = vpop.f32.mrf.mxu0
    %v4918 = vadd.f32 %v4905, %v4917
    %v4919 = vpop.f32.mrf.mxu0
    %4920 = vdwg.mxu0
    %4921 = vmatpush.bf16.msra.mxu0 %v4321
    %4922 = vmatpush.bf16.msra.mxu0 %v4317
    %4923 = vmatpush.bf16.msra.mxu0 %v4313
    %4924 = vmatpush.bf16.msra.mxu0 %v4309
    %4925 = vmatpush.bf16.msra.mxu0 %v4305
    %4926 = vmatpush.bf16.msra.mxu0 %v4301
    %4927 = vmatpush.bf16.msra.mxu0 %v4297
    %4928 = vmatpush.bf16.msra.mxu0 %v4293
    %4929 = vmatmul.bf16.gmra.mxu0 %v3601
    %v4930 = vpop.f32.mrf.mxu0
    %v4931 = vadd.f32 %v3613, %v4930
    %v4932 = vpop.f32.mrf.mxu0
    %4933 = vdwg.mxu0
    %4934 = vmatpush.bf16.msra.mxu0 %v4353
    %4935 = vmatpush.bf16.msra.mxu0 %v4349
    %4936 = vmatpush.bf16.msra.mxu0 %v4345
    %4937 = vmatpush.bf16.msra.mxu0 %v4341
    %4938 = vmatpush.bf16.msra.mxu0 %v4337
    %4939 = vmatpush.bf16.msra.mxu0 %v4333
    %4940 = vmatpush.bf16.msra.mxu0 %v4329
    %4941 = vmatpush.bf16.msra.mxu0 %v4325
    %4942 = vmatmul.bf16.gmra.mxu0 %v3602
    %v4943 = vpop.f32.mrf.mxu0
    %v4944 = vadd.f32 %v4931, %v4943
    %v4945 = vpop.f32.mrf.mxu0
    %4946 = vdwg.mxu0
    %4947 = vmatpush.bf16.msra.mxu0 %v4385
    %4948 = vmatpush.bf16.msra.mxu0 %v4381
    %4949 = vmatpush.bf16.msra.mxu0 %v4377
    %4950 = vmatpush.bf16.msra.mxu0 %v4373
    %4951 = vmatpush.bf16.msra.mxu0 %v4369
    %4952 = vmatpush.bf16.msra.mxu0 %v4365
    %4953 = vmatpush.bf16.msra.mxu0 %v4361
    %4954 = vmatpush.bf16.msra.mxu0 %v4357
    %4955 = vmatmul.bf16.gmra.mxu0 %v3603
    %v4956 = vpop.f32.mrf.mxu0
    %v4957 = vadd.f32 %v4944, %v4956
    %v4958 = vpop.f32.mrf.mxu0
    %4959 = vdwg.mxu0
    %4960 = vmatpush.bf16.msra.mxu0 %v4417
    %4961 = vmatpush.bf16.msra.mxu0 %v4413
    %4962 = vmatpush.bf16.msra.mxu0 %v4409
    %4963 = vmatpush.bf16.msra.mxu0 %v4405
    %4964 = vmatpush.bf16.msra.mxu0 %v4401
    %4965 = vmatpush.bf16.msra.mxu0 %v4397
    %4966 = vmatpush.bf16.msra.mxu0 %v4393
    %4967 = vmatpush.bf16.msra.mxu0 %v4389
    %4968 = vmatmul.bf16.gmra.mxu0 %v3604
    %v4969 = vpop.f32.mrf.mxu0
    %v4970 = vadd.f32 %v4957, %v4969
    %v4971 = vpop.f32.mrf.mxu0
    %4972 = vdwg.mxu0
    %4973 = vmatpush.bf16.msra.mxu0 %v4449
    %4974 = vmatpush.bf16.msra.mxu0 %v4445
    %4975 = vmatpush.bf16.msra.mxu0 %v4441
    %4976 = vmatpush.bf16.msra.mxu0 %v4437
    %4977 = vmatpush.bf16.msra.mxu0 %v4433
    %4978 = vmatpush.bf16.msra.mxu0 %v4429
    %4979 = vmatpush.bf16.msra.mxu0 %v4425
    %4980 = vmatpush.bf16.msra.mxu0 %v4421
    %4981 = vmatmul.bf16.gmra.mxu0 %v3605
    %v4982 = vpop.f32.mrf.mxu0
    %v4983 = vadd.f32 %v4970, %v4982
    %v4984 = vpop.f32.mrf.mxu0
    %4985 = vdwg.mxu0
    %4986 = vmatpush.bf16.msra.mxu0 %v4481
    %4987 = vmatpush.bf16.msra.mxu0 %v4477
    %4988 = vmatpush.bf16.msra.mxu0 %v4473
    %4989 = vmatpush.bf16.msra.mxu0 %v4469
    %4990 = vmatpush.bf16.msra.mxu0 %v4465
    %4991 = vmatpush.bf16.msra.mxu0 %v4461
    %4992 = vmatpush.bf16.msra.mxu0 %v4457
    %4993 = vmatpush.bf16.msra.mxu0 %v4453
    %4994 = vmatmul.bf16.gmra.mxu0 %v3606
    %v4995 = vpop.f32.mrf.mxu0
    %v4996 = vadd.f32 %v4983, %v4995
    %v4997 = vpop.f32.mrf.mxu0
    %4998 = vdwg.mxu0
    %4999 = vmatpush.bf16.msra.mxu0 %v4513
    %5000 = vmatpush.bf16.msra.mxu0 %v4509
    %5001 = vmatpush.bf16.msra.mxu0 %v4505
    %5002 = vmatpush.bf16.msra.mxu0 %v4501
    %5003 = vmatpush.bf16.msra.mxu0 %v4497
    %5004 = vmatpush.bf16.msra.mxu0 %v4493
    %5005 = vmatpush.bf16.msra.mxu0 %v4489
    %5006 = vmatpush.bf16.msra.mxu0 %v4485
    %5007 = vmatmul.bf16.gmra.mxu0 %v3607
    %v5008 = vpop.f32.mrf.mxu0
    %v5009 = vadd.f32 %v4996, %v5008
    %v5010 = vpop.f32.mrf.mxu0
    %5011 = vdwg.mxu0
    %5012 = vmatpush.bf16.msra.mxu0 %v4322
    %5013 = vmatpush.bf16.msra.mxu0 %v4318
    %5014 = vmatpush.bf16.msra.mxu0 %v4314
    %5015 = vmatpush.bf16.msra.mxu0 %v4310
    %5016 = vmatpush.bf16.msra.mxu0 %v4306
    %5017 = vmatpush.bf16.msra.mxu0 %v4302
    %5018 = vmatpush.bf16.msra.mxu0 %v4298
    %5019 = vmatpush.bf16.msra.mxu0 %v4294
    %5020 = vmatmul.bf16.gmra.mxu0 %v3601
    %v5021 = vpop.f32.mrf.mxu0
    %v5022 = vadd.f32 %v3614, %v5021
    %v5023 = vpop.f32.mrf.mxu0
    %5024 = vdwg.mxu0
    %5025 = vmatpush.bf16.msra.mxu0 %v4354
    %5026 = vmatpush.bf16.msra.mxu0 %v4350
    %5027 = vmatpush.bf16.msra.mxu0 %v4346
    %5028 = vmatpush.bf16.msra.mxu0 %v4342
    %5029 = vmatpush.bf16.msra.mxu0 %v4338
    %5030 = vmatpush.bf16.msra.mxu0 %v4334
    %5031 = vmatpush.bf16.msra.mxu0 %v4330
    %5032 = vmatpush.bf16.msra.mxu0 %v4326
    %5033 = vmatmul.bf16.gmra.mxu0 %v3602
    %v5034 = vpop.f32.mrf.mxu0
    %v5035 = vadd.f32 %v5022, %v5034
    %v5036 = vpop.f32.mrf.mxu0
    %5037 = vdwg.mxu0
    %5038 = vmatpush.bf16.msra.mxu0 %v4386
    %5039 = vmatpush.bf16.msra.mxu0 %v4382
    %5040 = vmatpush.bf16.msra.mxu0 %v4378
    %5041 = vmatpush.bf16.msra.mxu0 %v4374
    %5042 = vmatpush.bf16.msra.mxu0 %v4370
    %5043 = vmatpush.bf16.msra.mxu0 %v4366
    %5044 = vmatpush.bf16.msra.mxu0 %v4362
    %5045 = vmatpush.bf16.msra.mxu0 %v4358
    %5046 = vmatmul.bf16.gmra.mxu0 %v3603
    %v5047 = vpop.f32.mrf.mxu0
    %v5048 = vadd.f32 %v5035, %v5047
    %v5049 = vpop.f32.mrf.mxu0
    %5050 = vdwg.mxu0
    %5051 = vmatpush.bf16.msra.mxu0 %v4418
    %5052 = vmatpush.bf16.msra.mxu0 %v4414
    %5053 = vmatpush.bf16.msra.mxu0 %v4410
    %5054 = vmatpush.bf16.msra.mxu0 %v4406
    %5055 = vmatpush.bf16.msra.mxu0 %v4402
    %5056 = vmatpush.bf16.msra.mxu0 %v4398
    %5057 = vmatpush.bf16.msra.mxu0 %v4394
    %5058 = vmatpush.bf16.msra.mxu0 %v4390
    %5059 = vmatmul.bf16.gmra.mxu0 %v3604
    %v5060 = vpop.f32.mrf.mxu0
    %v5061 = vadd.f32 %v5048, %v5060
    %v5062 = vpop.f32.mrf.mxu0
    %5063 = vdwg.mxu0
    %5064 = vmatpush.bf16.msra.mxu0 %v4450
    %5065 = vmatpush.bf16.msra.mxu0 %v4446
    %5066 = vmatpush.bf16.msra.mxu0 %v4442
    %5067 = vmatpush.bf16.msra.mxu0 %v4438
    %5068 = vmatpush.bf16.msra.mxu0 %v4434
    %5069 = vmatpush.bf16.msra.mxu0 %v4430
    %5070 = vmatpush.bf16.msra.mxu0 %v4426
    %5071 = vmatpush.bf16.msra.mxu0 %v4422
    %5072 = vmatmul.bf16.gmra.mxu0 %v3605
    %v5073 = vpop.f32.mrf.mxu0
    %v5074 = vadd.f32 %v5061, %v5073
    %v5075 = vpop.f32.mrf.mxu0
    %5076 = vdwg.mxu0
    %5077 = vmatpush.bf16.msra.mxu0 %v4482
    %5078 = vmatpush.bf16.msra.mxu0 %v4478
    %5079 = vmatpush.bf16.msra.mxu0 %v4474
    %5080 = vmatpush.bf16.msra.mxu0 %v4470
    %5081 = vmatpush.bf16.msra.mxu0 %v4466
    %5082 = vmatpush.bf16.msra.mxu0 %v4462
    %5083 = vmatpush.bf16.msra.mxu0 %v4458
    %5084 = vmatpush.bf16.msra.mxu0 %v4454
    %5085 = vmatmul.bf16.gmra.mxu0 %v3606
    %v5086 = vpop.f32.mrf.mxu0
    %v5087 = vadd.f32 %v5074, %v5086
    %v5088 = vpop.f32.mrf.mxu0
    %5089 = vdwg.mxu0
    %5090 = vmatpush.bf16.msra.mxu0 %v4514
    %5091 = vmatpush.bf16.msra.mxu0 %v4510
    %5092 = vmatpush.bf16.msra.mxu0 %v4506
    %5093 = vmatpush.bf16.msra.mxu0 %v4502
    %5094 = vmatpush.bf16.msra.mxu0 %v4498
    %5095 = vmatpush.bf16.msra.mxu0 %v4494
    %5096 = vmatpush.bf16.msra.mxu0 %v4490
    %5097 = vmatpush.bf16.msra.mxu0 %v4486
    %5098 = vmatmul.bf16.gmra.mxu0 %v3607
    %v5099 = vpop.f32.mrf.mxu0
    %v5100 = vadd.f32 %v5087, %v5099
    %v5101 = vpop.f32.mrf.mxu0
    %5102 = vdwg.mxu0
    %v5103 = vmax.f32 %v4827, 0.0
    %v5104 = vmax.f32 %v4918, 0.0
    %v5105 = vmax.f32 %v5009, 0.0
    %v5106 = vmax.f32 %v5100, 0.0
    %v5107 = vld [vmem:[#allocation4 + $0x1c] sm:$0xf]
    %v5108 = vld [vmem:[#allocation4 + $0x3c] sm:$0xf]
    %v5109 = vld [vmem:[#allocation4 + $0x5c] sm:$0xf]
    %v5110 = vld [vmem:[#allocation4 + $0x7c] sm:$0xf]
    %v5111 = vld [vmem:[#allocation4 + $0x9c] sm:$0xf]
    %v5112 = vld [vmem:[#allocation4 + $0xbc] sm:$0xf]
    %v5113 = vld [vmem:[#allocation4 + $0xdc] sm:$0xf]
    %v5114 = vld [vmem:[#allocation4 + $0xfc] sm:$0xf]
    %v5115 = vld [vmem:[#allocation4 + $0x11c] sm:$0xf]
    %v5116 = vld [vmem:[#allocation4 + $0x13c] sm:$0xf]
    %v5117 = vld [vmem:[#allocation4 + $0x15c] sm:$0xf]
    %v5118 = vld [vmem:[#allocation4 + $0x17c] sm:$0xf]
    %v5119 = vld [vmem:[#allocation4 + $0x19c] sm:$0xf]
    %v5120 = vld [vmem:[#allocation4 + $0x1bc] sm:$0xf]
    %v5121 = vld [vmem:[#allocation4 + $0x1dc] sm:$0xf]
    %v5122 = vld [vmem:[#allocation4 + $0x1fc] sm:$0xf]
    %v5123 = vld [vmem:[#allocation4 + $0x21c] sm:$0xf]
    %v5124 = vld [vmem:[#allocation4 + $0x23c] sm:$0xf]
    %v5125 = vld [vmem:[#allocation4 + $0x25c] sm:$0xf]
    %v5126 = vld [vmem:[#allocation4 + $0x27c] sm:$0xf]
    %v5127 = vld [vmem:[#allocation4 + $0x29c] sm:$0xf]
    %v5128 = vld [vmem:[#allocation4 + $0x2bc] sm:$0xf]
    %v5129 = vld [vmem:[#allocation4 + $0x2dc] sm:$0xf]
    %v5130 = vld [vmem:[#allocation4 + $0x2fc] sm:$0xf]
    %v5131 = vld [vmem:[#allocation4 + $0x31c] sm:$0xf]
    %v5132 = vld [vmem:[#allocation4 + $0x33c] sm:$0xf]
    %v5133 = vld [vmem:[#allocation4 + $0x35c] sm:$0xf]
    %v5134 = vld [vmem:[#allocation4 + $0x37c] sm:$0xf]
    %v5135 = vld [vmem:[#allocation4 + $0x39c] sm:$0xf]
    %v5136 = vld [vmem:[#allocation4 + $0x3bc] sm:$0xf]
    %v5137 = vld [vmem:[#allocation4 + $0x3dc] sm:$0xf]
    %v5138 = vld [vmem:[#allocation4 + $0x3fc] sm:$0xf]
    %v5139 = vld [vmem:[#allocation4 + $0x41c] sm:$0xf]
    %v5140 = vld [vmem:[#allocation4 + $0x43c] sm:$0xf]
    %v5141 = vld [vmem:[#allocation4 + $0x45c] sm:$0xf]
    %v5142 = vld [vmem:[#allocation4 + $0x47c] sm:$0xf]
    %v5143 = vld [vmem:[#allocation4 + $0x49c] sm:$0xf]
    %v5144 = vld [vmem:[#allocation4 + $0x4bc] sm:$0xf]
    %v5145 = vld [vmem:[#allocation4 + $0x4dc] sm:$0xf]
    %v5146 = vld [vmem:[#allocation4 + $0x4fc] sm:$0xf]
    %v5147 = vld [vmem:[#allocation4 + $0x51c] sm:$0xf]
    %v5148 = vld [vmem:[#allocation4 + $0x53c] sm:$0xf]
    %v5149 = vld [vmem:[#allocation4 + $0x55c] sm:$0xf]
    %v5150 = vld [vmem:[#allocation4 + $0x57c] sm:$0xf]
    %v5151 = vld [vmem:[#allocation4 + $0x59c] sm:$0xf]
    %v5152 = vld [vmem:[#allocation4 + $0x5bc] sm:$0xf]
    %v5153 = vld [vmem:[#allocation4 + $0x5dc] sm:$0xf]
    %v5154 = vld [vmem:[#allocation4 + $0x5fc] sm:$0xf]
    %v5155 = vld [vmem:[#allocation4 + $0x61c] sm:$0xf]
    %v5156 = vld [vmem:[#allocation4 + $0x63c] sm:$0xf]
    %v5157 = vld [vmem:[#allocation4 + $0x65c] sm:$0xf]
    %v5158 = vld [vmem:[#allocation4 + $0x67c] sm:$0xf]
    %v5159 = vld [vmem:[#allocation4 + $0x69c] sm:$0xf]
    %v5160 = vld [vmem:[#allocation4 + $0x6bc] sm:$0xf]
    %v5161 = vld [vmem:[#allocation4 + $0x6dc] sm:$0xf]
    %v5162 = vld [vmem:[#allocation4 + $0x6fc] sm:$0xf]
    %v5163 = vld [vmem:[#allocation4 + $0x71c] sm:$0xf]
    %v5164 = vld [vmem:[#allocation4 + $0x73c] sm:$0xf]
    %v5165 = vld [vmem:[#allocation4 + $0x75c] sm:$0xf]
    %v5166 = vld [vmem:[#allocation4 + $0x77c] sm:$0xf]
    %v5167 = vld [vmem:[#allocation4 + $0x79c] sm:$0xf]
    %v5168 = vld [vmem:[#allocation4 + $0x7bc] sm:$0xf]
    %v5169 = vld [vmem:[#allocation4 + $0x7dc] sm:$0xf]
    %v5170 = vld [vmem:[#allocation4 + $0x7fc] sm:$0xf]
    %v5171 = vpack.c.bf16 %v5103, %v5103
    %v5172 = vpack.c.bf16 %v5104, %v5104
    %v5173 = vpack.c.bf16 %v5105, %v5105
    %v5174 = vpack.c.bf16 %v5106, %v5106
    %v5175 = vld [vmem:[#allocation7 + $0x7] ss:$0 sm:$0xff]
    %v5240 = vunpack.c.l.b16 %v5107
    %v5241 = vunpack.c.l.b16 %v5108
    %v5242 = vunpack.c.l.b16 %v5109
    %v5243 = vunpack.c.l.b16 %v5110
    %v5244 = vunpack.c.l.b16 %v5111
    %v5245 = vunpack.c.l.b16 %v5112
    %v5246 = vunpack.c.l.b16 %v5113
    %v5247 = vunpack.c.l.b16 %v5114
    %v5248 = vunpack.c.l.b16 %v5115
    %v5249 = vunpack.c.l.b16 %v5116
    %v5250 = vunpack.c.l.b16 %v5117
    %v5251 = vunpack.c.l.b16 %v5118
    %v5252 = vunpack.c.l.b16 %v5119
    %v5253 = vunpack.c.l.b16 %v5120
    %v5254 = vunpack.c.l.b16 %v5121
    %v5255 = vunpack.c.l.b16 %v5122
    %v5256 = vunpack.c.l.b16 %v5123
    %v5257 = vunpack.c.l.b16 %v5124
    %v5258 = vunpack.c.l.b16 %v5125
    %v5259 = vunpack.c.l.b16 %v5126
    %v5260 = vunpack.c.l.b16 %v5127
    %v5261 = vunpack.c.l.b16 %v5128
    %v5262 = vunpack.c.l.b16 %v5129
    %v5263 = vunpack.c.l.b16 %v5130
    %v5264 = vunpack.c.l.b16 %v5131
    %v5265 = vunpack.c.l.b16 %v5132
    %v5266 = vunpack.c.l.b16 %v5133
    %v5267 = vunpack.c.l.b16 %v5134
    %v5268 = vunpack.c.l.b16 %v5135
    %v5269 = vunpack.c.l.b16 %v5136
    %v5270 = vunpack.c.l.b16 %v5137
    %v5271 = vunpack.c.l.b16 %v5138
    %v5272 = vunpack.c.l.b16 %v5139
    %v5273 = vunpack.c.l.b16 %v5140
    %v5274 = vunpack.c.l.b16 %v5141
    %v5275 = vunpack.c.l.b16 %v5142
    %v5276 = vunpack.c.l.b16 %v5143
    %v5277 = vunpack.c.l.b16 %v5144
    %v5278 = vunpack.c.l.b16 %v5145
    %v5279 = vunpack.c.l.b16 %v5146
    %v5280 = vunpack.c.l.b16 %v5147
    %v5281 = vunpack.c.l.b16 %v5148
    %v5282 = vunpack.c.l.b16 %v5149
    %v5283 = vunpack.c.l.b16 %v5150
    %v5284 = vunpack.c.l.b16 %v5151
    %v5285 = vunpack.c.l.b16 %v5152
    %v5286 = vunpack.c.l.b16 %v5153
    %v5287 = vunpack.c.l.b16 %v5154
    %v5288 = vunpack.c.l.b16 %v5155
    %v5289 = vunpack.c.l.b16 %v5156
    %v5290 = vunpack.c.l.b16 %v5157
    %v5291 = vunpack.c.l.b16 %v5158
    %v5292 = vunpack.c.l.b16 %v5159
    %v5293 = vunpack.c.l.b16 %v5160
    %v5294 = vunpack.c.l.b16 %v5161
    %v5295 = vunpack.c.l.b16 %v5162
    %v5296 = vunpack.c.l.b16 %v5163
    %v5297 = vunpack.c.l.b16 %v5164
    %v5298 = vunpack.c.l.b16 %v5165
    %v5299 = vunpack.c.l.b16 %v5166
    %v5300 = vunpack.c.l.b16 %v5167
    %v5301 = vunpack.c.l.b16 %v5168
    %v5302 = vunpack.c.l.b16 %v5169
    %v5303 = vunpack.c.l.b16 %v5170
    %v5304 = vpack.c.b16 %v5241, %v5240
    %v5305 = vpack.c.b16 %v5243, %v5242
    %v5306 = vpack.c.b16 %v5245, %v5244
    %v5307 = vpack.c.b16 %v5247, %v5246
    %v5308 = vpack.c.b16 %v5249, %v5248
    %v5309 = vpack.c.b16 %v5251, %v5250
    %v5310 = vpack.c.b16 %v5253, %v5252
    %v5311 = vpack.c.b16 %v5255, %v5254
    %v5312 = vpack.c.b16 %v5257, %v5256
    %v5313 = vpack.c.b16 %v5259, %v5258
    %v5314 = vpack.c.b16 %v5261, %v5260
    %v5315 = vpack.c.b16 %v5263, %v5262
    %v5316 = vpack.c.b16 %v5265, %v5264
    %v5317 = vpack.c.b16 %v5267, %v5266
    %v5318 = vpack.c.b16 %v5269, %v5268
    %v5319 = vpack.c.b16 %v5271, %v5270
    %v5320 = vpack.c.b16 %v5273, %v5272
    %v5321 = vpack.c.b16 %v5275, %v5274
    %v5322 = vpack.c.b16 %v5277, %v5276
    %v5323 = vpack.c.b16 %v5279, %v5278
    %v5324 = vpack.c.b16 %v5281, %v5280
    %v5325 = vpack.c.b16 %v5283, %v5282
    %v5326 = vpack.c.b16 %v5285, %v5284
    %v5327 = vpack.c.b16 %v5287, %v5286
    %v5328 = vpack.c.b16 %v5289, %v5288
    %v5329 = vpack.c.b16 %v5291, %v5290
    %v5330 = vpack.c.b16 %v5293, %v5292
    %v5331 = vpack.c.b16 %v5295, %v5294
    %v5332 = vpack.c.b16 %v5297, %v5296
    %v5333 = vpack.c.b16 %v5299, %v5298
    %v5334 = vpack.c.b16 %v5301, %v5300
    %v5335 = vpack.c.b16 %v5303, %v5302
    %5368 = vmatpush.bf16.msra.mxu0 %v5311
    %5369 = vmatpush.bf16.msra.mxu0 %v5310
    %5370 = vmatpush.bf16.msra.mxu0 %v5309
    %5371 = vmatpush.bf16.msra.mxu0 %v5308
    %5372 = vmatpush.bf16.msra.mxu0 %v5307
    %5373 = vmatpush.bf16.msra.mxu0 %v5306
    %5374 = vmatpush.bf16.msra.mxu0 %v5305
    %5375 = vmatpush.bf16.msra.mxu0 %v5304
    %5376 = vmatmul.bf16.gmra.mxu0 %v5171
    %v5377 = vpop.f32.mrf.mxu0
    %v5378 = vadd.f32 %v5175, %v5377
    %v5379 = vpop.f32.mrf.mxu0
    %5380 = vdwg.mxu0
    %5381 = vmatpush.bf16.msra.mxu0 %v5319
    %5382 = vmatpush.bf16.msra.mxu0 %v5318
    %5383 = vmatpush.bf16.msra.mxu0 %v5317
    %5384 = vmatpush.bf16.msra.mxu0 %v5316
    %5385 = vmatpush.bf16.msra.mxu0 %v5315
    %5386 = vmatpush.bf16.msra.mxu0 %v5314
    %5387 = vmatpush.bf16.msra.mxu0 %v5313
    %5388 = vmatpush.bf16.msra.mxu0 %v5312
    %5389 = vmatmul.bf16.gmra.mxu0 %v5172
    %v5390 = vpop.f32.mrf.mxu0
    %v5391 = vadd.f32 %v5378, %v5390
    %v5392 = vpop.f32.mrf.mxu0
    %5393 = vdwg.mxu0
    %5394 = vmatpush.bf16.msra.mxu0 %v5327
    %5395 = vmatpush.bf16.msra.mxu0 %v5326
    %5396 = vmatpush.bf16.msra.mxu0 %v5325
    %5397 = vmatpush.bf16.msra.mxu0 %v5324
    %5398 = vmatpush.bf16.msra.mxu0 %v5323
    %5399 = vmatpush.bf16.msra.mxu0 %v5322
    %5400 = vmatpush.bf16.msra.mxu0 %v5321
    %5401 = vmatpush.bf16.msra.mxu0 %v5320
    %5402 = vmatmul.bf16.gmra.mxu0 %v5173
    %v5403 = vpop.f32.mrf.mxu0
    %v5404 = vadd.f32 %v5391, %v5403
    %v5405 = vpop.f32.mrf.mxu0
    %5406 = vdwg.mxu0
    %5407 = vmatpush.bf16.msra.mxu0 %v5335
    %5408 = vmatpush.bf16.msra.mxu0 %v5334
    %5409 = vmatpush.bf16.msra.mxu0 %v5333
    %5410 = vmatpush.bf16.msra.mxu0 %v5332
    %5411 = vmatpush.bf16.msra.mxu0 %v5331
    %5412 = vmatpush.bf16.msra.mxu0 %v5330
    %5413 = vmatpush.bf16.msra.mxu0 %v5329
    %5414 = vmatpush.bf16.msra.mxu0 %v5328
    %5415 = vmatmul.bf16.gmra.mxu0 %v5174
    %v5416 = vpop.f32.mrf.mxu0
    %v5417 = vadd.f32 %v5404, %v5416
    %v5418 = vpop.f32.mrf.mxu0
    %5419 = vdwg.mxu0
    %5420 = vst [vmem:[%s5] sm:$0x3] %v5417
    %5421 = vst [vmem:[%s5 + $0x2] sm:$0x3] %v2806
    %5422 = vst [vmem:[%s5 + $0x4] sm:$0x3] %v2819
    %5423 = vst [vmem:[%s5 + $0x6] sm:$0x3] %v2826
    // Predicated region
    $region38: #{vae_forward.1} parent=1 // pred_check
      _
    $region39: #{vae_forward.1} parent=1 // pred_check_branch
      %5425 = sbr.rel (0) target = $region41
    $region40: #{vae_forward.1} parent=1 // pred_region
      _
    $region41: #{vae_forward.1} parent=1 // pred_fallthru
      _
    // Predicated region
    $region42: #{vae_forward.1} parent=1 // pred_check
      _
    $region43: #{vae_forward.1} parent=1 // pred_check_branch
      %5427 = sbr.rel (0) target = $region45
    $region44: #{vae_forward.1} parent=1 // pred_region
      _
    $region45: #{vae_forward.1} parent=1 // pred_fallthru
      _
    %5428 = vsyncpa [#allocation3], 1
    %5429 = vsyncpa [#allocation5], 1
    %5430 = vsyncpa [#allocation8], 1

</llo_original>
